<compile_context>
chip_gen: v6e
topology: v6e:2x2x1
jax: 0.10.0
libtpu: 0.0.40
codegen_flags: <defaults>
</compile_context>

<pallas_src>
import functools

import jax
import jax.numpy as jnp
from jax.experimental import pallas as pl
from jax.experimental.pallas import tpu as pltpu

# ---- Problem sizes (module defaults) ----------------------------------------
LATENT_DIM = 32           # latent_dim; input feature dim = 2*latent_dim = 64
TWOL = 2 * LATENT_DIM
HIGH = 96                 # high_size
LOW = 16                  # low_size
RES_BLOCKS = 4

# ---- Padded (lane-dense) sizes used inside the kernel ------------------------
HIGH_P = 128
LOW_P = 128
OUT_P = 128               # LATENT_DIM padded to a full 128-lane store

BATCH = 256               # example batch (grid of 2 batch tiles)
TB = 128                  # batch tile per grid step


def _celu(v):
    # CELU(alpha=1): max(0, x) + min(0, exp(x) - 1); clamp arg of exp to avoid
    # overflow in the discarded branch.
    return jnp.where(v > 0, v, jnp.exp(jnp.minimum(v, 0.0)) - 1.0)


# ------------------------------------------------------------------------------
# Kernel
# ------------------------------------------------------------------------------
def nogradnet_kernel(x_ref,
                     w_in0_ref, b_in0_ref, w_in1_ref, b_in1_ref,
                     wa_x_all_ref, wa_x1_ref, ba_ref, wb_ref, bb_ref,
                     w_out0_ref, b_out0_ref, w_out1_ref, b_out1_ref,
                     s_ref, q_ref, o_ref):
    x = x_ref[...]                                   # (TB, 2L) f32
    x_bf = x.astype(jnp.bfloat16)

    # in_block: Linear -> CELU -> Linear
    h = _celu(jnp.dot(x_bf, w_in0_ref[...],
                      preferred_element_type=jnp.float32) + b_in0_ref[...])
    x1 = (jnp.dot(h.astype(jnp.bfloat16), w_in1_ref[...],
                  preferred_element_type=jnp.float32) + b_in1_ref[...])   # (TB, LOW_P)

    # Fused x-projection for all residual blocks: one (TB,2L)x(2L,4*HIGH_P) matmul.
    xp = jnp.dot(x_bf, wa_x_all_ref[...],
                 preferred_element_type=jnp.float32)                      # (TB, 4*HIGH_P)

    # residual blocks: x1 += Linear(Tanh(Linear(cat([x1, x]))))
    # with the concat replaced by the split matmul x1 @ Wa_x1[r] + xp[:, r-th slab].
    for r in range(RES_BLOCKS):                      # static unroll (4)
        pre = (jnp.dot(x1.astype(jnp.bfloat16), wa_x1_ref[r],
                       preferred_element_type=jnp.float32)
               + xp[:, r * HIGH_P:(r + 1) * HIGH_P]
               + ba_ref[r])
        hr = jnp.tanh(pre)
        x1 = x1 + (jnp.dot(hr.astype(jnp.bfloat16), wb_ref[r],
                           preferred_element_type=jnp.float32) + bb_ref[r])

    # out_block: Linear -> CELU -> Linear  (output padded to OUT_P lanes)
    h2 = _celu(jnp.dot(x1.astype(jnp.bfloat16), w_out0_ref[...],
                       preferred_element_type=jnp.float32) + b_out0_ref[...])
    out = (jnp.dot(h2.astype(jnp.bfloat16), w_out1_ref[...],
                   preferred_element_type=jnp.float32) + b_out1_ref[...])  # (TB, OUT_P)

    # Quadratic term: 2 * softplus(q) * x, halves summed.
    # Stable softplus; the half-sum + pad-to-OUT_P is done as an exact f32 matmul
    # with a 0/1 matrix S (columns >= LATENT_DIM are zero).
    q = q_ref[0]
    sp = jnp.maximum(q, 0.0) + jnp.log1p(jnp.exp(-jnp.abs(q)))
    quad = jnp.dot((2.0 * sp) * x, s_ref[...],
                   preferred_element_type=jnp.float32)                     # (TB, OUT_P)

    o_ref[...] = (out - quad).astype(o_ref.dtype)


# ------------------------------------------------------------------------------
# Wrapper
# ------------------------------------------------------------------------------
def _resident_spec(arr):
    """Whole-array VMEM block with a constant index_map (stays resident)."""
    zeros = (0,) * arr.ndim
    return pl.BlockSpec(arr.shape, lambda i, _z=zeros: _z)


def nogradnet_forward(x, kernel_params, tb=TB):
    (w_in0, b_in0, w_in1, b_in1,
     wa_x_all, wa_x1, ba, wb, bb,
     w_out0, b_out0, w_out1, b_out1, s_mat, q) = kernel_params

    B = x.shape[0]
    Bp = pl.cdiv(B, tb) * tb
    if Bp != B:
        x = jnp.pad(x, ((0, Bp - B), (0, 0)))

    resident = [w_in0, b_in0, w_in1, b_in1, wa_x_all, wa_x1, ba, wb, bb,
                w_out0, b_out0, w_out1, b_out1, s_mat]

    out = pl.pallas_call(
        nogradnet_kernel,
        out_shape=jax.ShapeDtypeStruct((Bp, OUT_P), jnp.float32),
        grid=(Bp // tb,),
        in_specs=([pl.BlockSpec((tb, TWOL), lambda i: (i, 0))]            # x tiles
                  + [_resident_spec(a) for a in resident]                 # weights
                  + [pl.BlockSpec(memory_space=pltpu.MemorySpace.SMEM)]), # q scalar
        out_specs=pl.BlockSpec((tb, OUT_P), lambda i: (i, 0)),
        compiler_params=pltpu.CompilerParams(
            dimension_semantics=("parallel",)),
    )(x, *resident, q)

    return out[:B, :LATENT_DIM]


# ------------------------------------------------------------------------------
# Parameter construction / preparation
# ------------------------------------------------------------------------------
def _bf16_round(a):
    return a.astype(jnp.bfloat16).astype(jnp.float32)


def make_params(key):
    """Logical (PyTorch-shaped) params; weights stored (in, out), bf16-representable."""
    ks = jax.random.split(key, 16)
    s = 0.1
    w_in0 = _bf16_round(jax.random.normal(ks[0], (TWOL, HIGH), jnp.float32) * s)
    b_in0 = jax.random.normal(ks[1], (1, HIGH), jnp.float32) * s
    w_in1 = _bf16_round(jax.random.normal(ks[2], (HIGH, LOW), jnp.float32) * s)
    b_in1 = jax.random.normal(ks[3], (1, LOW), jnp.float32) * s
    wa = _bf16_round(jax.random.normal(ks[4], (RES_BLOCKS, LOW + TWOL, HIGH),
                                       jnp.float32) * s)
    ba = jax.random.normal(ks[5], (RES_BLOCKS, 1, HIGH), jnp.float32) * s
    wb = _bf16_round(jax.random.normal(ks[6], (RES_BLOCKS, HIGH, LOW),
                                       jnp.float32) * s)
    bb = jax.random.normal(ks[7], (RES_BLOCKS, 1, LOW), jnp.float32) * s
    w_out0 = _bf16_round(jax.random.normal(ks[8], (LOW, HIGH), jnp.float32) * s)
    b_out0 = jax.random.normal(ks[9], (1, HIGH), jnp.float32) * s
    w_out1 = _bf16_round(jax.random.normal(ks[10], (HIGH, LATENT_DIM), jnp.float32) * s)
    b_out1 = jax.random.normal(ks[11], (1, LATENT_DIM), jnp.float32) * s
    q = jax.random.normal(ks[12], (1,), jnp.float32)      # _quadratic_term scalar
    return (w_in0, b_in0, w_in1, b_in1, wa, ba, wb, bb,
            w_out0, b_out0, w_out1, b_out1, q)


def _pad_last2(a, rows, cols):
    pad = [(0, 0)] * (a.ndim - 2) + [(0, rows - a.shape[-2]),
                                     (0, cols - a.shape[-1])]
    return jnp.pad(a, pad)


def prepare_kernel_params(params):
    """Split/fuse/pad/cast the logical params into the layout the kernel expects."""
    (w_in0, b_in0, w_in1, b_in1, wa, ba, wb, bb,
     w_out0, b_out0, w_out1, b_out1, q) = params

    bf = jnp.bfloat16
    w_in0_k = _pad_last2(w_in0, TWOL, HIGH_P).astype(bf)
    b_in0_k = _pad_last2(b_in0, 1, HIGH_P)
    w_in1_k = _pad_last2(w_in1, HIGH_P, LOW_P).astype(bf)
    b_in1_k = _pad_last2(b_in1, 1, LOW_P)

    # Residual-block first Linear, split into the x1 part and the x part.
    wa_x1 = _pad_last2(wa[:, :LOW, :], LOW_P, HIGH_P).astype(bf)        # (R,LOW_P,HIGH_P)
    wa_x = _pad_last2(wa[:, LOW:, :], TWOL, HIGH_P)                     # (R,2L,HIGH_P)
    wa_x_all = jnp.transpose(wa_x, (1, 0, 2)).reshape(
        TWOL, RES_BLOCKS * HIGH_P).astype(bf)                           # (2L, R*HIGH_P)
    ba_k = _pad_last2(ba, 1, HIGH_P)                                    # (R,1,HIGH_P)
    wb_k = _pad_last2(wb, HIGH_P, LOW_P).astype(bf)                     # (R,HIGH_P,LOW_P)
    bb_k = _pad_last2(bb, 1, LOW_P)                                     # (R,1,LOW_P)

    w_out0_k = _pad_last2(w_out0, LOW_P, HIGH_P).astype(bf)
    b_out0_k = _pad_last2(b_out0, 1, HIGH_P)
    w_out1_k = _pad_last2(w_out1, HIGH_P, OUT_P).astype(bf)
    b_out1_k = _pad_last2(b_out1, 1, OUT_P)

    # 0/1 "sum the two halves" matrix, padded to OUT_P columns (f32 -> exact).
    eye = jnp.eye(LATENT_DIM, dtype=jnp.float32)
    s_mat = _pad_last2(jnp.concatenate([eye, eye], axis=0), TWOL, OUT_P)

    return (w_in0_k, b_in0_k, w_in1_k, b_in1_k,
            wa_x_all, wa_x1, ba_k, wb_k, bb_k,
            w_out0_k, b_out0_k, w_out1_k, b_out1_k, s_mat, q)


# ------------------------------------------------------------------------------
# Pure-JAX reference (mirrors the PyTorch forward; bf16 at matmul inputs to
# match the kernel's quantization policy, f32 accumulation/elementwise).
# ------------------------------------------------------------------------------
def reference_forward(x, params):
    (w_in0, b_in0, w_in1, b_in1, wa, ba, wb, bb,
     w_out0, b_out0, w_out1, b_out1, q) = params

    def dot_bf16(a, w):
        return jnp.dot(a.astype(jnp.bfloat16), w.astype(jnp.bfloat16),
                       preferred_element_type=jnp.float32)

    x1 = dot_bf16(_celu(dot_bf16(x, w_in0) + b_in0), w_in1) + b_in1
    for r in range(RES_BLOCKS):
        cat = jnp.concatenate([x1, x], axis=-1)
        x1 = x1 + dot_bf16(jnp.tanh(dot_bf16(cat, wa[r]) + ba[r]), wb[r]) + bb[r]
    quad = 2.0 * jax.nn.softplus(q[0]) * x
    quad_sum = quad[:, :LATENT_DIM] + quad[:, LATENT_DIM:]
    out = dot_bf16(_celu(dot_bf16(x1, w_out0) + b_out0), w_out1) + b_out1
    return out - quad_sum


# ------------------------------------------------------------------------------
if __name__ == "__main__":
    key = jax.random.PRNGKey(0)
    kx, kp = jax.random.split(key)

    x = jax.random.normal(kx, (BATCH, TWOL), jnp.float32)
    params = make_params(kp)
    kernel_params = prepare_kernel_params(params)

    out = nogradnet_forward(x, kernel_params)
    out = jax.block_until_ready(out)

    ref = reference_forward(x, params)
    assert out.shape == (BATCH, LATENT_DIM)
    assert bool(jnp.allclose(out, ref, atol=1e-3, rtol=1e-3)), "mismatch vs reference"
    print("KERNEL_OK")
</pallas_src>

<mosaic_0001>
module attributes {stable_mosaic.version = 11 : i64} {
  func.func @nogradnet_kernel(%arg0: i32, %arg1: memref<128x64xf32, #tpu.memory_space<vmem>>, %arg2: memref<64x128xbf16, #tpu.memory_space<vmem>>, %arg3: memref<1x128xf32, #tpu.memory_space<vmem>>, %arg4: memref<128x128xbf16, #tpu.memory_space<vmem>>, %arg5: memref<1x128xf32, #tpu.memory_space<vmem>>, %arg6: memref<64x512xbf16, #tpu.memory_space<vmem>>, %arg7: memref<4x128x128xbf16, #tpu.memory_space<vmem>>, %arg8: memref<4x1x128xf32, #tpu.memory_space<vmem>>, %arg9: memref<4x128x128xbf16, #tpu.memory_space<vmem>>, %arg10: memref<4x1x128xf32, #tpu.memory_space<vmem>>, %arg11: memref<128x128xbf16, #tpu.memory_space<vmem>>, %arg12: memref<1x128xf32, #tpu.memory_space<vmem>>, %arg13: memref<128x128xbf16, #tpu.memory_space<vmem>>, %arg14: memref<1x128xf32, #tpu.memory_space<vmem>>, %arg15: memref<64x128xf32, #tpu.memory_space<vmem>>, %arg16: memref<1xf32, #tpu.memory_space<smem>>, %arg17: memref<128x128xf32, #tpu.memory_space<vmem>>) attributes {dimension_semantics = [#tpu.dimension_semantics<parallel>], iteration_bounds = array<i64: 2>, scalar_prefetch = 0 : i64, scratch_operands = 0 : i64, tpu.core_type = #tpu.core_type<tc>, window_params = [{transform_indices = @transform_0, window_bounds = array<i64: 128, 64>}, {pipeline_mode = #tpu.pipeline_mode<synchronous>, transform_indices = @transform_1, window_bounds = array<i64: 64, 128>}, {pipeline_mode = #tpu.pipeline_mode<synchronous>, transform_indices = @transform_2, window_bounds = array<i64: 1, 128>}, {pipeline_mode = #tpu.pipeline_mode<synchronous>, transform_indices = @transform_3, window_bounds = array<i64: 128, 128>}, {pipeline_mode = #tpu.pipeline_mode<synchronous>, transform_indices = @transform_4, window_bounds = array<i64: 1, 128>}, {pipeline_mode = #tpu.pipeline_mode<synchronous>, transform_indices = @transform_5, window_bounds = array<i64: 64, 512>}, {pipeline_mode = #tpu.pipeline_mode<synchronous>, transform_indices = @transform_6, window_bounds = array<i64: 4, 128, 128>}, {pipeline_mode = #tpu.pipeline_mode<synchronous>, transform_indices = @transform_7, window_bounds = array<i64: 4, 1, 128>}, {pipeline_mode = #tpu.pipeline_mode<synchronous>, transform_indices = @transform_8, window_bounds = array<i64: 4, 128, 128>}, {pipeline_mode = #tpu.pipeline_mode<synchronous>, transform_indices = @transform_9, window_bounds = array<i64: 4, 1, 128>}, {pipeline_mode = #tpu.pipeline_mode<synchronous>, transform_indices = @transform_10, window_bounds = array<i64: 128, 128>}, {pipeline_mode = #tpu.pipeline_mode<synchronous>, transform_indices = @transform_11, window_bounds = array<i64: 1, 128>}, {pipeline_mode = #tpu.pipeline_mode<synchronous>, transform_indices = @transform_12, window_bounds = array<i64: 128, 128>}, {pipeline_mode = #tpu.pipeline_mode<synchronous>, transform_indices = @transform_13, window_bounds = array<i64: 1, 128>}, {pipeline_mode = #tpu.pipeline_mode<synchronous>, transform_indices = @transform_14, window_bounds = array<i64: 64, 128>}, {transform_indices = @transform_15, window_bounds = array<i64: 1>}, {transform_indices = @transform_16, window_bounds = array<i64: 128, 128>}]} {
    %c0 = arith.constant 0 : index
    %c0_0 = arith.constant 0 : index
    %0 = vector.load %arg1[%c0, %c0_0] : memref<128x64xf32, #tpu.memory_space<vmem>>, vector<128x64xf32>
    %1 = arith.truncf %0 : vector<128x64xf32> to vector<128x64xbf16>
    %c0_1 = arith.constant 0 : index
    %c0_2 = arith.constant 0 : index
    %2 = vector.load %arg2[%c0_1, %c0_2] : memref<64x128xbf16, #tpu.memory_space<vmem>>, vector<64x128xbf16>
    %cst = arith.constant dense<0.000000e+00> : vector<128x128xf32>
    %3 = tpu.matmul %1, %2, %cst {dimension_numbers = #tpu.dot_dimension_numbers<[1], [0], [0], [1], [0, 0, 1, 1], [], []>} : vector<128x64xbf16>, vector<64x128xbf16>, vector<128x128xf32> -> vector<128x128xf32>
    %c0_3 = arith.constant 0 : index
    %c0_4 = arith.constant 0 : index
    %4 = vector.load %arg3[%c0_3, %c0_4] : memref<1x128xf32, #tpu.memory_space<vmem>>, vector<1x128xf32>
    %5 = vector.broadcast %4 : vector<1x128xf32> to vector<128x128xf32>
    %6 = arith.addf %3, %5 : vector<128x128xf32>
    %cst_5 = arith.constant 0.000000e+00 : f32
    %7 = vector.broadcast %cst_5 : f32 to vector<128x128xf32>
    %8 = arith.cmpf ogt, %6, %7 : vector<128x128xf32>
    %cst_6 = arith.constant 0.000000e+00 : f32
    %9 = vector.broadcast %cst_6 : f32 to vector<128x128xf32>
    %10 = arith.minimumf %6, %9 : vector<128x128xf32>
    %11 = math.exp %10 : vector<128x128xf32>
    %cst_7 = arith.constant 1.000000e+00 : f32
    %12 = vector.broadcast %cst_7 : f32 to vector<128x128xf32>
    %13 = arith.subf %11, %12 : vector<128x128xf32>
    %14 = arith.select %8, %6, %13 : vector<128x128xi1>, vector<128x128xf32>
    %15 = arith.truncf %14 : vector<128x128xf32> to vector<128x128xbf16>
    %c0_8 = arith.constant 0 : index
    %c0_9 = arith.constant 0 : index
    %16 = vector.load %arg4[%c0_8, %c0_9] : memref<128x128xbf16, #tpu.memory_space<vmem>>, vector<128x128xbf16>
    %cst_10 = arith.constant dense<0.000000e+00> : vector<128x128xf32>
    %17 = tpu.matmul %15, %16, %cst_10 {dimension_numbers = #tpu.dot_dimension_numbers<[1], [0], [0], [1], [0, 0, 1, 1], [], []>} : vector<128x128xbf16>, vector<128x128xbf16>, vector<128x128xf32> -> vector<128x128xf32>
    %c0_11 = arith.constant 0 : index
    %c0_12 = arith.constant 0 : index
    %18 = vector.load %arg5[%c0_11, %c0_12] : memref<1x128xf32, #tpu.memory_space<vmem>>, vector<1x128xf32>
    %19 = vector.broadcast %18 : vector<1x128xf32> to vector<128x128xf32>
    %20 = arith.addf %17, %19 : vector<128x128xf32>
    %c0_13 = arith.constant 0 : index
    %c0_14 = arith.constant 0 : index
    %21 = vector.load %arg6[%c0_13, %c0_14] : memref<64x512xbf16, #tpu.memory_space<vmem>>, vector<64x512xbf16>
    %cst_15 = arith.constant dense<0.000000e+00> : vector<128x512xf32>
    %22 = tpu.matmul %1, %21, %cst_15 {dimension_numbers = #tpu.dot_dimension_numbers<[1], [0], [0], [1], [0, 0, 1, 1], [], []>} : vector<128x64xbf16>, vector<64x512xbf16>, vector<128x512xf32> -> vector<128x512xf32>
    %23 = arith.truncf %20 : vector<128x128xf32> to vector<128x128xbf16>
    %c0_16 = arith.constant 0 : index
    %c0_17 = arith.constant 0 : index
    %c0_18 = arith.constant 0 : index
    %24 = vector.load %arg7[%c0_16, %c0_17, %c0_18] : memref<4x128x128xbf16, #tpu.memory_space<vmem>>, vector<1x128x128xbf16>
    %25 = vector.shape_cast %24 : vector<1x128x128xbf16> to vector<128x128xbf16>
    %cst_19 = arith.constant dense<0.000000e+00> : vector<128x128xf32>
    %26 = tpu.matmul %23, %25, %cst_19 {dimension_numbers = #tpu.dot_dimension_numbers<[1], [0], [0], [1], [0, 0, 1, 1], [], []>} : vector<128x128xbf16>, vector<128x128xbf16>, vector<128x128xf32> -> vector<128x128xf32>
    %27 = vector.extract_strided_slice %22 {offsets = [0, 0], sizes = [128, 128], strides = [1, 1]} : vector<128x512xf32> to vector<128x128xf32>
    %28 = arith.addf %26, %27 : vector<128x128xf32>
    %c0_20 = arith.constant 0 : index
    %c0_21 = arith.constant 0 : index
    %c0_22 = arith.constant 0 : index
    %29 = vector.load %arg8[%c0_20, %c0_21, %c0_22] : memref<4x1x128xf32, #tpu.memory_space<vmem>>, vector<1x1x128xf32>
    %30 = vector.shape_cast %29 : vector<1x1x128xf32> to vector<1x128xf32>
    %31 = vector.broadcast %30 : vector<1x128xf32> to vector<128x128xf32>
    %32 = arith.addf %28, %31 : vector<128x128xf32>
    %33 = math.tanh %32 : vector<128x128xf32>
    %34 = arith.truncf %33 : vector<128x128xf32> to vector<128x128xbf16>
    %c0_23 = arith.constant 0 : index
    %c0_24 = arith.constant 0 : index
    %c0_25 = arith.constant 0 : index
    %35 = vector.load %arg9[%c0_23, %c0_24, %c0_25] : memref<4x128x128xbf16, #tpu.memory_space<vmem>>, vector<1x128x128xbf16>
    %36 = vector.shape_cast %35 : vector<1x128x128xbf16> to vector<128x128xbf16>
    %cst_26 = arith.constant dense<0.000000e+00> : vector<128x128xf32>
    %37 = tpu.matmul %34, %36, %cst_26 {dimension_numbers = #tpu.dot_dimension_numbers<[1], [0], [0], [1], [0, 0, 1, 1], [], []>} : vector<128x128xbf16>, vector<128x128xbf16>, vector<128x128xf32> -> vector<128x128xf32>
    %c0_27 = arith.constant 0 : index
    %c0_28 = arith.constant 0 : index
    %c0_29 = arith.constant 0 : index
    %38 = vector.load %arg10[%c0_27, %c0_28, %c0_29] : memref<4x1x128xf32, #tpu.memory_space<vmem>>, vector<1x1x128xf32>
    %39 = vector.shape_cast %38 : vector<1x1x128xf32> to vector<1x128xf32>
    %40 = vector.broadcast %39 : vector<1x128xf32> to vector<128x128xf32>
    %41 = arith.addf %37, %40 : vector<128x128xf32>
    %42 = arith.addf %20, %41 : vector<128x128xf32>
    %43 = arith.truncf %42 : vector<128x128xf32> to vector<128x128xbf16>
    %c1 = arith.constant 1 : index
    %c0_30 = arith.constant 0 : index
    %c0_31 = arith.constant 0 : index
    %44 = vector.load %arg7[%c1, %c0_30, %c0_31] : memref<4x128x128xbf16, #tpu.memory_space<vmem>>, vector<1x128x128xbf16>
    %45 = vector.shape_cast %44 : vector<1x128x128xbf16> to vector<128x128xbf16>
    %cst_32 = arith.constant dense<0.000000e+00> : vector<128x128xf32>
    %46 = tpu.matmul %43, %45, %cst_32 {dimension_numbers = #tpu.dot_dimension_numbers<[1], [0], [0], [1], [0, 0, 1, 1], [], []>} : vector<128x128xbf16>, vector<128x128xbf16>, vector<128x128xf32> -> vector<128x128xf32>
    %47 = vector.extract_strided_slice %22 {offsets = [0, 128], sizes = [128, 128], strides = [1, 1]} : vector<128x512xf32> to vector<128x128xf32>
    %48 = arith.addf %46, %47 : vector<128x128xf32>
    %c1_33 = arith.constant 1 : index
    %c0_34 = arith.constant 0 : index
    %c0_35 = arith.constant 0 : index
    %49 = vector.load %arg8[%c1_33, %c0_34, %c0_35] : memref<4x1x128xf32, #tpu.memory_space<vmem>>, vector<1x1x128xf32>
    %50 = vector.shape_cast %49 : vector<1x1x128xf32> to vector<1x128xf32>
    %51 = vector.broadcast %50 : vector<1x128xf32> to vector<128x128xf32>
    %52 = arith.addf %48, %51 : vector<128x128xf32>
    %53 = math.tanh %52 : vector<128x128xf32>
    %54 = arith.truncf %53 : vector<128x128xf32> to vector<128x128xbf16>
    %c1_36 = arith.constant 1 : index
    %c0_37 = arith.constant 0 : index
    %c0_38 = arith.constant 0 : index
    %55 = vector.load %arg9[%c1_36, %c0_37, %c0_38] : memref<4x128x128xbf16, #tpu.memory_space<vmem>>, vector<1x128x128xbf16>
    %56 = vector.shape_cast %55 : vector<1x128x128xbf16> to vector<128x128xbf16>
    %cst_39 = arith.constant dense<0.000000e+00> : vector<128x128xf32>
    %57 = tpu.matmul %54, %56, %cst_39 {dimension_numbers = #tpu.dot_dimension_numbers<[1], [0], [0], [1], [0, 0, 1, 1], [], []>} : vector<128x128xbf16>, vector<128x128xbf16>, vector<128x128xf32> -> vector<128x128xf32>
    %c1_40 = arith.constant 1 : index
    %c0_41 = arith.constant 0 : index
    %c0_42 = arith.constant 0 : index
    %58 = vector.load %arg10[%c1_40, %c0_41, %c0_42] : memref<4x1x128xf32, #tpu.memory_space<vmem>>, vector<1x1x128xf32>
    %59 = vector.shape_cast %58 : vector<1x1x128xf32> to vector<1x128xf32>
    %60 = vector.broadcast %59 : vector<1x128xf32> to vector<128x128xf32>
    %61 = arith.addf %57, %60 : vector<128x128xf32>
    %62 = arith.addf %42, %61 : vector<128x128xf32>
    %63 = arith.truncf %62 : vector<128x128xf32> to vector<128x128xbf16>
    %c2 = arith.constant 2 : index
    %c0_43 = arith.constant 0 : index
    %c0_44 = arith.constant 0 : index
    %64 = vector.load %arg7[%c2, %c0_43, %c0_44] : memref<4x128x128xbf16, #tpu.memory_space<vmem>>, vector<1x128x128xbf16>
    %65 = vector.shape_cast %64 : vector<1x128x128xbf16> to vector<128x128xbf16>
    %cst_45 = arith.constant dense<0.000000e+00> : vector<128x128xf32>
    %66 = tpu.matmul %63, %65, %cst_45 {dimension_numbers = #tpu.dot_dimension_numbers<[1], [0], [0], [1], [0, 0, 1, 1], [], []>} : vector<128x128xbf16>, vector<128x128xbf16>, vector<128x128xf32> -> vector<128x128xf32>
    %67 = vector.extract_strided_slice %22 {offsets = [0, 256], sizes = [128, 128], strides = [1, 1]} : vector<128x512xf32> to vector<128x128xf32>
    %68 = arith.addf %66, %67 : vector<128x128xf32>
    %c2_46 = arith.constant 2 : index
    %c0_47 = arith.constant 0 : index
    %c0_48 = arith.constant 0 : index
    %69 = vector.load %arg8[%c2_46, %c0_47, %c0_48] : memref<4x1x128xf32, #tpu.memory_space<vmem>>, vector<1x1x128xf32>
    %70 = vector.shape_cast %69 : vector<1x1x128xf32> to vector<1x128xf32>
    %71 = vector.broadcast %70 : vector<1x128xf32> to vector<128x128xf32>
    %72 = arith.addf %68, %71 : vector<128x128xf32>
    %73 = math.tanh %72 : vector<128x128xf32>
    %74 = arith.truncf %73 : vector<128x128xf32> to vector<128x128xbf16>
    %c2_49 = arith.constant 2 : index
    %c0_50 = arith.constant 0 : index
    %c0_51 = arith.constant 0 : index
    %75 = vector.load %arg9[%c2_49, %c0_50, %c0_51] : memref<4x128x128xbf16, #tpu.memory_space<vmem>>, vector<1x128x128xbf16>
    %76 = vector.shape_cast %75 : vector<1x128x128xbf16> to vector<128x128xbf16>
    %cst_52 = arith.constant dense<0.000000e+00> : vector<128x128xf32>
    %77 = tpu.matmul %74, %76, %cst_52 {dimension_numbers = #tpu.dot_dimension_numbers<[1], [0], [0], [1], [0, 0, 1, 1], [], []>} : vector<128x128xbf16>, vector<128x128xbf16>, vector<128x128xf32> -> vector<128x128xf32>
    %c2_53 = arith.constant 2 : index
    %c0_54 = arith.constant 0 : index
    %c0_55 = arith.constant 0 : index
    %78 = vector.load %arg10[%c2_53, %c0_54, %c0_55] : memref<4x1x128xf32, #tpu.memory_space<vmem>>, vector<1x1x128xf32>
    %79 = vector.shape_cast %78 : vector<1x1x128xf32> to vector<1x128xf32>
    %80 = vector.broadcast %79 : vector<1x128xf32> to vector<128x128xf32>
    %81 = arith.addf %77, %80 : vector<128x128xf32>
    %82 = arith.addf %62, %81 : vector<128x128xf32>
    %83 = arith.truncf %82 : vector<128x128xf32> to vector<128x128xbf16>
    %c3 = arith.constant 3 : index
    %c0_56 = arith.constant 0 : index
    %c0_57 = arith.constant 0 : index
    %84 = vector.load %arg7[%c3, %c0_56, %c0_57] : memref<4x128x128xbf16, #tpu.memory_space<vmem>>, vector<1x128x128xbf16>
    %85 = vector.shape_cast %84 : vector<1x128x128xbf16> to vector<128x128xbf16>
    %cst_58 = arith.constant dense<0.000000e+00> : vector<128x128xf32>
    %86 = tpu.matmul %83, %85, %cst_58 {dimension_numbers = #tpu.dot_dimension_numbers<[1], [0], [0], [1], [0, 0, 1, 1], [], []>} : vector<128x128xbf16>, vector<128x128xbf16>, vector<128x128xf32> -> vector<128x128xf32>
    %87 = vector.extract_strided_slice %22 {offsets = [0, 384], sizes = [128, 128], strides = [1, 1]} : vector<128x512xf32> to vector<128x128xf32>
    %88 = arith.addf %86, %87 : vector<128x128xf32>
    %c3_59 = arith.constant 3 : index
    %c0_60 = arith.constant 0 : index
    %c0_61 = arith.constant 0 : index
    %89 = vector.load %arg8[%c3_59, %c0_60, %c0_61] : memref<4x1x128xf32, #tpu.memory_space<vmem>>, vector<1x1x128xf32>
    %90 = vector.shape_cast %89 : vector<1x1x128xf32> to vector<1x128xf32>
    %91 = vector.broadcast %90 : vector<1x128xf32> to vector<128x128xf32>
    %92 = arith.addf %88, %91 : vector<128x128xf32>
    %93 = math.tanh %92 : vector<128x128xf32>
    %94 = arith.truncf %93 : vector<128x128xf32> to vector<128x128xbf16>
    %c3_62 = arith.constant 3 : index
    %c0_63 = arith.constant 0 : index
    %c0_64 = arith.constant 0 : index
    %95 = vector.load %arg9[%c3_62, %c0_63, %c0_64] : memref<4x128x128xbf16, #tpu.memory_space<vmem>>, vector<1x128x128xbf16>
    %96 = vector.shape_cast %95 : vector<1x128x128xbf16> to vector<128x128xbf16>
    %cst_65 = arith.constant dense<0.000000e+00> : vector<128x128xf32>
    %97 = tpu.matmul %94, %96, %cst_65 {dimension_numbers = #tpu.dot_dimension_numbers<[1], [0], [0], [1], [0, 0, 1, 1], [], []>} : vector<128x128xbf16>, vector<128x128xbf16>, vector<128x128xf32> -> vector<128x128xf32>
    %c3_66 = arith.constant 3 : index
    %c0_67 = arith.constant 0 : index
    %c0_68 = arith.constant 0 : index
    %98 = vector.load %arg10[%c3_66, %c0_67, %c0_68] : memref<4x1x128xf32, #tpu.memory_space<vmem>>, vector<1x1x128xf32>
    %99 = vector.shape_cast %98 : vector<1x1x128xf32> to vector<1x128xf32>
    %100 = vector.broadcast %99 : vector<1x128xf32> to vector<128x128xf32>
    %101 = arith.addf %97, %100 : vector<128x128xf32>
    %102 = arith.addf %82, %101 : vector<128x128xf32>
    %103 = arith.truncf %102 : vector<128x128xf32> to vector<128x128xbf16>
    %c0_69 = arith.constant 0 : index
    %c0_70 = arith.constant 0 : index
    %104 = vector.load %arg11[%c0_69, %c0_70] : memref<128x128xbf16, #tpu.memory_space<vmem>>, vector<128x128xbf16>
    %cst_71 = arith.constant dense<0.000000e+00> : vector<128x128xf32>
    %105 = tpu.matmul %103, %104, %cst_71 {dimension_numbers = #tpu.dot_dimension_numbers<[1], [0], [0], [1], [0, 0, 1, 1], [], []>} : vector<128x128xbf16>, vector<128x128xbf16>, vector<128x128xf32> -> vector<128x128xf32>
    %c0_72 = arith.constant 0 : index
    %c0_73 = arith.constant 0 : index
    %106 = vector.load %arg12[%c0_72, %c0_73] : memref<1x128xf32, #tpu.memory_space<vmem>>, vector<1x128xf32>
    %107 = vector.broadcast %106 : vector<1x128xf32> to vector<128x128xf32>
    %108 = arith.addf %105, %107 : vector<128x128xf32>
    %cst_74 = arith.constant 0.000000e+00 : f32
    %109 = vector.broadcast %cst_74 : f32 to vector<128x128xf32>
    %110 = arith.cmpf ogt, %108, %109 : vector<128x128xf32>
    %cst_75 = arith.constant 0.000000e+00 : f32
    %111 = vector.broadcast %cst_75 : f32 to vector<128x128xf32>
    %112 = arith.minimumf %108, %111 : vector<128x128xf32>
    %113 = math.exp %112 : vector<128x128xf32>
    %cst_76 = arith.constant 1.000000e+00 : f32
    %114 = vector.broadcast %cst_76 : f32 to vector<128x128xf32>
    %115 = arith.subf %113, %114 : vector<128x128xf32>
    %116 = arith.select %110, %108, %115 : vector<128x128xi1>, vector<128x128xf32>
    %117 = arith.truncf %116 : vector<128x128xf32> to vector<128x128xbf16>
    %c0_77 = arith.constant 0 : index
    %c0_78 = arith.constant 0 : index
    %118 = vector.load %arg13[%c0_77, %c0_78] : memref<128x128xbf16, #tpu.memory_space<vmem>>, vector<128x128xbf16>
    %cst_79 = arith.constant dense<0.000000e+00> : vector<128x128xf32>
    %119 = tpu.matmul %117, %118, %cst_79 {dimension_numbers = #tpu.dot_dimension_numbers<[1], [0], [0], [1], [0, 0, 1, 1], [], []>} : vector<128x128xbf16>, vector<128x128xbf16>, vector<128x128xf32> -> vector<128x128xf32>
    %c0_80 = arith.constant 0 : index
    %c0_81 = arith.constant 0 : index
    %120 = vector.load %arg14[%c0_80, %c0_81] : memref<1x128xf32, #tpu.memory_space<vmem>>, vector<1x128xf32>
    %121 = vector.broadcast %120 : vector<1x128xf32> to vector<128x128xf32>
    %122 = arith.addf %119, %121 : vector<128x128xf32>
    %c0_82 = arith.constant 0 : index
    %123 = memref.load %arg16[%c0_82] : memref<1xf32, #tpu.memory_space<smem>>
    %cst_83 = arith.constant 0.000000e+00 : f32
    %124 = arith.maximumf %123, %cst_83 : f32
    %125 = math.absf %123 : f32
    %cst_84 = arith.constant 0.000000e+00 : f32
    %126 = arith.subf %cst_84, %125 : f32
    %127 = math.exp %126 : f32
    %128 = math.log1p %127 : f32
    %129 = arith.addf %124, %128 : f32
    %cst_85 = arith.constant 2.000000e+00 : f32
    %130 = arith.mulf %cst_85, %129 : f32
    %131 = vector.broadcast %130 : f32 to vector<128x64xf32>
    %132 = arith.mulf %131, %0 : vector<128x64xf32>
    %c0_86 = arith.constant 0 : index
    %c0_87 = arith.constant 0 : index
    %133 = vector.load %arg15[%c0_86, %c0_87] : memref<64x128xf32, #tpu.memory_space<vmem>>, vector<64x128xf32>
    %cst_88 = arith.constant dense<0.000000e+00> : vector<128x128xf32>
    %134 = tpu.matmul %132, %133, %cst_88 {dimension_numbers = #tpu.dot_dimension_numbers<[1], [0], [0], [1], [0, 0, 1, 1], [], []>} : vector<128x64xf32>, vector<64x128xf32>, vector<128x128xf32> -> vector<128x128xf32>
    %135 = arith.subf %122, %134 : vector<128x128xf32>
    %c0_89 = arith.constant 0 : index
    %c0_90 = arith.constant 0 : index
    %136 = vector.load %arg17[%c0_89, %c0_90] : memref<128x128xf32, #tpu.memory_space<vmem>>, vector<128x128xf32>
    tpu.vector_store %arg17[%c0_89, %c0_90], %135 {strides = array<i32>} : memref<128x128xf32, #tpu.memory_space<vmem>>, vector<128x128xf32>,
    return
  }
  func.func @transform_0(%arg0: i32) -> (i32, i32) {
    %c0_i32 = arith.constant 0 : i32
    %c0_i32_0 = arith.constant 0 : i32
    return %arg0, %c0_i32 : i32, i32
  }
  func.func @transform_1(%arg0: i32) -> (i32, i32) {
    %c0_i32 = arith.constant 0 : i32
    %c0_i32_0 = arith.constant 0 : i32
    %c0_i32_1 = arith.constant 0 : i32
    return %c0_i32, %c0_i32_0 : i32, i32
  }
  func.func @transform_2(%arg0: i32) -> (i32, i32) {
    %c0_i32 = arith.constant 0 : i32
    %c0_i32_0 = arith.constant 0 : i32
    %c0_i32_1 = arith.constant 0 : i32
    return %c0_i32, %c0_i32_0 : i32, i32
  }
  func.func @transform_3(%arg0: i32) -> (i32, i32) {
    %c0_i32 = arith.constant 0 : i32
    %c0_i32_0 = arith.constant 0 : i32
    %c0_i32_1 = arith.constant 0 : i32
    return %c0_i32, %c0_i32_0 : i32, i32
  }
  func.func @transform_4(%arg0: i32) -> (i32, i32) {
    %c0_i32 = arith.constant 0 : i32
    %c0_i32_0 = arith.constant 0 : i32
    %c0_i32_1 = arith.constant 0 : i32
    return %c0_i32, %c0_i32_0 : i32, i32
  }
  func.func @transform_5(%arg0: i32) -> (i32, i32) {
    %c0_i32 = arith.constant 0 : i32
    %c0_i32_0 = arith.constant 0 : i32
    %c0_i32_1 = arith.constant 0 : i32
    return %c0_i32, %c0_i32_0 : i32, i32
  }
  func.func @transform_6(%arg0: i32) -> (i32, i32, i32) {
    %c0_i32 = arith.constant 0 : i32
    %c0_i32_0 = arith.constant 0 : i32
    %c0_i32_1 = arith.constant 0 : i32
    %c0_i32_2 = arith.constant 0 : i32
    return %c0_i32, %c0_i32_0, %c0_i32_1 : i32, i32, i32
  }
  func.func @transform_7(%arg0: i32) -> (i32, i32, i32) {
    %c0_i32 = arith.constant 0 : i32
    %c0_i32_0 = arith.constant 0 : i32
    %c0_i32_1 = arith.constant 0 : i32
    %c0_i32_2 = arith.constant 0 : i32
    return %c0_i32, %c0_i32_0, %c0_i32_1 : i32, i32, i32
  }
  func.func @transform_8(%arg0: i32) -> (i32, i32, i32) {
    %c0_i32 = arith.constant 0 : i32
    %c0_i32_0 = arith.constant 0 : i32
    %c0_i32_1 = arith.constant 0 : i32
    %c0_i32_2 = arith.constant 0 : i32
    return %c0_i32, %c0_i32_0, %c0_i32_1 : i32, i32, i32
  }
  func.func @transform_9(%arg0: i32) -> (i32, i32, i32) {
    %c0_i32 = arith.constant 0 : i32
    %c0_i32_0 = arith.constant 0 : i32
    %c0_i32_1 = arith.constant 0 : i32
    %c0_i32_2 = arith.constant 0 : i32
    return %c0_i32, %c0_i32_0, %c0_i32_1 : i32, i32, i32
  }
  func.func @transform_10(%arg0: i32) -> (i32, i32) {
    %c0_i32 = arith.constant 0 : i32
    %c0_i32_0 = arith.constant 0 : i32
    %c0_i32_1 = arith.constant 0 : i32
    return %c0_i32, %c0_i32_0 : i32, i32
  }
  func.func @transform_11(%arg0: i32) -> (i32, i32) {
    %c0_i32 = arith.constant 0 : i32
    %c0_i32_0 = arith.constant 0 : i32
    %c0_i32_1 = arith.constant 0 : i32
    return %c0_i32, %c0_i32_0 : i32, i32
  }
  func.func @transform_12(%arg0: i32) -> (i32, i32) {
    %c0_i32 = arith.constant 0 : i32
    %c0_i32_0 = arith.constant 0 : i32
    %c0_i32_1 = arith.constant 0 : i32
    return %c0_i32, %c0_i32_0 : i32, i32
  }
  func.func @transform_13(%arg0: i32) -> (i32, i32) {
    %c0_i32 = arith.constant 0 : i32
    %c0_i32_0 = arith.constant 0 : i32
    %c0_i32_1 = arith.constant 0 : i32
    return %c0_i32, %c0_i32_0 : i32, i32
  }
  func.func @transform_14(%arg0: i32) -> (i32, i32) {
    %c0_i32 = arith.constant 0 : i32
    %c0_i32_0 = arith.constant 0 : i32
    %c0_i32_1 = arith.constant 0 : i32
    return %c0_i32, %c0_i32_0 : i32, i32
  }
  func.func @transform_15(%arg0: i32) -> i32 {
    %c0_i32 = arith.constant 0 : i32
    %c0_i32_0 = arith.constant 0 : i32
    return %c0_i32 : i32
  }
  func.func @transform_16(%arg0: i32) -> (i32, i32) {
    %c0_i32 = arith.constant 0 : i32
    %c0_i32_0 = arith.constant 0 : i32
    return %arg0, %c0_i32 : i32, i32
  }
}

</mosaic_0001>

<llo_original>
// kernel: tpu_custom_call.1
$region0: #{tpu_custom_call.1}
  #allocation0 [shape = 'u32[]', space=smem, size = 0x4, offset = 0x4, fixed_abs, tag = 'smem constant byte address 0x4 - core index']
  #allocation1 [shape = 'u32[144,128]{1,0:T(1,128)}', space=vmem, size = 0x12000, scoped, tag = 'internal scratch']
  #allocation2 [shape = 'f32[1]{0:T(128)S(6)}', space=smem, size = 0x200, scoped, tag = 'scoped memory for tpu_custom_call.1']
  %s0 = inlined_call_operand.vmem [shape: f32[256,64], index: 0, kind: input, shape index: {}]
  %s1 = inlined_call_operand.hbm [shape: bf16[64,128], index: 1, kind: input, shape index: {}]
  %s2 = inlined_call_operand.vmem [shape: f32[1,128], index: 2, kind: input, shape index: {}]
  %s3 = inlined_call_operand.hbm [shape: bf16[128,128], index: 3, kind: input, shape index: {}]
  %s4 = inlined_call_operand.vmem [shape: f32[1,128], index: 4, kind: input, shape index: {}]
  %s5 = inlined_call_operand.vmem [shape: bf16[64,512], index: 5, kind: input, shape index: {}]
  %s6 = inlined_call_operand.vmem [shape: bf16[4,128,128], index: 6, kind: input, shape index: {}]
  %s7 = inlined_call_operand.vmem [shape: f32[4,1,128], index: 7, kind: input, shape index: {}]
  %s8 = inlined_call_operand.hbm [shape: bf16[4,128,128], index: 8, kind: input, shape index: {}]
  %s9 = inlined_call_operand.vmem [shape: f32[4,1,128], index: 9, kind: input, shape index: {}]
  %s10 = inlined_call_operand.hbm [shape: bf16[128,128], index: 10, kind: input, shape index: {}]
  %s11 = inlined_call_operand.vmem [shape: f32[1,128], index: 11, kind: input, shape index: {}]
  %s12 = inlined_call_operand.hbm [shape: bf16[128,128], index: 12, kind: input, shape index: {}]
  %s13 = inlined_call_operand.vmem [shape: f32[1,128], index: 13, kind: input, shape index: {}]
  %s14 = inlined_call_operand.hbm [shape: f32[64,128], index: 14, kind: input, shape index: {}]
  %s15 = inlined_call_operand.<no memory space> [shape: f32[1], index: 15, kind: input, shape index: {}]
  %s16 = inlined_call_operand.hbm [shape: f32[256,128], index: 16, kind: output, shape index: {}]
  %s17 = sld [smem:[#allocation0]]
  $region121: #{tpu_custom_call.1} parent=0
    _
  %s19 = ssub.s32 1, %s17
  %s20 = scalar_select 0, %s19, %s17
  %21 = sst [smem:[#allocation2]] %s15
  $region1: #{tpu_custom_call.1} parent=0
    #allocation3 [shape = 'u8[16384]{0}', space=vmem, size = 0x4000, scoped, tag = 'input window, operand 1, single buffered']
    #allocation4 [shape = 's32[2]{0}', space=sflag, size = 0x8, scoped, tag = 'scoped memory for tpu_custom_call.1']
    #allocation5 [shape = 's32[2]{0}', space=sflag, size = 0x8, scoped, tag = 'scoped memory for tpu_custom_call.1']
    #allocation6 [shape = 'u8[32768]{0}', space=vmem, size = 0x8000, scoped, tag = 'input window, operand 3, single buffered']
    #allocation7 [shape = 's32[1]{0}', space=sflag, size = 0x4, scoped, tag = 'scoped memory for tpu_custom_call.1']
    #allocation8 [shape = 'u8[131072]{0}', space=vmem, size = 0x20000, scoped, tag = 'input window, operand 8, single buffered']
    #allocation9 [shape = 'u8[32768]{0}', space=vmem, size = 0x8000, scoped, tag = 'input window, operand 10, single buffered']
    #allocation10 [shape = 's32[1]{0}', space=sflag, size = 0x4, scoped, tag = 'scoped memory for tpu_custom_call.1']
    #allocation11 [shape = 'u8[32768]{0}', space=vmem, size = 0x8000, scoped, tag = 'input window, operand 12, single buffered']
    #allocation12 [shape = 'u8[32768]{0}', space=vmem, size = 0x8000, scoped, tag = 'input window, operand 14, single buffered']
    #allocation13 [shape = 's32[1]{0}', space=sflag, size = 0x4, scoped, tag = 'scoped memory for tpu_custom_call.1']
    #allocation14 [shape = 'u8[131072]{0}', space=vmem, size = 0x20000, scoped, tag = 'output window, operand 0']
    %22 = vsyncpa [#allocation4], 0
    %23 = vsyncpa [#allocation7], 0
    %24 = vsyncpa [#allocation10], 0
    %25 = vsyncpa [#allocation13], 0
    %26 = vsyncpa [#allocation5], 0
    %s27 = scalar_lea.sflag [#allocation5], 1
    %28 = vsyncpa %s27, 0
    loop: start=0, step=1, limit=4
    $region2: #{tpu_custom_call.1} parent=1 // loop_pre_header
      _
    $region3: #{tpu_custom_call.1} parent=1 // loop_header
      %s30 = sphi 0, %s34
      %p31 = scmp.ge.s32.totalorder %s30, 4
      %s40 = sphi 0, %s42
      %s43 = sphi 0, %s40
      %s44 = sphi 0, %s43
      %s60 = sphi 0, %s44
      %s64 = sphi 0, %s64
      %s66 = sphi 0, %s64
      %s67 = sphi 0, %s66
      %s81 = sphi 0, %s67
      %s85 = sphi 0, %s85
      %s87 = sphi 0, %s85
      %s88 = sphi 0, %s87
      %s102 = sphi 0, %s88
      %s106 = sphi 0, %s106
      %s108 = sphi 0, %s106
      %s109 = sphi 0, %s108
      %s123 = sphi 0, %s109
      %s127 = sphi 0, %s127
      %s129 = sphi 0, %s127
      %s130 = sphi 0, %s129
      %s144 = sphi 0, %s130
      %s148 = sphi 0, %s148
      %s150 = sphi 0, %s148
      %s151 = sphi 0, %s150
      %s165 = sphi 0, %s151
      %s169 = sphi 0, %s169
      %s171 = sphi 0, %s169
      %s172 = sphi 0, %s171
      %s186 = sphi 0, %s172
      %s190 = sphi 0, %s190
      %s192 = sphi 0, %s190
      %s193 = sphi 0, %s192
      %s207 = sphi 0, %s193
      %s211 = sphi 0, %s211
      %s213 = sphi 0, %s211
      %s214 = sphi 0, %s213
      %s228 = sphi 0, %s214
      %s232 = sphi 0, %s232
      %s234 = sphi 0, %s232
      %s235 = sphi 0, %s234
      %s249 = sphi 0, %s235
      %s253 = sphi 0, %s253
      %s255 = sphi 0, %s253
      %s256 = sphi 0, %s255
      %s270 = sphi 0, %s256
      %s274 = sphi 0, %s274
      %s276 = sphi 0, %s274
      %s277 = sphi 0, %s276
      %s291 = sphi 0, %s277
      %s295 = sphi 0, %s295
      %s297 = sphi 0, %s295
      %s298 = sphi 0, %s297
      %s312 = sphi 0, %s298
      %s316 = sphi 0, %s316
      %s318 = sphi 0, %s316
      %s319 = sphi 0, %s318
      %s333 = sphi 0, %s319
      %s337 = sphi 0, %s337
      %s339 = sphi 0, %s337
      %s340 = sphi 0, %s339
      %s354 = sphi 0, %s340
      %s358 = sphi 0, %s358
      %s360 = sphi 0, %s358
      %s361 = sphi 0, %s360
      %s375 = sphi 0, %s361
      %s381 = sphi 0, %s383
      %s384 = sphi 0, %s381
      %s385 = sphi 0, %s384
      %s401 = sphi 0, %s385
    $region4: #{tpu_custom_call.1} parent=1 // loop_header_branch
      %33 = sbr.rel (%p31) target = $region8
    $region5: #{tpu_custom_call.1} parent=1 // loop_body
      %s35 = ssub.s32 %s30, 1
      %s36 = ssub.s32 %s30, 2
      %s37 = sadd.s32 %s30, 1
      %s38 = ssub.s32 %s30, %s37
      %p39 = scmp.eq.s32.totalorder %s38, 0
      %s41 = sadd.s32 %s40, 1
      %s42 = scalar_select %p39, %s40, %s41
      %p45 = pneg %p39
      %p46 = scmp.eq.s32.totalorder %s30, 1
      %p47 = por %p45, %p46
      %p48 = scmp.ne.s32.totalorder %s40, %s43
      %p49 = scmp.eq.s32.totalorder %s30, 0
      %p50 = por %p48, %p49
      %p51 = scmp.ne.s32.totalorder %s40, %s43
      %p52 = scmp.eq.s32.totalorder %s35, 1
      %p53 = por %p51, %p52
      %p54 = scmp.ne.s32.totalorder %s43, %s44
      %p55 = scmp.eq.s32.totalorder %s35, 0
      %p56 = por %p54, %p55
      %p57 = scmp.ne.s32.totalorder %s43, %s44
      %p58 = scmp.eq.s32.totalorder %s36, 1
      %p59 = por %p57, %p58
      %p61 = scmp.ne.s32.totalorder %s44, %s60
      %p62 = scmp.eq.s32.totalorder %s36, 0
      %p63 = por %p61, %p62
      %s65 = sadd.s32 %s64, 1
      %p68 = scmp.eq.s32.totalorder %s30, 1
      %p69 = scmp.ne.s32.totalorder %s64, %s66
      %p70 = scmp.eq.s32.totalorder %s30, 0
      %p71 = por %p69, %p70
      %p72 = scmp.ne.s32.totalorder %s64, %s66
      %p73 = scmp.eq.s32.totalorder %s35, 1
      %p74 = por %p72, %p73
      %p75 = scmp.ne.s32.totalorder %s66, %s67
      %p76 = scmp.eq.s32.totalorder %s35, 0
      %p77 = por %p75, %p76
      %p78 = scmp.ne.s32.totalorder %s66, %s67
      %p79 = scmp.eq.s32.totalorder %s36, 1
      %p80 = por %p78, %p79
      %p82 = scmp.ne.s32.totalorder %s67, %s81
      %p83 = scmp.eq.s32.totalorder %s36, 0
      %p84 = por %p82, %p83
      %s86 = sadd.s32 %s85, 1
      %p89 = scmp.eq.s32.totalorder %s30, 1
      %p90 = scmp.ne.s32.totalorder %s85, %s87
      %p91 = scmp.eq.s32.totalorder %s30, 0
      %p92 = por %p90, %p91
      %p93 = scmp.ne.s32.totalorder %s85, %s87
      %p94 = scmp.eq.s32.totalorder %s35, 1
      %p95 = por %p93, %p94
      %p96 = scmp.ne.s32.totalorder %s87, %s88
      %p97 = scmp.eq.s32.totalorder %s35, 0
      %p98 = por %p96, %p97
      %p99 = scmp.ne.s32.totalorder %s87, %s88
      %p100 = scmp.eq.s32.totalorder %s36, 1
      %p101 = por %p99, %p100
      %p103 = scmp.ne.s32.totalorder %s88, %s102
      %p104 = scmp.eq.s32.totalorder %s36, 0
      %p105 = por %p103, %p104
      %s107 = sadd.s32 %s106, 1
      %p110 = scmp.eq.s32.totalorder %s30, 1
      %p111 = scmp.ne.s32.totalorder %s106, %s108
      %p112 = scmp.eq.s32.totalorder %s30, 0
      %p113 = por %p111, %p112
      %p114 = scmp.ne.s32.totalorder %s106, %s108
      %p115 = scmp.eq.s32.totalorder %s35, 1
      %p116 = por %p114, %p115
      %p117 = scmp.ne.s32.totalorder %s108, %s109
      %p118 = scmp.eq.s32.totalorder %s35, 0
      %p119 = por %p117, %p118
      %p120 = scmp.ne.s32.totalorder %s108, %s109
      %p121 = scmp.eq.s32.totalorder %s36, 1
      %p122 = por %p120, %p121
      %p124 = scmp.ne.s32.totalorder %s109, %s123
      %p125 = scmp.eq.s32.totalorder %s36, 0
      %p126 = por %p124, %p125
      %s128 = sadd.s32 %s127, 1
      %p131 = scmp.eq.s32.totalorder %s30, 1
      %p132 = scmp.ne.s32.totalorder %s127, %s129
      %p133 = scmp.eq.s32.totalorder %s30, 0
      %p134 = por %p132, %p133
      %p135 = scmp.ne.s32.totalorder %s127, %s129
      %p136 = scmp.eq.s32.totalorder %s35, 1
      %p137 = por %p135, %p136
      %p138 = scmp.ne.s32.totalorder %s129, %s130
      %p139 = scmp.eq.s32.totalorder %s35, 0
      %p140 = por %p138, %p139
      %p141 = scmp.ne.s32.totalorder %s129, %s130
      %p142 = scmp.eq.s32.totalorder %s36, 1
      %p143 = por %p141, %p142
      %p145 = scmp.ne.s32.totalorder %s130, %s144
      %p146 = scmp.eq.s32.totalorder %s36, 0
      %p147 = por %p145, %p146
      %s149 = sadd.s32 %s148, 1
      %p152 = scmp.eq.s32.totalorder %s30, 1
      %p153 = scmp.ne.s32.totalorder %s148, %s150
      %p154 = scmp.eq.s32.totalorder %s30, 0
      %p155 = por %p153, %p154
      %p156 = scmp.ne.s32.totalorder %s148, %s150
      %p157 = scmp.eq.s32.totalorder %s35, 1
      %p158 = por %p156, %p157
      %p159 = scmp.ne.s32.totalorder %s150, %s151
      %p160 = scmp.eq.s32.totalorder %s35, 0
      %p161 = por %p159, %p160
      %p162 = scmp.ne.s32.totalorder %s150, %s151
      %p163 = scmp.eq.s32.totalorder %s36, 1
      %p164 = por %p162, %p163
      %p166 = scmp.ne.s32.totalorder %s151, %s165
      %p167 = scmp.eq.s32.totalorder %s36, 0
      %p168 = por %p166, %p167
      %s170 = sadd.s32 %s169, 1
      %p173 = scmp.eq.s32.totalorder %s30, 1
      %p174 = scmp.ne.s32.totalorder %s169, %s171
      %p175 = scmp.eq.s32.totalorder %s30, 0
      %p176 = por %p174, %p175
      %p177 = scmp.ne.s32.totalorder %s169, %s171
      %p178 = scmp.eq.s32.totalorder %s35, 1
      %p179 = por %p177, %p178
      %p180 = scmp.ne.s32.totalorder %s171, %s172
      %p181 = scmp.eq.s32.totalorder %s35, 0
      %p182 = por %p180, %p181
      %p183 = scmp.ne.s32.totalorder %s171, %s172
      %p184 = scmp.eq.s32.totalorder %s36, 1
      %p185 = por %p183, %p184
      %p187 = scmp.ne.s32.totalorder %s172, %s186
      %p188 = scmp.eq.s32.totalorder %s36, 0
      %p189 = por %p187, %p188
      %s191 = sadd.s32 %s190, 1
      %p194 = scmp.eq.s32.totalorder %s30, 1
      %p195 = scmp.ne.s32.totalorder %s190, %s192
      %p196 = scmp.eq.s32.totalorder %s30, 0
      %p197 = por %p195, %p196
      %p198 = scmp.ne.s32.totalorder %s190, %s192
      %p199 = scmp.eq.s32.totalorder %s35, 1
      %p200 = por %p198, %p199
      %p201 = scmp.ne.s32.totalorder %s192, %s193
      %p202 = scmp.eq.s32.totalorder %s35, 0
      %p203 = por %p201, %p202
      %p204 = scmp.ne.s32.totalorder %s192, %s193
      %p205 = scmp.eq.s32.totalorder %s36, 1
      %p206 = por %p204, %p205
      %p208 = scmp.ne.s32.totalorder %s193, %s207
      %p209 = scmp.eq.s32.totalorder %s36, 0
      %p210 = por %p208, %p209
      %s212 = sadd.s32 %s211, 1
      %p215 = scmp.eq.s32.totalorder %s30, 1
      %p216 = scmp.ne.s32.totalorder %s211, %s213
      %p217 = scmp.eq.s32.totalorder %s30, 0
      %p218 = por %p216, %p217
      %p219 = scmp.ne.s32.totalorder %s211, %s213
      %p220 = scmp.eq.s32.totalorder %s35, 1
      %p221 = por %p219, %p220
      %p222 = scmp.ne.s32.totalorder %s213, %s214
      %p223 = scmp.eq.s32.totalorder %s35, 0
      %p224 = por %p222, %p223
      %p225 = scmp.ne.s32.totalorder %s213, %s214
      %p226 = scmp.eq.s32.totalorder %s36, 1
      %p227 = por %p225, %p226
      %p229 = scmp.ne.s32.totalorder %s214, %s228
      %p230 = scmp.eq.s32.totalorder %s36, 0
      %p231 = por %p229, %p230
      %s233 = sadd.s32 %s232, 1
      %p236 = scmp.eq.s32.totalorder %s30, 1
      %p237 = scmp.ne.s32.totalorder %s232, %s234
      %p238 = scmp.eq.s32.totalorder %s30, 0
      %p239 = por %p237, %p238
      %p240 = scmp.ne.s32.totalorder %s232, %s234
      %p241 = scmp.eq.s32.totalorder %s35, 1
      %p242 = por %p240, %p241
      %p243 = scmp.ne.s32.totalorder %s234, %s235
      %p244 = scmp.eq.s32.totalorder %s35, 0
      %p245 = por %p243, %p244
      %p246 = scmp.ne.s32.totalorder %s234, %s235
      %p247 = scmp.eq.s32.totalorder %s36, 1
      %p248 = por %p246, %p247
      %p250 = scmp.ne.s32.totalorder %s235, %s249
      %p251 = scmp.eq.s32.totalorder %s36, 0
      %p252 = por %p250, %p251
      %s254 = sadd.s32 %s253, 1
      %p257 = scmp.eq.s32.totalorder %s30, 1
      %p258 = scmp.ne.s32.totalorder %s253, %s255
      %p259 = scmp.eq.s32.totalorder %s30, 0
      %p260 = por %p258, %p259
      %p261 = scmp.ne.s32.totalorder %s253, %s255
      %p262 = scmp.eq.s32.totalorder %s35, 1
      %p263 = por %p261, %p262
      %p264 = scmp.ne.s32.totalorder %s255, %s256
      %p265 = scmp.eq.s32.totalorder %s35, 0
      %p266 = por %p264, %p265
      %p267 = scmp.ne.s32.totalorder %s255, %s256
      %p268 = scmp.eq.s32.totalorder %s36, 1
      %p269 = por %p267, %p268
      %p271 = scmp.ne.s32.totalorder %s256, %s270
      %p272 = scmp.eq.s32.totalorder %s36, 0
      %p273 = por %p271, %p272
      %s275 = sadd.s32 %s274, 1
      %p278 = scmp.eq.s32.totalorder %s30, 1
      %p279 = scmp.ne.s32.totalorder %s274, %s276
      %p280 = scmp.eq.s32.totalorder %s30, 0
      %p281 = por %p279, %p280
      %p282 = scmp.ne.s32.totalorder %s274, %s276
      %p283 = scmp.eq.s32.totalorder %s35, 1
      %p284 = por %p282, %p283
      %p285 = scmp.ne.s32.totalorder %s276, %s277
      %p286 = scmp.eq.s32.totalorder %s35, 0
      %p287 = por %p285, %p286
      %p288 = scmp.ne.s32.totalorder %s276, %s277
      %p289 = scmp.eq.s32.totalorder %s36, 1
      %p290 = por %p288, %p289
      %p292 = scmp.ne.s32.totalorder %s277, %s291
      %p293 = scmp.eq.s32.totalorder %s36, 0
      %p294 = por %p292, %p293
      %s296 = sadd.s32 %s295, 1
      %p299 = scmp.eq.s32.totalorder %s30, 1
      %p300 = scmp.ne.s32.totalorder %s295, %s297
      %p301 = scmp.eq.s32.totalorder %s30, 0
      %p302 = por %p300, %p301
      %p303 = scmp.ne.s32.totalorder %s295, %s297
      %p304 = scmp.eq.s32.totalorder %s35, 1
      %p305 = por %p303, %p304
      %p306 = scmp.ne.s32.totalorder %s297, %s298
      %p307 = scmp.eq.s32.totalorder %s35, 0
      %p308 = por %p306, %p307
      %p309 = scmp.ne.s32.totalorder %s297, %s298
      %p310 = scmp.eq.s32.totalorder %s36, 1
      %p311 = por %p309, %p310
      %p313 = scmp.ne.s32.totalorder %s298, %s312
      %p314 = scmp.eq.s32.totalorder %s36, 0
      %p315 = por %p313, %p314
      %s317 = sadd.s32 %s316, 1
      %p320 = scmp.eq.s32.totalorder %s30, 1
      %p321 = scmp.ne.s32.totalorder %s316, %s318
      %p322 = scmp.eq.s32.totalorder %s30, 0
      %p323 = por %p321, %p322
      %p324 = scmp.ne.s32.totalorder %s316, %s318
      %p325 = scmp.eq.s32.totalorder %s35, 1
      %p326 = por %p324, %p325
      %p327 = scmp.ne.s32.totalorder %s318, %s319
      %p328 = scmp.eq.s32.totalorder %s35, 0
      %p329 = por %p327, %p328
      %p330 = scmp.ne.s32.totalorder %s318, %s319
      %p331 = scmp.eq.s32.totalorder %s36, 1
      %p332 = por %p330, %p331
      %p334 = scmp.ne.s32.totalorder %s319, %s333
      %p335 = scmp.eq.s32.totalorder %s36, 0
      %p336 = por %p334, %p335
      %s338 = sadd.s32 %s337, 1
      %p341 = scmp.eq.s32.totalorder %s30, 1
      %p342 = scmp.ne.s32.totalorder %s337, %s339
      %p343 = scmp.eq.s32.totalorder %s30, 0
      %p344 = por %p342, %p343
      %p345 = scmp.ne.s32.totalorder %s337, %s339
      %p346 = scmp.eq.s32.totalorder %s35, 1
      %p347 = por %p345, %p346
      %p348 = scmp.ne.s32.totalorder %s339, %s340
      %p349 = scmp.eq.s32.totalorder %s35, 0
      %p350 = por %p348, %p349
      %p351 = scmp.ne.s32.totalorder %s339, %s340
      %p352 = scmp.eq.s32.totalorder %s36, 1
      %p353 = por %p351, %p352
      %p355 = scmp.ne.s32.totalorder %s340, %s354
      %p356 = scmp.eq.s32.totalorder %s36, 0
      %p357 = por %p355, %p356
      %s359 = sadd.s32 %s358, 1
      %p362 = scmp.eq.s32.totalorder %s30, 1
      %p363 = scmp.ne.s32.totalorder %s358, %s360
      %p364 = scmp.eq.s32.totalorder %s30, 0
      %p365 = por %p363, %p364
      %p366 = scmp.ne.s32.totalorder %s358, %s360
      %p367 = scmp.eq.s32.totalorder %s35, 1
      %p368 = por %p366, %p367
      %p369 = scmp.ne.s32.totalorder %s360, %s361
      %p370 = scmp.eq.s32.totalorder %s35, 0
      %p371 = por %p369, %p370
      %p372 = scmp.ne.s32.totalorder %s360, %s361
      %p373 = scmp.eq.s32.totalorder %s36, 1
      %p374 = por %p372, %p373
      %p376 = scmp.ne.s32.totalorder %s361, %s375
      %p377 = scmp.eq.s32.totalorder %s36, 0
      %p378 = por %p376, %p377
      %s379 = ssub.s32 %s30, %s37
      %p380 = scmp.eq.s32.totalorder %s379, 0
      %s382 = sadd.s32 %s381, 1
      %s383 = scalar_select %p380, %s381, %s382
      %p386 = pneg %p380
      %p387 = scmp.eq.s32.totalorder %s30, 1
      %p388 = por %p386, %p387
      %p389 = scmp.ne.s32.totalorder %s381, %s384
      %p390 = scmp.eq.s32.totalorder %s30, 0
      %p391 = por %p389, %p390
      %p392 = scmp.ne.s32.totalorder %s381, %s384
      %p393 = scmp.eq.s32.totalorder %s35, 1
      %p394 = por %p392, %p393
      %p395 = scmp.ne.s32.totalorder %s384, %s385
      %p396 = scmp.eq.s32.totalorder %s35, 0
      %p397 = por %p395, %p396
      %p398 = scmp.ne.s32.totalorder %s384, %s385
      %p399 = scmp.eq.s32.totalorder %s36, 1
      %p400 = por %p398, %p399
      %p402 = scmp.ne.s32.totalorder %s385, %s401
      %p403 = scmp.eq.s32.totalorder %s36, 0
      %p404 = por %p402, %p403
      %p405 = scmp.le.s32.totalorder 1, %s30
      %p406 = scmp.lt.s32.totalorder %s30, 3
      %p407 = pnand %p405, %p406
      %p408 = pneg %p407
      // Predicated region
      $region9: #{tpu_custom_call.1} parent=5 // pred_check
        _
      $region10: #{tpu_custom_call.1} parent=5 // pred_check_branch
        %410 = sbr.rel (%p407) target = $region12
      $region11: #{tpu_custom_call.1} parent=5 // pred_region
        %s411 = ssub.s32 %s30, 1
        // Predicated region
        $region13: #{tpu_custom_call.1} parent=11 // pred_check
          %p412 = pneg %p77
        $region14: #{tpu_custom_call.1} parent=11 // pred_check_branch
          %414 = sbr.rel (%p412) target = $region16
        $region15: #{tpu_custom_call.1} parent=11 // pred_region
          %s416 = ssub.s32 512, 512
          %417 = vsyncadd [#allocation4], %s416
          %s418 = sshll.u32 [#allocation3], 4
          %s419 = int_to_ptr.vmem [resolvable:$true] %s418
          %424 = dma.hbm_to_vmem [thread:$0]  %s1, 512, %s419, [#allocation4], 64, 64, 4
        $region16: #{tpu_custom_call.1} parent=11 // pred_fallthru
          _
        // Predicated region
        $region17: #{tpu_custom_call.1} parent=11 // pred_check
          %p425 = pneg %p98
        $region18: #{tpu_custom_call.1} parent=11 // pred_check_branch
          %427 = sbr.rel (%p425) target = $region20
        $region19: #{tpu_custom_call.1} parent=11 // pred_region
          _
        $region20: #{tpu_custom_call.1} parent=11 // pred_fallthru
          _
        // Predicated region
        $region21: #{tpu_custom_call.1} parent=11 // pred_check
          %p428 = pneg %p119
        $region22: #{tpu_custom_call.1} parent=11 // pred_check_branch
          %430 = sbr.rel (%p428) target = $region24
        $region23: #{tpu_custom_call.1} parent=11 // pred_region
          %s432 = ssub.s32 1024, 1024
          %433 = vsyncadd [#allocation7], %s432
          %s434 = sshll.u32 [#allocation6], 4
          %s435 = int_to_ptr.vmem [resolvable:$true] %s434
          %440 = dma.hbm_to_vmem [thread:$0]  %s3, 1024, %s435, [#allocation7], 64, 64, 4
        $region24: #{tpu_custom_call.1} parent=11 // pred_fallthru
          _
        // Predicated region
        $region25: #{tpu_custom_call.1} parent=11 // pred_check
          %p441 = pneg %p140
        $region26: #{tpu_custom_call.1} parent=11 // pred_check_branch
          %443 = sbr.rel (%p441) target = $region28
        $region27: #{tpu_custom_call.1} parent=11 // pred_region
          _
        $region28: #{tpu_custom_call.1} parent=11 // pred_fallthru
          _
        // Predicated region
        $region29: #{tpu_custom_call.1} parent=11 // pred_check
          %p444 = pneg %p161
        $region30: #{tpu_custom_call.1} parent=11 // pred_check_branch
          %446 = sbr.rel (%p444) target = $region32
        $region31: #{tpu_custom_call.1} parent=11 // pred_region
          _
        $region32: #{tpu_custom_call.1} parent=11 // pred_fallthru
          _
        // Predicated region
        $region33: #{tpu_custom_call.1} parent=11 // pred_check
          %p447 = pneg %p182
        $region34: #{tpu_custom_call.1} parent=11 // pred_check_branch
          %449 = sbr.rel (%p447) target = $region36
        $region35: #{tpu_custom_call.1} parent=11 // pred_region
          _
        $region36: #{tpu_custom_call.1} parent=11 // pred_fallthru
          _
        // Predicated region
        $region37: #{tpu_custom_call.1} parent=11 // pred_check
          %p450 = pneg %p203
        $region38: #{tpu_custom_call.1} parent=11 // pred_check_branch
          %452 = sbr.rel (%p450) target = $region40
        $region39: #{tpu_custom_call.1} parent=11 // pred_region
          _
        $region40: #{tpu_custom_call.1} parent=11 // pred_fallthru
          _
        // Predicated region
        $region41: #{tpu_custom_call.1} parent=11 // pred_check
          %p453 = pneg %p224
        $region42: #{tpu_custom_call.1} parent=11 // pred_check_branch
          %455 = sbr.rel (%p453) target = $region44
        $region43: #{tpu_custom_call.1} parent=11 // pred_region
          %s457 = ssub.s32 4096, 4096
          %458 = vsyncadd [#allocation7], %s457
          %s459 = sshll.u32 [#allocation8], 4
          %s460 = int_to_ptr.vmem [resolvable:$true] %s459
          %465 = dma.hbm_to_vmem [thread:$0]  %s8, 4096, %s460, [#allocation7], 64, 64, 4
        $region44: #{tpu_custom_call.1} parent=11 // pred_fallthru
          _
        // Predicated region
        $region45: #{tpu_custom_call.1} parent=11 // pred_check
          %p466 = pneg %p245
        $region46: #{tpu_custom_call.1} parent=11 // pred_check_branch
          %468 = sbr.rel (%p466) target = $region48
        $region47: #{tpu_custom_call.1} parent=11 // pred_region
          _
        $region48: #{tpu_custom_call.1} parent=11 // pred_fallthru
          _
        // Predicated region
        $region49: #{tpu_custom_call.1} parent=11 // pred_check
          %p469 = pneg %p266
        $region50: #{tpu_custom_call.1} parent=11 // pred_check_branch
          %471 = sbr.rel (%p469) target = $region52
        $region51: #{tpu_custom_call.1} parent=11 // pred_region
          %s473 = ssub.s32 1024, 1024
          %474 = vsyncadd [#allocation10], %s473
          %s475 = sshll.u32 [#allocation9], 4
          %s476 = int_to_ptr.vmem [resolvable:$true] %s475
          %481 = dma.hbm_to_vmem [thread:$0]  %s10, 1024, %s476, [#allocation10], 64, 64, 4
        $region52: #{tpu_custom_call.1} parent=11 // pred_fallthru
          _
        // Predicated region
        $region53: #{tpu_custom_call.1} parent=11 // pred_check
          %p482 = pneg %p287
        $region54: #{tpu_custom_call.1} parent=11 // pred_check_branch
          %484 = sbr.rel (%p482) target = $region56
        $region55: #{tpu_custom_call.1} parent=11 // pred_region
          _
        $region56: #{tpu_custom_call.1} parent=11 // pred_fallthru
          _
        // Predicated region
        $region57: #{tpu_custom_call.1} parent=11 // pred_check
          %p485 = pneg %p308
        $region58: #{tpu_custom_call.1} parent=11 // pred_check_branch
          %487 = sbr.rel (%p485) target = $region60
        $region59: #{tpu_custom_call.1} parent=11 // pred_region
          %s489 = ssub.s32 1024, 1024
          %490 = vsyncadd [#allocation10], %s489
          %s491 = sshll.u32 [#allocation11], 4
          %s492 = int_to_ptr.vmem [resolvable:$true] %s491
          %497 = dma.hbm_to_vmem [thread:$0]  %s12, 1024, %s492, [#allocation10], 64, 64, 4
        $region60: #{tpu_custom_call.1} parent=11 // pred_fallthru
          _
        // Predicated region
        $region61: #{tpu_custom_call.1} parent=11 // pred_check
          %p498 = pneg %p329
        $region62: #{tpu_custom_call.1} parent=11 // pred_check_branch
          %500 = sbr.rel (%p498) target = $region64
        $region63: #{tpu_custom_call.1} parent=11 // pred_region
          _
        $region64: #{tpu_custom_call.1} parent=11 // pred_fallthru
          _
        // Predicated region
        $region65: #{tpu_custom_call.1} parent=11 // pred_check
          %p501 = pneg %p350
        $region66: #{tpu_custom_call.1} parent=11 // pred_check_branch
          %503 = sbr.rel (%p501) target = $region68
        $region67: #{tpu_custom_call.1} parent=11 // pred_region
          %s505 = ssub.s32 1024, 1024
          %506 = vsyncadd [#allocation13], %s505
          %s507 = sshll.u32 [#allocation12], 4
          %s508 = int_to_ptr.vmem [resolvable:$true] %s507
          %513 = dma.hbm_to_vmem [thread:$0]  %s14, 1024, %s508, [#allocation13], 128, 128, 8
        $region68: #{tpu_custom_call.1} parent=11 // pred_fallthru
          _
        // Predicated region
        $region69: #{tpu_custom_call.1} parent=11 // pred_check
          %p514 = pneg %p371
        $region70: #{tpu_custom_call.1} parent=11 // pred_check_branch
          %516 = sbr.rel (%p514) target = $region72
        $region71: #{tpu_custom_call.1} parent=11 // pred_region
          _
        $region72: #{tpu_custom_call.1} parent=11 // pred_fallthru
          _
      $region12: #{tpu_custom_call.1} parent=5 // pred_fallthru
        _
      %p517 = scmp.lt.s32.totalorder %s30, 2
      // Predicated region
      $region73: #{tpu_custom_call.1} parent=5 // pred_check
        %p518 = pneg %p517
      $region74: #{tpu_custom_call.1} parent=5 // pred_check_branch
        %520 = sbr.rel (%p518) target = $region76
      $region75: #{tpu_custom_call.1} parent=5 // pred_region
        // Predicated region
        $region77: #{tpu_custom_call.1} parent=75 // pred_check
          %p521 = pneg %p50
        $region78: #{tpu_custom_call.1} parent=75 // pred_check_branch
          %523 = sbr.rel (%p521) target = $region80
        $region79: #{tpu_custom_call.1} parent=75 // pred_region
          %s524 = smul.u32 16, %s30
          %p525 = scmp.lt.s32.totalorder %s524, 31
          %s526 = scalar_select %p525, %s524, 31
          %s527 = smul.addr %s526, 8
          %s528 = scalar_lea.vmem %s0, %s527
          %s529 = smul.u32 16, %s30
        $region80: #{tpu_custom_call.1} parent=75 // pred_fallthru
          _
      $region76: #{tpu_custom_call.1} parent=5 // pred_fallthru
        _
      %p530 = scmp.le.s32.totalorder 1, %s30
      %p531 = scmp.lt.s32.totalorder %s30, 3
      %p532 = pnand %p530, %p531
      %p533 = pneg %p532
      // Predicated region
      $region81: #{tpu_custom_call.1} parent=5 // pred_check
        _
      $region82: #{tpu_custom_call.1} parent=5 // pred_check_branch
        %535 = sbr.rel (%p532) target = $region84
      $region83: #{tpu_custom_call.1} parent=5 // pred_region
        %s536 = ssub.s32 %s30, 1
        // Predicated region
        $region85: #{tpu_custom_call.1} parent=83 // pred_check
          %p537 = pneg %p77
        $region86: #{tpu_custom_call.1} parent=83 // pred_check_branch
          %539 = sbr.rel (%p537) target = $region88
        $region87: #{tpu_custom_call.1} parent=83 // pred_region
          %540 = dma.done [#allocation4], 512
        $region88: #{tpu_custom_call.1} parent=83 // pred_fallthru
          _
        // Predicated region
        $region89: #{tpu_custom_call.1} parent=83 // pred_check
          %p541 = pneg %p119
        $region90: #{tpu_custom_call.1} parent=83 // pred_check_branch
          %543 = sbr.rel (%p541) target = $region92
        $region91: #{tpu_custom_call.1} parent=83 // pred_region
          %544 = dma.done [#allocation7], 1024
        $region92: #{tpu_custom_call.1} parent=83 // pred_fallthru
          _
        // Predicated region
        $region93: #{tpu_custom_call.1} parent=83 // pred_check
          %p545 = pneg %p224
        $region94: #{tpu_custom_call.1} parent=83 // pred_check_branch
          %547 = sbr.rel (%p545) target = $region96
        $region95: #{tpu_custom_call.1} parent=83 // pred_region
          %548 = dma.done [#allocation7], 4096
        $region96: #{tpu_custom_call.1} parent=83 // pred_fallthru
          _
        // Predicated region
        $region97: #{tpu_custom_call.1} parent=83 // pred_check
          %p549 = pneg %p266
        $region98: #{tpu_custom_call.1} parent=83 // pred_check_branch
          %551 = sbr.rel (%p549) target = $region100
        $region99: #{tpu_custom_call.1} parent=83 // pred_region
          %552 = dma.done [#allocation10], 1024
        $region100: #{tpu_custom_call.1} parent=83 // pred_fallthru
          _
        // Predicated region
        $region101: #{tpu_custom_call.1} parent=83 // pred_check
          %p553 = pneg %p308
        $region102: #{tpu_custom_call.1} parent=83 // pred_check_branch
          %555 = sbr.rel (%p553) target = $region104
        $region103: #{tpu_custom_call.1} parent=83 // pred_region
          %556 = dma.done [#allocation10], 1024
        $region104: #{tpu_custom_call.1} parent=83 // pred_fallthru
          _
        // Predicated region
        $region105: #{tpu_custom_call.1} parent=83 // pred_check
          %p557 = pneg %p350
        $region106: #{tpu_custom_call.1} parent=83 // pred_check_branch
          %559 = sbr.rel (%p557) target = $region108
        $region107: #{tpu_custom_call.1} parent=83 // pred_region
          %560 = dma.done [#allocation13], 1024
        $region108: #{tpu_custom_call.1} parent=83 // pred_fallthru
          _
        %s561 = smul.u32 16, %s35
        %p562 = scmp.lt.s32.totalorder %s561, 31
        %s563 = scalar_select %p562, %s561, 31
        %s564 = smul.addr %s563, 8
        %s565 = scalar_lea.vmem %s0, %s564
        %p566 = pneg %p56
        %p567 = pneg %p53
        %p568 = pneg %p77
        %p569 = pneg %p74
        %p570 = pneg %p98
        %p571 = pneg %p95
        %p572 = pneg %p119
        %p573 = pneg %p116
        %p574 = pneg %p140
        %p575 = pneg %p137
        %p576 = pneg %p161
        %p577 = pneg %p158
        %p578 = pneg %p182
        %p579 = pneg %p179
        %p580 = pneg %p203
        %p581 = pneg %p200
        %p582 = pneg %p224
        %p583 = pneg %p221
        %p584 = pneg %p245
        %p585 = pneg %p242
        %p586 = pneg %p266
        %p587 = pneg %p263
        %p588 = pneg %p287
        %p589 = pneg %p284
        %p590 = pneg %p308
        %p591 = pneg %p305
        %p592 = pneg %p329
        %p593 = pneg %p326
        %p594 = pneg %p350
        %p595 = pneg %p347
        %p596 = pneg %p371
        %p597 = pneg %p368
        %p598 = pneg %p397
        %p599 = pneg %p394
        %s600 = sand.u32 %s384, 1
        %s601 = scalar_lea.sflag [#allocation5], %s600
        %s602 = sand.u32 %s384, 1
        %s603 = smul.addr %s602, 128
        %s604 = scalar_lea.vmem [#allocation14], %s603
        %s605 = smul.u32 16, %s35
        %p606 = scmp.lt.s32.totalorder %s605, 31
        %s607 = scalar_select %p606, %s605, 31
        %s608 = smul.addr %s607, 8
        %s609 = scalar_lea.vmem %s0, %s608
        %s610 = smul.u32 16, %s35
        %s611 = smul.u32 16, %s35
        %v613 = vld [vmem:[%s609] sm:$0xff]
        %v614 = vld [vmem:[%s609 + $0x8] sm:$0xff]
        %v615 = vld [vmem:[%s609 + $0x10] sm:$0xff]
        %v616 = vld [vmem:[%s609 + $0x18] sm:$0xff]
        %v617 = vld [vmem:[%s609 + $0x20] sm:$0xff]
        %v618 = vld [vmem:[%s609 + $0x28] sm:$0xff]
        %v619 = vld [vmem:[%s609 + $0x30] sm:$0xff]
        %v620 = vld [vmem:[%s609 + $0x38] sm:$0xff]
        %v621 = vld [vmem:[%s609 + $0x40] sm:$0xff]
        %v622 = vld [vmem:[%s609 + $0x48] sm:$0xff]
        %v623 = vld [vmem:[%s609 + $0x50] sm:$0xff]
        %v624 = vld [vmem:[%s609 + $0x58] sm:$0xff]
        %v625 = vld [vmem:[%s609 + $0x60] sm:$0xff]
        %v626 = vld [vmem:[%s609 + $0x68] sm:$0xff]
        %v627 = vld [vmem:[%s609 + $0x70] sm:$0xff]
        %v628 = vld [vmem:[%s609 + $0x78] sm:$0xff]
        %v629 = vpack.c.bf16 %v614, %v613
        %v630 = vpack.c.bf16 %v616, %v615
        %v631 = vpack.c.bf16 %v618, %v617
        %v632 = vpack.c.bf16 %v620, %v619
        %v633 = vpack.c.bf16 %v622, %v621
        %v634 = vpack.c.bf16 %v624, %v623
        %v635 = vpack.c.bf16 %v626, %v625
        %v636 = vpack.c.bf16 %v628, %v627
        %v637 = vld [vmem:[#allocation3] sm:$0xf]
        %v638 = vld [vmem:[#allocation3 + $0x4] sm:$0xf]
        %v639 = vld [vmem:[#allocation3 + $0x8] sm:$0xf]
        %v640 = vld [vmem:[#allocation3 + $0xc] sm:$0xf]
        %v641 = vld [vmem:[#allocation3 + $0x10] sm:$0xf]
        %v642 = vld [vmem:[#allocation3 + $0x14] sm:$0xf]
        %v643 = vld [vmem:[#allocation3 + $0x18] sm:$0xf]
        %v644 = vld [vmem:[#allocation3 + $0x1c] sm:$0xf]
        %v645 = vld [vmem:[%s2] sm:$0x1]
        %v647 = vlaneseq
        %v648 = vshrl.u32 %v647, 7
        %v649 = vsub.s32 0, %v648
        %v650 = vrot.slane %v645, %v649
        %v660 = vunpack.c.l.b16 %v637
        %v661 = vunpack.c.l.b16 %v638
        %v662 = vunpack.c.l.b16 %v639
        %v663 = vunpack.c.l.b16 %v640
        %v664 = vunpack.c.l.b16 %v641
        %v665 = vunpack.c.l.b16 %v642
        %v666 = vunpack.c.l.b16 %v643
        %v667 = vunpack.c.l.b16 %v644
        %v668 = vpack.c.b16 %v661, %v660
        %v669 = vpack.c.b16 %v663, %v662
        %v670 = vpack.c.b16 %v665, %v664
        %v671 = vpack.c.b16 %v667, %v666
        %vm676 = vcmask 523264
        %v678 = vsel %vm676, %v629, 0
        %v681 = vsel %vm676, %v630, 0
        %v684 = vsel %vm676, %v631, 0
        %v687 = vsel %vm676, %v632, 0
        %v690 = vsel %vm676, %v633, 0
        %v693 = vsel %vm676, %v634, 0
        %v696 = vsel %vm676, %v635, 0
        %v699 = vsel %vm676, %v636, 0
        %701 = vmatprep.subr.bf16.mxu0 0
        %702 = vmatpush1.bf16.msra.mxu0 0
        %703 = vmatprep.subr.bf16.mxu0 0
        %704 = vmatpush1.bf16.msra.mxu0 0
        %705 = vmatprep.subr.bf16.mxu0 0
        %706 = vmatpush1.bf16.msra.mxu0 0
        %707 = vmatprep.subr.bf16.mxu0 0
        %708 = vmatpush1.bf16.msra.mxu0 0
        %709 = vmatprep.subr.bf16.mxu0 0
        %710 = vmatpush1.bf16.msra.mxu0 %v671
        %711 = vmatprep.subr.bf16.mxu0 0
        %712 = vmatpush1.bf16.msra.mxu0 %v670
        %713 = vmatprep.subr.bf16.mxu0 0
        %714 = vmatpush1.bf16.msra.mxu0 %v669
        %715 = vmatprep.subr.bf16.mxu0 0
        %716 = vmatpush1.bf16.msra.mxu0 %v668
        %717 = vmatprep.subr.bf16.mxu0 0
        %718 = vmatpush2.bf16.msra.mxu0 0
        %719 = vmatprep.subr.bf16.mxu0 0
        %720 = vmatpush2.bf16.msra.mxu0 0
        %721 = vmatprep.subr.bf16.mxu0 0
        %722 = vmatpush2.bf16.msra.mxu0 0
        %723 = vmatprep.subr.bf16.mxu0 0
        %724 = vmatpush2.bf16.msra.mxu0 0
        %725 = vmatprep.subr.bf16.mxu0 0
        %726 = vmatpush2.bf16.msra.mxu0 0
        %727 = vmatprep.subr.bf16.mxu0 0
        %728 = vmatpush2.bf16.msra.mxu0 0
        %729 = vmatprep.subr.bf16.mxu0 0
        %730 = vmatpush2.bf16.msra.mxu0 0
        %731 = vmatprep.subr.bf16.mxu0 0
        %732 = vmatpush2.bf16.msra.mxu0 0
        %733 = vmatprep.mubr.bf16.mxu0 0
        %734 = vmatmul.mubr.bf16.gmra.mxu0 %v678
        %v735 = vpop.f32.mrf.mxu0
        %v736 = vadd.f32 %v650, %v735
        %v737 = vpop.f32.mrf.mxu0
        %v738 = vpop.f32.mrf.mxu0
        %v739 = vadd.f32 %v650, %v738
        %v740 = vpop.f32.mrf.mxu0
        %741 = vmatprep.mubr.bf16.mxu0 0
        %742 = vmatmul.mubr.bf16.gmra.mxu0 %v681
        %v743 = vpop.f32.mrf.mxu0
        %v744 = vadd.f32 %v650, %v743
        %v745 = vpop.f32.mrf.mxu0
        %v746 = vpop.f32.mrf.mxu0
        %v747 = vadd.f32 %v650, %v746
        %v748 = vpop.f32.mrf.mxu0
        %749 = vmatprep.mubr.bf16.mxu0 0
        %750 = vmatmul.mubr.bf16.gmra.mxu0 %v684
        %v751 = vpop.f32.mrf.mxu0
        %v752 = vadd.f32 %v650, %v751
        %v753 = vpop.f32.mrf.mxu0
        %v754 = vpop.f32.mrf.mxu0
        %v755 = vadd.f32 %v650, %v754
        %v756 = vpop.f32.mrf.mxu0
        %757 = vmatprep.mubr.bf16.mxu0 0
        %758 = vmatmul.mubr.bf16.gmra.mxu0 %v687
        %v759 = vpop.f32.mrf.mxu0
        %v760 = vadd.f32 %v650, %v759
        %v761 = vpop.f32.mrf.mxu0
        %v762 = vpop.f32.mrf.mxu0
        %v763 = vadd.f32 %v650, %v762
        %v764 = vpop.f32.mrf.mxu0
        %765 = vmatprep.mubr.bf16.mxu0 0
        %766 = vmatmul.mubr.bf16.gmra.mxu0 %v690
        %v767 = vpop.f32.mrf.mxu0
        %v768 = vadd.f32 %v650, %v767
        %v769 = vpop.f32.mrf.mxu0
        %v770 = vpop.f32.mrf.mxu0
        %v771 = vadd.f32 %v650, %v770
        %v772 = vpop.f32.mrf.mxu0
        %773 = vmatprep.mubr.bf16.mxu0 0
        %774 = vmatmul.mubr.bf16.gmra.mxu0 %v693
        %v775 = vpop.f32.mrf.mxu0
        %v776 = vadd.f32 %v650, %v775
        %v777 = vpop.f32.mrf.mxu0
        %v778 = vpop.f32.mrf.mxu0
        %v779 = vadd.f32 %v650, %v778
        %v780 = vpop.f32.mrf.mxu0
        %781 = vmatprep.mubr.bf16.mxu0 0
        %782 = vmatmul.mubr.bf16.gmra.mxu0 %v696
        %v783 = vpop.f32.mrf.mxu0
        %v784 = vadd.f32 %v650, %v783
        %v785 = vpop.f32.mrf.mxu0
        %v786 = vpop.f32.mrf.mxu0
        %v787 = vadd.f32 %v650, %v786
        %v788 = vpop.f32.mrf.mxu0
        %789 = vmatprep.mubr.bf16.mxu0 0
        %790 = vmatmul.mubr.bf16.gmra.mxu0 %v699
        %v791 = vpop.f32.mrf.mxu0
        %v792 = vadd.f32 %v650, %v791
        %v793 = vpop.f32.mrf.mxu0
        %v794 = vpop.f32.mrf.mxu0
        %v795 = vadd.f32 %v650, %v794
        %v796 = vpop.f32.mrf.mxu0
        %797 = vdwg.mxu0
        %vm798 = vcmp.gt.f32.partialorder %v736, 0.0
        %vm799 = vcmp.gt.f32.partialorder %v739, 0.0
        %vm800 = vcmp.gt.f32.partialorder %v744, 0.0
        %vm801 = vcmp.gt.f32.partialorder %v747, 0.0
        %vm802 = vcmp.gt.f32.partialorder %v752, 0.0
        %vm803 = vcmp.gt.f32.partialorder %v755, 0.0
        %vm804 = vcmp.gt.f32.partialorder %v760, 0.0
        %vm805 = vcmp.gt.f32.partialorder %v763, 0.0
        %vm806 = vcmp.gt.f32.partialorder %v768, 0.0
        %vm807 = vcmp.gt.f32.partialorder %v771, 0.0
        %vm808 = vcmp.gt.f32.partialorder %v776, 0.0
        %vm809 = vcmp.gt.f32.partialorder %v779, 0.0
        %vm810 = vcmp.gt.f32.partialorder %v784, 0.0
        %vm811 = vcmp.gt.f32.partialorder %v787, 0.0
        %vm812 = vcmp.gt.f32.partialorder %v792, 0.0
        %vm813 = vcmp.gt.f32.partialorder %v795, 0.0
        %v814 = vmin.f32 %v736, 0.0
        %v815 = vmin.f32 %v739, 0.0
        %v816 = vmin.f32 %v744, 0.0
        %v817 = vmin.f32 %v747, 0.0
        %v818 = vmin.f32 %v752, 0.0
        %v819 = vmin.f32 %v755, 0.0
        %v820 = vmin.f32 %v760, 0.0
        %v821 = vmin.f32 %v763, 0.0
        %v822 = vmin.f32 %v768, 0.0
        %v823 = vmin.f32 %v771, 0.0
        %v824 = vmin.f32 %v776, 0.0
        %v825 = vmin.f32 %v779, 0.0
        %v826 = vmin.f32 %v784, 0.0
        %v827 = vmin.f32 %v787, 0.0
        %v828 = vmin.f32 %v792, 0.0
        %v829 = vmin.f32 %v795, 0.0
        %v830 = vmul.f32 %v814, 1.442695
        %v831 = vpow.pop %v830
        %v832 = vmul.f32 %v815, 1.442695
        %v833 = vpow.pop %v832
        %v834 = vmul.f32 %v816, 1.442695
        %v835 = vpow.pop %v834
        %v836 = vmul.f32 %v817, 1.442695
        %v837 = vpow.pop %v836
        %v838 = vmul.f32 %v818, 1.442695
        %v839 = vpow.pop %v838
        %v840 = vmul.f32 %v819, 1.442695
        %v841 = vpow.pop %v840
        %v842 = vmul.f32 %v820, 1.442695
        %v843 = vpow.pop %v842
        %v844 = vmul.f32 %v821, 1.442695
        %v845 = vpow.pop %v844
        %v846 = vmul.f32 %v822, 1.442695
        %v847 = vpow.pop %v846
        %v848 = vmul.f32 %v823, 1.442695
        %v849 = vpow.pop %v848
        %v850 = vmul.f32 %v824, 1.442695
        %v851 = vpow.pop %v850
        %v852 = vmul.f32 %v825, 1.442695
        %v853 = vpow.pop %v852
        %v854 = vmul.f32 %v826, 1.442695
        %v855 = vpow.pop %v854
        %v856 = vmul.f32 %v827, 1.442695
        %v857 = vpow.pop %v856
        %v858 = vmul.f32 %v828, 1.442695
        %v859 = vpow.pop %v858
        %v860 = vmul.f32 %v829, 1.442695
        %v861 = vpow.pop %v860
        %v862 = vsub.f32 %v831, 1.0
        %v863 = vsub.f32 %v833, 1.0
        %v864 = vsub.f32 %v835, 1.0
        %v865 = vsub.f32 %v837, 1.0
        %v866 = vsub.f32 %v839, 1.0
        %v867 = vsub.f32 %v841, 1.0
        %v868 = vsub.f32 %v843, 1.0
        %v869 = vsub.f32 %v845, 1.0
        %v870 = vsub.f32 %v847, 1.0
        %v871 = vsub.f32 %v849, 1.0
        %v872 = vsub.f32 %v851, 1.0
        %v873 = vsub.f32 %v853, 1.0
        %v874 = vsub.f32 %v855, 1.0
        %v875 = vsub.f32 %v857, 1.0
        %v876 = vsub.f32 %v859, 1.0
        %v877 = vsub.f32 %v861, 1.0
        %v878 = vsel %vm798, %v736, %v862
        %v879 = vsel %vm799, %v739, %v863
        %v880 = vsel %vm800, %v744, %v864
        %v881 = vsel %vm801, %v747, %v865
        %v882 = vsel %vm802, %v752, %v866
        %v883 = vsel %vm803, %v755, %v867
        %v884 = vsel %vm804, %v760, %v868
        %v885 = vsel %vm805, %v763, %v869
        %v886 = vsel %vm806, %v768, %v870
        %v887 = vsel %vm807, %v771, %v871
        %v888 = vsel %vm808, %v776, %v872
        %v889 = vsel %vm809, %v779, %v873
        %v890 = vsel %vm810, %v784, %v874
        %v891 = vsel %vm811, %v787, %v875
        %v892 = vsel %vm812, %v792, %v876
        %v893 = vsel %vm813, %v795, %v877
        %v894 = vpack.c.bf16 %v879, %v878
        %v895 = vpack.c.bf16 %v881, %v880
        %v896 = vpack.c.bf16 %v883, %v882
        %v897 = vpack.c.bf16 %v885, %v884
        %v898 = vpack.c.bf16 %v887, %v886
        %v899 = vpack.c.bf16 %v889, %v888
        %v900 = vpack.c.bf16 %v891, %v890
        %v901 = vpack.c.bf16 %v893, %v892
        %v902 = vld [vmem:[#allocation6] sm:$0xf]
        %v903 = vld [vmem:[#allocation6 + $0x4] sm:$0xf]
        %v904 = vld [vmem:[#allocation6 + $0x8] sm:$0xf]
        %v905 = vld [vmem:[#allocation6 + $0xc] sm:$0xf]
        %v906 = vld [vmem:[#allocation6 + $0x10] sm:$0xf]
        %v907 = vld [vmem:[#allocation6 + $0x14] sm:$0xf]
        %v908 = vld [vmem:[#allocation6 + $0x18] sm:$0xf]
        %v909 = vld [vmem:[#allocation6 + $0x1c] sm:$0xf]
        %v910 = vld [vmem:[#allocation6 + $0x20] sm:$0xf]
        %v911 = vld [vmem:[#allocation6 + $0x24] sm:$0xf]
        %v912 = vld [vmem:[#allocation6 + $0x28] sm:$0xf]
        %v913 = vld [vmem:[#allocation6 + $0x2c] sm:$0xf]
        %v914 = vld [vmem:[#allocation6 + $0x30] sm:$0xf]
        %v915 = vld [vmem:[#allocation6 + $0x34] sm:$0xf]
        %v916 = vld [vmem:[#allocation6 + $0x38] sm:$0xf]
        %v917 = vld [vmem:[#allocation6 + $0x3c] sm:$0xf]
        %v918 = vld [vmem:[%s4] sm:$0x1]
        %v920 = vlaneseq
        %v921 = vshrl.u32 %v920, 7
        %v922 = vsub.s32 0, %v921
        %v923 = vrot.slane %v918, %v922
        %v941 = vunpack.c.l.b16 %v902
        %v942 = vunpack.c.l.b16 %v903
        %v943 = vunpack.c.l.b16 %v904
        %v944 = vunpack.c.l.b16 %v905
        %v945 = vunpack.c.l.b16 %v906
        %v946 = vunpack.c.l.b16 %v907
        %v947 = vunpack.c.l.b16 %v908
        %v948 = vunpack.c.l.b16 %v909
        %v949 = vunpack.c.l.b16 %v910
        %v950 = vunpack.c.l.b16 %v911
        %v951 = vunpack.c.l.b16 %v912
        %v952 = vunpack.c.l.b16 %v913
        %v953 = vunpack.c.l.b16 %v914
        %v954 = vunpack.c.l.b16 %v915
        %v955 = vunpack.c.l.b16 %v916
        %v956 = vunpack.c.l.b16 %v917
        %v957 = vpack.c.b16 %v942, %v941
        %v958 = vpack.c.b16 %v944, %v943
        %v959 = vpack.c.b16 %v946, %v945
        %v960 = vpack.c.b16 %v948, %v947
        %v961 = vpack.c.b16 %v950, %v949
        %v962 = vpack.c.b16 %v952, %v951
        %v963 = vpack.c.b16 %v954, %v953
        %v964 = vpack.c.b16 %v956, %v955
        %973 = vmatprep.subr.bf16.mxu0 0
        %974 = vmatpush1.bf16.msra.mxu0 %v964
        %975 = vmatprep.subr.bf16.mxu0 0
        %976 = vmatpush1.bf16.msra.mxu0 %v963
        %977 = vmatprep.subr.bf16.mxu0 0
        %978 = vmatpush1.bf16.msra.mxu0 %v962
        %979 = vmatprep.subr.bf16.mxu0 0
        %980 = vmatpush1.bf16.msra.mxu0 %v961
        %981 = vmatprep.subr.bf16.mxu0 0
        %982 = vmatpush1.bf16.msra.mxu0 %v960
        %983 = vmatprep.subr.bf16.mxu0 0
        %984 = vmatpush1.bf16.msra.mxu0 %v959
        %985 = vmatprep.subr.bf16.mxu0 0
        %986 = vmatpush1.bf16.msra.mxu0 %v958
        %987 = vmatprep.subr.bf16.mxu0 0
        %988 = vmatpush1.bf16.msra.mxu0 %v957
        %989 = vmatprep.subr.bf16.mxu0 0
        %990 = vmatpush2.bf16.msra.mxu0 0
        %991 = vmatprep.subr.bf16.mxu0 0
        %992 = vmatpush2.bf16.msra.mxu0 0
        %993 = vmatprep.subr.bf16.mxu0 0
        %994 = vmatpush2.bf16.msra.mxu0 0
        %995 = vmatprep.subr.bf16.mxu0 0
        %996 = vmatpush2.bf16.msra.mxu0 0
        %997 = vmatprep.subr.bf16.mxu0 0
        %998 = vmatpush2.bf16.msra.mxu0 0
        %999 = vmatprep.subr.bf16.mxu0 0
        %1000 = vmatpush2.bf16.msra.mxu0 0
        %1001 = vmatprep.subr.bf16.mxu0 0
        %1002 = vmatpush2.bf16.msra.mxu0 0
        %1003 = vmatprep.subr.bf16.mxu0 0
        %1004 = vmatpush2.bf16.msra.mxu0 0
        %1005 = vmatprep.mubr.bf16.mxu0 0
        %1006 = vmatmul.mubr.bf16.gmra.mxu0 %v894
        %v1007 = vpop.f32.mrf.mxu0
        %v1008 = vadd.f32 %v923, %v1007
        %v1009 = vpop.f32.mrf.mxu0
        %v1010 = vpop.f32.mrf.mxu0
        %v1011 = vadd.f32 %v923, %v1010
        %v1012 = vpop.f32.mrf.mxu0
        %1013 = vmatprep.mubr.bf16.mxu0 0
        %1014 = vmatmul.mubr.bf16.gmra.mxu0 %v895
        %v1015 = vpop.f32.mrf.mxu0
        %v1016 = vadd.f32 %v923, %v1015
        %v1017 = vpop.f32.mrf.mxu0
        %v1018 = vpop.f32.mrf.mxu0
        %v1019 = vadd.f32 %v923, %v1018
        %v1020 = vpop.f32.mrf.mxu0
        %1021 = vmatprep.mubr.bf16.mxu0 0
        %1022 = vmatmul.mubr.bf16.gmra.mxu0 %v896
        %v1023 = vpop.f32.mrf.mxu0
        %v1024 = vadd.f32 %v923, %v1023
        %v1025 = vpop.f32.mrf.mxu0
        %v1026 = vpop.f32.mrf.mxu0
        %v1027 = vadd.f32 %v923, %v1026
        %v1028 = vpop.f32.mrf.mxu0
        %1029 = vmatprep.mubr.bf16.mxu0 0
        %1030 = vmatmul.mubr.bf16.gmra.mxu0 %v897
        %v1031 = vpop.f32.mrf.mxu0
        %v1032 = vadd.f32 %v923, %v1031
        %v1033 = vpop.f32.mrf.mxu0
        %v1034 = vpop.f32.mrf.mxu0
        %v1035 = vadd.f32 %v923, %v1034
        %v1036 = vpop.f32.mrf.mxu0
        %1037 = vmatprep.mubr.bf16.mxu0 0
        %1038 = vmatmul.mubr.bf16.gmra.mxu0 %v898
        %v1039 = vpop.f32.mrf.mxu0
        %v1040 = vadd.f32 %v923, %v1039
        %v1041 = vpop.f32.mrf.mxu0
        %v1042 = vpop.f32.mrf.mxu0
        %v1043 = vadd.f32 %v923, %v1042
        %v1044 = vpop.f32.mrf.mxu0
        %1045 = vmatprep.mubr.bf16.mxu0 0
        %1046 = vmatmul.mubr.bf16.gmra.mxu0 %v899
        %v1047 = vpop.f32.mrf.mxu0
        %v1048 = vadd.f32 %v923, %v1047
        %v1049 = vpop.f32.mrf.mxu0
        %v1050 = vpop.f32.mrf.mxu0
        %v1051 = vadd.f32 %v923, %v1050
        %v1052 = vpop.f32.mrf.mxu0
        %1053 = vmatprep.mubr.bf16.mxu0 0
        %1054 = vmatmul.mubr.bf16.gmra.mxu0 %v900
        %v1055 = vpop.f32.mrf.mxu0
        %v1056 = vadd.f32 %v923, %v1055
        %v1057 = vpop.f32.mrf.mxu0
        %v1058 = vpop.f32.mrf.mxu0
        %v1059 = vadd.f32 %v923, %v1058
        %v1060 = vpop.f32.mrf.mxu0
        %1061 = vmatprep.mubr.bf16.mxu0 0
        %1062 = vmatmul.mubr.bf16.gmra.mxu0 %v901
        %v1063 = vpop.f32.mrf.mxu0
        %v1064 = vadd.f32 %v923, %v1063
        %v1065 = vpop.f32.mrf.mxu0
        %v1066 = vpop.f32.mrf.mxu0
        %v1067 = vadd.f32 %v923, %v1066
        %v1068 = vpop.f32.mrf.mxu0
        %1069 = vdwg.mxu0
        %v1070 = vld [vmem:[%s5] sm:$0xff]
        %v1071 = vld [vmem:[%s5 + $0x8] sm:$0xff]
        %v1072 = vld [vmem:[%s5 + $0x10] sm:$0xff]
        %v1073 = vld [vmem:[%s5 + $0x18] sm:$0xff]
        %v1074 = vld [vmem:[%s5 + $0x20] sm:$0xff]
        %v1075 = vld [vmem:[%s5 + $0x28] sm:$0xff]
        %v1076 = vld [vmem:[%s5 + $0x30] sm:$0xff]
        %v1077 = vld [vmem:[%s5 + $0x38] sm:$0xff]
        %v1078 = vld [vmem:[%s5 + $0x40] sm:$0xff]
        %v1079 = vld [vmem:[%s5 + $0x48] sm:$0xff]
        %v1080 = vld [vmem:[%s5 + $0x50] sm:$0xff]
        %v1081 = vld [vmem:[%s5 + $0x58] sm:$0xff]
        %v1082 = vld [vmem:[%s5 + $0x60] sm:$0xff]
        %v1083 = vld [vmem:[%s5 + $0x68] sm:$0xff]
        %v1084 = vld [vmem:[%s5 + $0x70] sm:$0xff]
        %v1085 = vld [vmem:[%s5 + $0x78] sm:$0xff]
        %v1102 = vunpack.c.l.b16 %v1070
        %v1103 = vunpack.c.h.b16 %v1070
        %v1104 = vunpack.c.l.b16 %v1071
        %v1105 = vunpack.c.h.b16 %v1071
        %v1106 = vunpack.c.l.b16 %v1072
        %v1107 = vunpack.c.h.b16 %v1072
        %v1108 = vunpack.c.l.b16 %v1073
        %v1109 = vunpack.c.h.b16 %v1073
        %v1110 = vunpack.c.l.b16 %v1074
        %v1111 = vunpack.c.h.b16 %v1074
        %v1112 = vunpack.c.l.b16 %v1075
        %v1113 = vunpack.c.h.b16 %v1075
        %v1114 = vunpack.c.l.b16 %v1076
        %v1115 = vunpack.c.h.b16 %v1076
        %v1116 = vunpack.c.l.b16 %v1077
        %v1117 = vunpack.c.h.b16 %v1077
        %v1118 = vunpack.c.l.b16 %v1078
        %v1119 = vunpack.c.h.b16 %v1078
        %v1120 = vunpack.c.l.b16 %v1079
        %v1121 = vunpack.c.h.b16 %v1079
        %v1122 = vunpack.c.l.b16 %v1080
        %v1123 = vunpack.c.h.b16 %v1080
        %v1124 = vunpack.c.l.b16 %v1081
        %v1125 = vunpack.c.h.b16 %v1081
        %v1126 = vunpack.c.l.b16 %v1082
        %v1127 = vunpack.c.h.b16 %v1082
        %v1128 = vunpack.c.l.b16 %v1083
        %v1129 = vunpack.c.h.b16 %v1083
        %v1130 = vunpack.c.l.b16 %v1084
        %v1131 = vunpack.c.h.b16 %v1084
        %v1132 = vunpack.c.l.b16 %v1085
        %v1133 = vunpack.c.h.b16 %v1085
        %v1134 = vpack.c.b16 %v1106, %v1102
        %v1135 = vpack.c.b16 %v1107, %v1103
        %v1136 = vpack.c.b16 %v1108, %v1104
        %v1137 = vpack.c.b16 %v1109, %v1105
        %v1138 = vpack.c.b16 %v1114, %v1110
        %v1139 = vpack.c.b16 %v1115, %v1111
        %v1140 = vpack.c.b16 %v1116, %v1112
        %v1141 = vpack.c.b16 %v1117, %v1113
        %v1142 = vpack.c.b16 %v1122, %v1118
        %v1143 = vpack.c.b16 %v1123, %v1119
        %v1144 = vpack.c.b16 %v1124, %v1120
        %v1145 = vpack.c.b16 %v1125, %v1121
        %v1146 = vpack.c.b16 %v1130, %v1126
        %v1147 = vpack.c.b16 %v1131, %v1127
        %v1148 = vpack.c.b16 %v1132, %v1128
        %v1149 = vpack.c.b16 %v1133, %v1129
        %1166 = vmatprep.subr.bf16.mxu0 0
        %1167 = vmatpush1.bf16.msra.mxu0 0
        %1168 = vmatprep.subr.bf16.mxu0 0
        %1169 = vmatpush1.bf16.msra.mxu0 0
        %1170 = vmatprep.subr.bf16.mxu0 0
        %1171 = vmatpush1.bf16.msra.mxu0 0
        %1172 = vmatprep.subr.bf16.mxu0 0
        %1173 = vmatpush1.bf16.msra.mxu0 0
        %1174 = vmatprep.subr.bf16.mxu0 %v1147
        %1175 = vmatpush1.bf16.msra.mxu0 %v1146
        %1176 = vmatprep.subr.bf16.mxu0 %v1143
        %1177 = vmatpush1.bf16.msra.mxu0 %v1142
        %1178 = vmatprep.subr.bf16.mxu0 %v1139
        %1179 = vmatpush1.bf16.msra.mxu0 %v1138
        %1180 = vmatprep.subr.bf16.mxu0 %v1135
        %1181 = vmatpush1.bf16.msra.mxu0 %v1134
        %1182 = vmatprep.subr.bf16.mxu0 0
        %1183 = vmatpush2.bf16.msra.mxu0 0
        %1184 = vmatprep.subr.bf16.mxu0 0
        %1185 = vmatpush2.bf16.msra.mxu0 0
        %1186 = vmatprep.subr.bf16.mxu0 0
        %1187 = vmatpush2.bf16.msra.mxu0 0
        %1188 = vmatprep.subr.bf16.mxu0 0
        %1189 = vmatpush2.bf16.msra.mxu0 0
        %1190 = vmatprep.subr.bf16.mxu0 0
        %1191 = vmatpush2.bf16.msra.mxu0 0
        %1192 = vmatprep.subr.bf16.mxu0 0
        %1193 = vmatpush2.bf16.msra.mxu0 0
        %1194 = vmatprep.subr.bf16.mxu0 0
        %1195 = vmatpush2.bf16.msra.mxu0 0
        %1196 = vmatprep.subr.bf16.mxu0 0
        %1197 = vmatpush2.bf16.msra.mxu0 0
        %1198 = vmatprep.mubr.bf16.mxu0 0
        %1199 = vmatmul.mubr.bf16.gmra.mxu0 %v678
        %v1200 = vpop.f32.mrf.mxu0
        %v1201 = vadd.f32 0.0, %v1200
        %v1202 = vpop.f32.mrf.mxu0
        %v1203 = vadd.f32 0.0, %v1202
        %v1204 = vpop.f32.mrf.mxu0
        %v1205 = vadd.f32 0.0, %v1204
        %v1206 = vpop.f32.mrf.mxu0
        %v1207 = vadd.f32 0.0, %v1206
        %1208 = vmatprep.mubr.bf16.mxu0 0
        %1209 = vmatmul.mubr.bf16.gmra.mxu0 %v681
        %v1210 = vpop.f32.mrf.mxu0
        %v1211 = vadd.f32 0.0, %v1210
        %v1212 = vpop.f32.mrf.mxu0
        %v1213 = vadd.f32 0.0, %v1212
        %v1214 = vpop.f32.mrf.mxu0
        %v1215 = vadd.f32 0.0, %v1214
        %v1216 = vpop.f32.mrf.mxu0
        %v1217 = vadd.f32 0.0, %v1216
        %1218 = vmatprep.mubr.bf16.mxu0 0
        %1219 = vmatmul.mubr.bf16.gmra.mxu0 %v684
        %v1220 = vpop.f32.mrf.mxu0
        %v1221 = vadd.f32 0.0, %v1220
        %v1222 = vpop.f32.mrf.mxu0
        %v1223 = vadd.f32 0.0, %v1222
        %v1224 = vpop.f32.mrf.mxu0
        %v1225 = vadd.f32 0.0, %v1224
        %v1226 = vpop.f32.mrf.mxu0
        %v1227 = vadd.f32 0.0, %v1226
        %1228 = vmatprep.mubr.bf16.mxu0 0
        %1229 = vmatmul.mubr.bf16.gmra.mxu0 %v687
        %v1230 = vpop.f32.mrf.mxu0
        %v1231 = vadd.f32 0.0, %v1230
        %v1232 = vpop.f32.mrf.mxu0
        %v1233 = vadd.f32 0.0, %v1232
        %v1234 = vpop.f32.mrf.mxu0
        %v1235 = vadd.f32 0.0, %v1234
        %v1236 = vpop.f32.mrf.mxu0
        %v1237 = vadd.f32 0.0, %v1236
        %1238 = vmatprep.mubr.bf16.mxu0 0
        %1239 = vmatmul.mubr.bf16.gmra.mxu0 %v690
        %v1240 = vpop.f32.mrf.mxu0
        %v1241 = vadd.f32 0.0, %v1240
        %v1242 = vpop.f32.mrf.mxu0
        %v1243 = vadd.f32 0.0, %v1242
        %v1244 = vpop.f32.mrf.mxu0
        %v1245 = vadd.f32 0.0, %v1244
        %v1246 = vpop.f32.mrf.mxu0
        %v1247 = vadd.f32 0.0, %v1246
        %1248 = vmatprep.mubr.bf16.mxu0 0
        %1249 = vmatmul.mubr.bf16.gmra.mxu0 %v693
        %v1250 = vpop.f32.mrf.mxu0
        %v1251 = vadd.f32 0.0, %v1250
        %v1252 = vpop.f32.mrf.mxu0
        %v1253 = vadd.f32 0.0, %v1252
        %v1254 = vpop.f32.mrf.mxu0
        %v1255 = vadd.f32 0.0, %v1254
        %v1256 = vpop.f32.mrf.mxu0
        %v1257 = vadd.f32 0.0, %v1256
        %1258 = vmatprep.mubr.bf16.mxu0 0
        %1259 = vmatmul.mubr.bf16.gmra.mxu0 %v696
        %v1260 = vpop.f32.mrf.mxu0
        %v1261 = vadd.f32 0.0, %v1260
        %v1262 = vpop.f32.mrf.mxu0
        %v1263 = vadd.f32 0.0, %v1262
        %v1264 = vpop.f32.mrf.mxu0
        %v1265 = vadd.f32 0.0, %v1264
        %v1266 = vpop.f32.mrf.mxu0
        %v1267 = vadd.f32 0.0, %v1266
        %1268 = vmatprep.mubr.bf16.mxu0 0
        %1269 = vmatmul.mubr.bf16.gmra.mxu0 %v699
        %v1270 = vpop.f32.mrf.mxu0
        %v1271 = vadd.f32 0.0, %v1270
        %v1272 = vpop.f32.mrf.mxu0
        %v1273 = vadd.f32 0.0, %v1272
        %v1274 = vpop.f32.mrf.mxu0
        %v1275 = vadd.f32 0.0, %v1274
        %v1276 = vpop.f32.mrf.mxu0
        %v1277 = vadd.f32 0.0, %v1276
        %1278 = vdwg.mxu0
        %1279 = vmatprep.subr.bf16.mxu0 0
        %1280 = vmatpush1.bf16.msra.mxu0 0
        %1281 = vmatprep.subr.bf16.mxu0 0
        %1282 = vmatpush1.bf16.msra.mxu0 0
        %1283 = vmatprep.subr.bf16.mxu0 0
        %1284 = vmatpush1.bf16.msra.mxu0 0
        %1285 = vmatprep.subr.bf16.mxu0 0
        %1286 = vmatpush1.bf16.msra.mxu0 0
        %1287 = vmatprep.subr.bf16.mxu0 %v1149
        %1288 = vmatpush1.bf16.msra.mxu0 %v1148
        %1289 = vmatprep.subr.bf16.mxu0 %v1145
        %1290 = vmatpush1.bf16.msra.mxu0 %v1144
        %1291 = vmatprep.subr.bf16.mxu0 %v1141
        %1292 = vmatpush1.bf16.msra.mxu0 %v1140
        %1293 = vmatprep.subr.bf16.mxu0 %v1137
        %1294 = vmatpush1.bf16.msra.mxu0 %v1136
        %1295 = vmatprep.subr.bf16.mxu0 0
        %1296 = vmatpush2.bf16.msra.mxu0 0
        %1297 = vmatprep.subr.bf16.mxu0 0
        %1298 = vmatpush2.bf16.msra.mxu0 0
        %1299 = vmatprep.subr.bf16.mxu0 0
        %1300 = vmatpush2.bf16.msra.mxu0 0
        %1301 = vmatprep.subr.bf16.mxu0 0
        %1302 = vmatpush2.bf16.msra.mxu0 0
        %1303 = vmatprep.subr.bf16.mxu0 0
        %1304 = vmatpush2.bf16.msra.mxu0 0
        %1305 = vmatprep.subr.bf16.mxu0 0
        %1306 = vmatpush2.bf16.msra.mxu0 0
        %1307 = vmatprep.subr.bf16.mxu0 0
        %1308 = vmatpush2.bf16.msra.mxu0 0
        %1309 = vmatprep.subr.bf16.mxu0 0
        %1310 = vmatpush2.bf16.msra.mxu0 0
        %1311 = vmatprep.mubr.bf16.mxu0 0
        %1312 = vmatmul.mubr.bf16.gmra.mxu0 %v678
        %v1313 = vpop.f32.mrf.mxu0
        %v1314 = vadd.f32 0.0, %v1313
        %v1315 = vpop.f32.mrf.mxu0
        %v1316 = vadd.f32 0.0, %v1315
        %v1317 = vpop.f32.mrf.mxu0
        %v1318 = vadd.f32 0.0, %v1317
        %v1319 = vpop.f32.mrf.mxu0
        %v1320 = vadd.f32 0.0, %v1319
        %1321 = vmatprep.mubr.bf16.mxu0 0
        %1322 = vmatmul.mubr.bf16.gmra.mxu0 %v681
        %v1323 = vpop.f32.mrf.mxu0
        %v1324 = vadd.f32 0.0, %v1323
        %v1325 = vpop.f32.mrf.mxu0
        %v1326 = vadd.f32 0.0, %v1325
        %v1327 = vpop.f32.mrf.mxu0
        %v1328 = vadd.f32 0.0, %v1327
        %v1329 = vpop.f32.mrf.mxu0
        %v1330 = vadd.f32 0.0, %v1329
        %1331 = vmatprep.mubr.bf16.mxu0 0
        %1332 = vmatmul.mubr.bf16.gmra.mxu0 %v684
        %v1333 = vpop.f32.mrf.mxu0
        %v1334 = vadd.f32 0.0, %v1333
        %v1335 = vpop.f32.mrf.mxu0
        %v1336 = vadd.f32 0.0, %v1335
        %v1337 = vpop.f32.mrf.mxu0
        %v1338 = vadd.f32 0.0, %v1337
        %v1339 = vpop.f32.mrf.mxu0
        %v1340 = vadd.f32 0.0, %v1339
        %1341 = vmatprep.mubr.bf16.mxu0 0
        %1342 = vmatmul.mubr.bf16.gmra.mxu0 %v687
        %v1343 = vpop.f32.mrf.mxu0
        %v1344 = vadd.f32 0.0, %v1343
        %v1345 = vpop.f32.mrf.mxu0
        %v1346 = vadd.f32 0.0, %v1345
        %v1347 = vpop.f32.mrf.mxu0
        %v1348 = vadd.f32 0.0, %v1347
        %v1349 = vpop.f32.mrf.mxu0
        %v1350 = vadd.f32 0.0, %v1349
        %1351 = vmatprep.mubr.bf16.mxu0 0
        %1352 = vmatmul.mubr.bf16.gmra.mxu0 %v690
        %v1353 = vpop.f32.mrf.mxu0
        %v1354 = vadd.f32 0.0, %v1353
        %v1355 = vpop.f32.mrf.mxu0
        %v1356 = vadd.f32 0.0, %v1355
        %v1357 = vpop.f32.mrf.mxu0
        %v1358 = vadd.f32 0.0, %v1357
        %v1359 = vpop.f32.mrf.mxu0
        %v1360 = vadd.f32 0.0, %v1359
        %1361 = vmatprep.mubr.bf16.mxu0 0
        %1362 = vmatmul.mubr.bf16.gmra.mxu0 %v693
        %v1363 = vpop.f32.mrf.mxu0
        %v1364 = vadd.f32 0.0, %v1363
        %v1365 = vpop.f32.mrf.mxu0
        %v1366 = vadd.f32 0.0, %v1365
        %v1367 = vpop.f32.mrf.mxu0
        %v1368 = vadd.f32 0.0, %v1367
        %v1369 = vpop.f32.mrf.mxu0
        %v1370 = vadd.f32 0.0, %v1369
        %1371 = vmatprep.mubr.bf16.mxu0 0
        %1372 = vmatmul.mubr.bf16.gmra.mxu0 %v696
        %v1373 = vpop.f32.mrf.mxu0
        %v1374 = vadd.f32 0.0, %v1373
        %v1375 = vpop.f32.mrf.mxu0
        %v1376 = vadd.f32 0.0, %v1375
        %v1377 = vpop.f32.mrf.mxu0
        %v1378 = vadd.f32 0.0, %v1377
        %v1379 = vpop.f32.mrf.mxu0
        %v1380 = vadd.f32 0.0, %v1379
        %1381 = vmatprep.mubr.bf16.mxu0 0
        %1382 = vmatmul.mubr.bf16.gmra.mxu0 %v699
        %v1383 = vpop.f32.mrf.mxu0
        %v1384 = vadd.f32 0.0, %v1383
        %v1385 = vpop.f32.mrf.mxu0
        %v1386 = vadd.f32 0.0, %v1385
        %v1387 = vpop.f32.mrf.mxu0
        %v1388 = vadd.f32 0.0, %v1387
        %v1389 = vpop.f32.mrf.mxu0
        %v1390 = vadd.f32 0.0, %v1389
        %1391 = vdwg.mxu0
        %v1392 = vpack.c.bf16 %v1011, %v1008
        %v1393 = vpack.c.bf16 %v1019, %v1016
        %v1394 = vpack.c.bf16 %v1027, %v1024
        %v1395 = vpack.c.bf16 %v1035, %v1032
        %v1396 = vpack.c.bf16 %v1043, %v1040
        %v1397 = vpack.c.bf16 %v1051, %v1048
        %v1398 = vpack.c.bf16 %v1059, %v1056
        %v1399 = vpack.c.bf16 %v1067, %v1064
        %v1400 = vld [vmem:[%s6] sm:$0xf]
        %v1401 = vld [vmem:[%s6 + $0x4] sm:$0xf]
        %v1402 = vld [vmem:[%s6 + $0x8] sm:$0xf]
        %v1403 = vld [vmem:[%s6 + $0xc] sm:$0xf]
        %v1404 = vld [vmem:[%s6 + $0x10] sm:$0xf]
        %v1405 = vld [vmem:[%s6 + $0x14] sm:$0xf]
        %v1406 = vld [vmem:[%s6 + $0x18] sm:$0xf]
        %v1407 = vld [vmem:[%s6 + $0x1c] sm:$0xf]
        %v1408 = vld [vmem:[%s6 + $0x20] sm:$0xf]
        %v1409 = vld [vmem:[%s6 + $0x24] sm:$0xf]
        %v1410 = vld [vmem:[%s6 + $0x28] sm:$0xf]
        %v1411 = vld [vmem:[%s6 + $0x2c] sm:$0xf]
        %v1412 = vld [vmem:[%s6 + $0x30] sm:$0xf]
        %v1413 = vld [vmem:[%s6 + $0x34] sm:$0xf]
        %v1414 = vld [vmem:[%s6 + $0x38] sm:$0xf]
        %v1415 = vld [vmem:[%s6 + $0x3c] sm:$0xf]
        %v1432 = vunpack.c.l.b16 %v1400
        %v1433 = vunpack.c.l.b16 %v1401
        %v1434 = vunpack.c.l.b16 %v1402
        %v1435 = vunpack.c.l.b16 %v1403
        %v1436 = vunpack.c.l.b16 %v1404
        %v1437 = vunpack.c.l.b16 %v1405
        %v1438 = vunpack.c.l.b16 %v1406
        %v1439 = vunpack.c.l.b16 %v1407
        %v1440 = vunpack.c.l.b16 %v1408
        %v1441 = vunpack.c.l.b16 %v1409
        %v1442 = vunpack.c.l.b16 %v1410
        %v1443 = vunpack.c.l.b16 %v1411
        %v1444 = vunpack.c.l.b16 %v1412
        %v1445 = vunpack.c.l.b16 %v1413
        %v1446 = vunpack.c.l.b16 %v1414
        %v1447 = vunpack.c.l.b16 %v1415
        %v1448 = vpack.c.b16 %v1433, %v1432
        %v1449 = vpack.c.b16 %v1435, %v1434
        %v1450 = vpack.c.b16 %v1437, %v1436
        %v1451 = vpack.c.b16 %v1439, %v1438
        %v1452 = vpack.c.b16 %v1441, %v1440
        %v1453 = vpack.c.b16 %v1443, %v1442
        %v1454 = vpack.c.b16 %v1445, %v1444
        %v1455 = vpack.c.b16 %v1447, %v1446
        %1464 = vmatprep.subr.bf16.mxu0 0
        %1465 = vmatpush1.bf16.msra.mxu0 %v1455
        %1466 = vmatprep.subr.bf16.mxu0 0
        %1467 = vmatpush1.bf16.msra.mxu0 %v1454
        %1468 = vmatprep.subr.bf16.mxu0 0
        %1469 = vmatpush1.bf16.msra.mxu0 %v1453
        %1470 = vmatprep.subr.bf16.mxu0 0
        %1471 = vmatpush1.bf16.msra.mxu0 %v1452
        %1472 = vmatprep.subr.bf16.mxu0 0
        %1473 = vmatpush1.bf16.msra.mxu0 %v1451
        %1474 = vmatprep.subr.bf16.mxu0 0
        %1475 = vmatpush1.bf16.msra.mxu0 %v1450
        %1476 = vmatprep.subr.bf16.mxu0 0
        %1477 = vmatpush1.bf16.msra.mxu0 %v1449
        %1478 = vmatprep.subr.bf16.mxu0 0
        %1479 = vmatpush1.bf16.msra.mxu0 %v1448
        %1480 = vmatprep.subr.bf16.mxu0 0
        %1481 = vmatpush2.bf16.msra.mxu0 0
        %1482 = vmatprep.subr.bf16.mxu0 0
        %1483 = vmatpush2.bf16.msra.mxu0 0
        %1484 = vmatprep.subr.bf16.mxu0 0
        %1485 = vmatpush2.bf16.msra.mxu0 0
        %1486 = vmatprep.subr.bf16.mxu0 0
        %1487 = vmatpush2.bf16.msra.mxu0 0
        %1488 = vmatprep.subr.bf16.mxu0 0
        %1489 = vmatpush2.bf16.msra.mxu0 0
        %1490 = vmatprep.subr.bf16.mxu0 0
        %1491 = vmatpush2.bf16.msra.mxu0 0
        %1492 = vmatprep.subr.bf16.mxu0 0
        %1493 = vmatpush2.bf16.msra.mxu0 0
        %1494 = vmatprep.subr.bf16.mxu0 0
        %1495 = vmatpush2.bf16.msra.mxu0 0
        %1496 = vmatprep.mubr.bf16.mxu0 0
        %1497 = vmatmul.mubr.bf16.gmra.mxu0 %v1392
        %v1498 = vpop.f32.mrf.mxu0
        %v1499 = vadd.f32 %v1201, %v1498
        %v1500 = vpop.f32.mrf.mxu0
        %v1501 = vpop.f32.mrf.mxu0
        %v1502 = vadd.f32 %v1205, %v1501
        %v1503 = vpop.f32.mrf.mxu0
        %1504 = vmatprep.mubr.bf16.mxu0 0
        %1505 = vmatmul.mubr.bf16.gmra.mxu0 %v1393
        %v1506 = vpop.f32.mrf.mxu0
        %v1507 = vadd.f32 %v1211, %v1506
        %v1508 = vpop.f32.mrf.mxu0
        %v1509 = vpop.f32.mrf.mxu0
        %v1510 = vadd.f32 %v1215, %v1509
        %v1511 = vpop.f32.mrf.mxu0
        %1512 = vmatprep.mubr.bf16.mxu0 0
        %1513 = vmatmul.mubr.bf16.gmra.mxu0 %v1394
        %v1514 = vpop.f32.mrf.mxu0
        %v1515 = vadd.f32 %v1221, %v1514
        %v1516 = vpop.f32.mrf.mxu0
        %v1517 = vpop.f32.mrf.mxu0
        %v1518 = vadd.f32 %v1225, %v1517
        %v1519 = vpop.f32.mrf.mxu0
        %1520 = vmatprep.mubr.bf16.mxu0 0
        %1521 = vmatmul.mubr.bf16.gmra.mxu0 %v1395
        %v1522 = vpop.f32.mrf.mxu0
        %v1523 = vadd.f32 %v1231, %v1522
        %v1524 = vpop.f32.mrf.mxu0
        %v1525 = vpop.f32.mrf.mxu0
        %v1526 = vadd.f32 %v1235, %v1525
        %v1527 = vpop.f32.mrf.mxu0
        %1528 = vmatprep.mubr.bf16.mxu0 0
        %1529 = vmatmul.mubr.bf16.gmra.mxu0 %v1396
        %v1530 = vpop.f32.mrf.mxu0
        %v1531 = vadd.f32 %v1241, %v1530
        %v1532 = vpop.f32.mrf.mxu0
        %v1533 = vpop.f32.mrf.mxu0
        %v1534 = vadd.f32 %v1245, %v1533
        %v1535 = vpop.f32.mrf.mxu0
        %1536 = vmatprep.mubr.bf16.mxu0 0
        %1537 = vmatmul.mubr.bf16.gmra.mxu0 %v1397
        %v1538 = vpop.f32.mrf.mxu0
        %v1539 = vadd.f32 %v1251, %v1538
        %v1540 = vpop.f32.mrf.mxu0
        %v1541 = vpop.f32.mrf.mxu0
        %v1542 = vadd.f32 %v1255, %v1541
        %v1543 = vpop.f32.mrf.mxu0
        %1544 = vmatprep.mubr.bf16.mxu0 0
        %1545 = vmatmul.mubr.bf16.gmra.mxu0 %v1398
        %v1546 = vpop.f32.mrf.mxu0
        %v1547 = vadd.f32 %v1261, %v1546
        %v1548 = vpop.f32.mrf.mxu0
        %v1549 = vpop.f32.mrf.mxu0
        %v1550 = vadd.f32 %v1265, %v1549
        %v1551 = vpop.f32.mrf.mxu0
        %1552 = vmatprep.mubr.bf16.mxu0 0
        %1553 = vmatmul.mubr.bf16.gmra.mxu0 %v1399
        %v1554 = vpop.f32.mrf.mxu0
        %v1555 = vadd.f32 %v1271, %v1554
        %v1556 = vpop.f32.mrf.mxu0
        %v1557 = vpop.f32.mrf.mxu0
        %v1558 = vadd.f32 %v1275, %v1557
        %v1559 = vpop.f32.mrf.mxu0
        %1560 = vdwg.mxu0
        %v1561 = vld [vmem:[%s7] sm:$0x1]
        %v1563 = vlaneseq
        %v1564 = vshrl.u32 %v1563, 7
        %v1565 = vsub.s32 0, %v1564
        %v1566 = vrot.slane %v1561, %v1565
        %v1568 = vadd.f32 %v1499, %v1566
        %v1569 = vadd.f32 %v1502, %v1566
        %v1570 = vadd.f32 %v1507, %v1566
        %v1571 = vadd.f32 %v1510, %v1566
        %v1572 = vadd.f32 %v1515, %v1566
        %v1573 = vadd.f32 %v1518, %v1566
        %v1574 = vadd.f32 %v1523, %v1566
        %v1575 = vadd.f32 %v1526, %v1566
        %v1576 = vadd.f32 %v1531, %v1566
        %v1577 = vadd.f32 %v1534, %v1566
        %v1578 = vadd.f32 %v1539, %v1566
        %v1579 = vadd.f32 %v1542, %v1566
        %v1580 = vadd.f32 %v1547, %v1566
        %v1581 = vadd.f32 %v1550, %v1566
        %v1582 = vadd.f32 %v1555, %v1566
        %v1583 = vadd.f32 %v1558, %v1566
        %v1584 = vtanh.pop %v1568
        %v1585 = vtanh.pop %v1569
        %v1586 = vtanh.pop %v1570
        %v1587 = vtanh.pop %v1571
        %v1588 = vtanh.pop %v1572
        %v1589 = vtanh.pop %v1573
        %v1590 = vtanh.pop %v1574
        %v1591 = vtanh.pop %v1575
        %v1592 = vtanh.pop %v1576
        %v1593 = vtanh.pop %v1577
        %v1594 = vtanh.pop %v1578
        %v1595 = vtanh.pop %v1579
        %v1596 = vtanh.pop %v1580
        %v1597 = vtanh.pop %v1581
        %v1598 = vtanh.pop %v1582
        %v1599 = vtanh.pop %v1583
        %v1600 = vpack.c.bf16 %v1585, %v1584
        %v1601 = vpack.c.bf16 %v1587, %v1586
        %v1602 = vpack.c.bf16 %v1589, %v1588
        %v1603 = vpack.c.bf16 %v1591, %v1590
        %v1604 = vpack.c.bf16 %v1593, %v1592
        %v1605 = vpack.c.bf16 %v1595, %v1594
        %v1606 = vpack.c.bf16 %v1597, %v1596
        %v1607 = vpack.c.bf16 %v1599, %v1598
        %v1608 = vld [vmem:[#allocation8] sm:$0xf]
        %v1609 = vld [vmem:[#allocation8 + $0x4] sm:$0xf]
        %v1610 = vld [vmem:[#allocation8 + $0x8] sm:$0xf]
        %v1611 = vld [vmem:[#allocation8 + $0xc] sm:$0xf]
        %v1612 = vld [vmem:[#allocation8 + $0x10] sm:$0xf]
        %v1613 = vld [vmem:[#allocation8 + $0x14] sm:$0xf]
        %v1614 = vld [vmem:[#allocation8 + $0x18] sm:$0xf]
        %v1615 = vld [vmem:[#allocation8 + $0x1c] sm:$0xf]
        %v1616 = vld [vmem:[#allocation8 + $0x20] sm:$0xf]
        %v1617 = vld [vmem:[#allocation8 + $0x24] sm:$0xf]
        %v1618 = vld [vmem:[#allocation8 + $0x28] sm:$0xf]
        %v1619 = vld [vmem:[#allocation8 + $0x2c] sm:$0xf]
        %v1620 = vld [vmem:[#allocation8 + $0x30] sm:$0xf]
        %v1621 = vld [vmem:[#allocation8 + $0x34] sm:$0xf]
        %v1622 = vld [vmem:[#allocation8 + $0x38] sm:$0xf]
        %v1623 = vld [vmem:[#allocation8 + $0x3c] sm:$0xf]
        %v1624 = vld [vmem:[%s9] sm:$0x1]
        %v1626 = vlaneseq
        %v1627 = vshrl.u32 %v1626, 7
        %v1628 = vsub.s32 0, %v1627
        %v1629 = vrot.slane %v1624, %v1628
        %v1647 = vunpack.c.l.b16 %v1608
        %v1648 = vunpack.c.l.b16 %v1609
        %v1649 = vunpack.c.l.b16 %v1610
        %v1650 = vunpack.c.l.b16 %v1611
        %v1651 = vunpack.c.l.b16 %v1612
        %v1652 = vunpack.c.l.b16 %v1613
        %v1653 = vunpack.c.l.b16 %v1614
        %v1654 = vunpack.c.l.b16 %v1615
        %v1655 = vunpack.c.l.b16 %v1616
        %v1656 = vunpack.c.l.b16 %v1617
        %v1657 = vunpack.c.l.b16 %v1618
        %v1658 = vunpack.c.l.b16 %v1619
        %v1659 = vunpack.c.l.b16 %v1620
        %v1660 = vunpack.c.l.b16 %v1621
        %v1661 = vunpack.c.l.b16 %v1622
        %v1662 = vunpack.c.l.b16 %v1623
        %v1663 = vpack.c.b16 %v1648, %v1647
        %v1664 = vpack.c.b16 %v1650, %v1649
        %v1665 = vpack.c.b16 %v1652, %v1651
        %v1666 = vpack.c.b16 %v1654, %v1653
        %v1667 = vpack.c.b16 %v1656, %v1655
        %v1668 = vpack.c.b16 %v1658, %v1657
        %v1669 = vpack.c.b16 %v1660, %v1659
        %v1670 = vpack.c.b16 %v1662, %v1661
        %1679 = vmatprep.subr.bf16.mxu0 0
        %1680 = vmatpush1.bf16.msra.mxu0 %v1670
        %1681 = vmatprep.subr.bf16.mxu0 0
        %1682 = vmatpush1.bf16.msra.mxu0 %v1669
        %1683 = vmatprep.subr.bf16.mxu0 0
        %1684 = vmatpush1.bf16.msra.mxu0 %v1668
        %1685 = vmatprep.subr.bf16.mxu0 0
        %1686 = vmatpush1.bf16.msra.mxu0 %v1667
        %1687 = vmatprep.subr.bf16.mxu0 0
        %1688 = vmatpush1.bf16.msra.mxu0 %v1666
        %1689 = vmatprep.subr.bf16.mxu0 0
        %1690 = vmatpush1.bf16.msra.mxu0 %v1665
        %1691 = vmatprep.subr.bf16.mxu0 0
        %1692 = vmatpush1.bf16.msra.mxu0 %v1664
        %1693 = vmatprep.subr.bf16.mxu0 0
        %1694 = vmatpush1.bf16.msra.mxu0 %v1663
        %1695 = vmatprep.subr.bf16.mxu0 0
        %1696 = vmatpush2.bf16.msra.mxu0 0
        %1697 = vmatprep.subr.bf16.mxu0 0
        %1698 = vmatpush2.bf16.msra.mxu0 0
        %1699 = vmatprep.subr.bf16.mxu0 0
        %1700 = vmatpush2.bf16.msra.mxu0 0
        %1701 = vmatprep.subr.bf16.mxu0 0
        %1702 = vmatpush2.bf16.msra.mxu0 0
        %1703 = vmatprep.subr.bf16.mxu0 0
        %1704 = vmatpush2.bf16.msra.mxu0 0
        %1705 = vmatprep.subr.bf16.mxu0 0
        %1706 = vmatpush2.bf16.msra.mxu0 0
        %1707 = vmatprep.subr.bf16.mxu0 0
        %1708 = vmatpush2.bf16.msra.mxu0 0
        %1709 = vmatprep.subr.bf16.mxu0 0
        %1710 = vmatpush2.bf16.msra.mxu0 0
        %1711 = vmatprep.mubr.bf16.mxu0 0
        %1712 = vmatmul.mubr.bf16.gmra.mxu0 %v1600
        %v1713 = vpop.f32.mrf.mxu0
        %v1714 = vadd.f32 %v1629, %v1713
        %v1715 = vpop.f32.mrf.mxu0
        %v1716 = vpop.f32.mrf.mxu0
        %v1717 = vadd.f32 %v1629, %v1716
        %v1718 = vpop.f32.mrf.mxu0
        %1719 = vmatprep.mubr.bf16.mxu0 0
        %1720 = vmatmul.mubr.bf16.gmra.mxu0 %v1601
        %v1721 = vpop.f32.mrf.mxu0
        %v1722 = vadd.f32 %v1629, %v1721
        %v1723 = vpop.f32.mrf.mxu0
        %v1724 = vpop.f32.mrf.mxu0
        %v1725 = vadd.f32 %v1629, %v1724
        %v1726 = vpop.f32.mrf.mxu0
        %1727 = vmatprep.mubr.bf16.mxu0 0
        %1728 = vmatmul.mubr.bf16.gmra.mxu0 %v1602
        %v1729 = vpop.f32.mrf.mxu0
        %v1730 = vadd.f32 %v1629, %v1729
        %v1731 = vpop.f32.mrf.mxu0
        %v1732 = vpop.f32.mrf.mxu0
        %v1733 = vadd.f32 %v1629, %v1732
        %v1734 = vpop.f32.mrf.mxu0
        %1735 = vmatprep.mubr.bf16.mxu0 0
        %1736 = vmatmul.mubr.bf16.gmra.mxu0 %v1603
        %v1737 = vpop.f32.mrf.mxu0
        %v1738 = vadd.f32 %v1629, %v1737
        %v1739 = vpop.f32.mrf.mxu0
        %v1740 = vpop.f32.mrf.mxu0
        %v1741 = vadd.f32 %v1629, %v1740
        %v1742 = vpop.f32.mrf.mxu0
        %1743 = vmatprep.mubr.bf16.mxu0 0
        %1744 = vmatmul.mubr.bf16.gmra.mxu0 %v1604
        %v1745 = vpop.f32.mrf.mxu0
        %v1746 = vadd.f32 %v1629, %v1745
        %v1747 = vpop.f32.mrf.mxu0
        %v1748 = vpop.f32.mrf.mxu0
        %v1749 = vadd.f32 %v1629, %v1748
        %v1750 = vpop.f32.mrf.mxu0
        %1751 = vmatprep.mubr.bf16.mxu0 0
        %1752 = vmatmul.mubr.bf16.gmra.mxu0 %v1605
        %v1753 = vpop.f32.mrf.mxu0
        %v1754 = vadd.f32 %v1629, %v1753
        %v1755 = vpop.f32.mrf.mxu0
        %v1756 = vpop.f32.mrf.mxu0
        %v1757 = vadd.f32 %v1629, %v1756
        %v1758 = vpop.f32.mrf.mxu0
        %1759 = vmatprep.mubr.bf16.mxu0 0
        %1760 = vmatmul.mubr.bf16.gmra.mxu0 %v1606
        %v1761 = vpop.f32.mrf.mxu0
        %v1762 = vadd.f32 %v1629, %v1761
        %v1763 = vpop.f32.mrf.mxu0
        %v1764 = vpop.f32.mrf.mxu0
        %v1765 = vadd.f32 %v1629, %v1764
        %v1766 = vpop.f32.mrf.mxu0
        %1767 = vmatprep.mubr.bf16.mxu0 0
        %1768 = vmatmul.mubr.bf16.gmra.mxu0 %v1607
        %v1769 = vpop.f32.mrf.mxu0
        %v1770 = vadd.f32 %v1629, %v1769
        %v1771 = vpop.f32.mrf.mxu0
        %v1772 = vpop.f32.mrf.mxu0
        %v1773 = vadd.f32 %v1629, %v1772
        %v1774 = vpop.f32.mrf.mxu0
        %1775 = vdwg.mxu0
        %v1776 = vadd.f32 %v1008, %v1714
        %v1777 = vadd.f32 %v1011, %v1717
        %v1778 = vadd.f32 %v1016, %v1722
        %v1779 = vadd.f32 %v1019, %v1725
        %v1780 = vadd.f32 %v1024, %v1730
        %v1781 = vadd.f32 %v1027, %v1733
        %v1782 = vadd.f32 %v1032, %v1738
        %v1783 = vadd.f32 %v1035, %v1741
        %v1784 = vadd.f32 %v1040, %v1746
        %v1785 = vadd.f32 %v1043, %v1749
        %v1786 = vadd.f32 %v1048, %v1754
        %v1787 = vadd.f32 %v1051, %v1757
        %v1788 = vadd.f32 %v1056, %v1762
        %v1789 = vadd.f32 %v1059, %v1765
        %v1790 = vadd.f32 %v1064, %v1770
        %v1791 = vadd.f32 %v1067, %v1773
        %v1792 = vpack.c.bf16 %v1777, %v1776
        %v1793 = vpack.c.bf16 %v1779, %v1778
        %v1794 = vpack.c.bf16 %v1781, %v1780
        %v1795 = vpack.c.bf16 %v1783, %v1782
        %v1796 = vpack.c.bf16 %v1785, %v1784
        %v1797 = vpack.c.bf16 %v1787, %v1786
        %v1798 = vpack.c.bf16 %v1789, %v1788
        %v1799 = vpack.c.bf16 %v1791, %v1790
        %s1800 = scalar_lea.vmem %s6, 64
        %v1801 = vld [vmem:[%s1800] sm:$0xf]
        %v1802 = vld [vmem:[%s1800 + $0x4] sm:$0xf]
        %v1803 = vld [vmem:[%s1800 + $0x8] sm:$0xf]
        %v1804 = vld [vmem:[%s1800 + $0xc] sm:$0xf]
        %v1805 = vld [vmem:[%s1800 + $0x10] sm:$0xf]
        %v1806 = vld [vmem:[%s1800 + $0x14] sm:$0xf]
        %v1807 = vld [vmem:[%s1800 + $0x18] sm:$0xf]
        %v1808 = vld [vmem:[%s1800 + $0x1c] sm:$0xf]
        %v1809 = vld [vmem:[%s1800 + $0x20] sm:$0xf]
        %v1810 = vld [vmem:[%s1800 + $0x24] sm:$0xf]
        %v1811 = vld [vmem:[%s1800 + $0x28] sm:$0xf]
        %v1812 = vld [vmem:[%s1800 + $0x2c] sm:$0xf]
        %v1813 = vld [vmem:[%s1800 + $0x30] sm:$0xf]
        %v1814 = vld [vmem:[%s1800 + $0x34] sm:$0xf]
        %v1815 = vld [vmem:[%s1800 + $0x38] sm:$0xf]
        %v1816 = vld [vmem:[%s1800 + $0x3c] sm:$0xf]
        %v1833 = vunpack.c.l.b16 %v1801
        %v1834 = vunpack.c.l.b16 %v1802
        %v1835 = vunpack.c.l.b16 %v1803
        %v1836 = vunpack.c.l.b16 %v1804
        %v1837 = vunpack.c.l.b16 %v1805
        %v1838 = vunpack.c.l.b16 %v1806
        %v1839 = vunpack.c.l.b16 %v1807
        %v1840 = vunpack.c.l.b16 %v1808
        %v1841 = vunpack.c.l.b16 %v1809
        %v1842 = vunpack.c.l.b16 %v1810
        %v1843 = vunpack.c.l.b16 %v1811
        %v1844 = vunpack.c.l.b16 %v1812
        %v1845 = vunpack.c.l.b16 %v1813
        %v1846 = vunpack.c.l.b16 %v1814
        %v1847 = vunpack.c.l.b16 %v1815
        %v1848 = vunpack.c.l.b16 %v1816
        %v1849 = vpack.c.b16 %v1834, %v1833
        %v1850 = vpack.c.b16 %v1836, %v1835
        %v1851 = vpack.c.b16 %v1838, %v1837
        %v1852 = vpack.c.b16 %v1840, %v1839
        %v1853 = vpack.c.b16 %v1842, %v1841
        %v1854 = vpack.c.b16 %v1844, %v1843
        %v1855 = vpack.c.b16 %v1846, %v1845
        %v1856 = vpack.c.b16 %v1848, %v1847
        %1865 = vmatprep.subr.bf16.mxu0 0
        %1866 = vmatpush1.bf16.msra.mxu0 %v1856
        %1867 = vmatprep.subr.bf16.mxu0 0
        %1868 = vmatpush1.bf16.msra.mxu0 %v1855
        %1869 = vmatprep.subr.bf16.mxu0 0
        %1870 = vmatpush1.bf16.msra.mxu0 %v1854
        %1871 = vmatprep.subr.bf16.mxu0 0
        %1872 = vmatpush1.bf16.msra.mxu0 %v1853
        %1873 = vmatprep.subr.bf16.mxu0 0
        %1874 = vmatpush1.bf16.msra.mxu0 %v1852
        %1875 = vmatprep.subr.bf16.mxu0 0
        %1876 = vmatpush1.bf16.msra.mxu0 %v1851
        %1877 = vmatprep.subr.bf16.mxu0 0
        %1878 = vmatpush1.bf16.msra.mxu0 %v1850
        %1879 = vmatprep.subr.bf16.mxu0 0
        %1880 = vmatpush1.bf16.msra.mxu0 %v1849
        %1881 = vmatprep.subr.bf16.mxu0 0
        %1882 = vmatpush2.bf16.msra.mxu0 0
        %1883 = vmatprep.subr.bf16.mxu0 0
        %1884 = vmatpush2.bf16.msra.mxu0 0
        %1885 = vmatprep.subr.bf16.mxu0 0
        %1886 = vmatpush2.bf16.msra.mxu0 0
        %1887 = vmatprep.subr.bf16.mxu0 0
        %1888 = vmatpush2.bf16.msra.mxu0 0
        %1889 = vmatprep.subr.bf16.mxu0 0
        %1890 = vmatpush2.bf16.msra.mxu0 0
        %1891 = vmatprep.subr.bf16.mxu0 0
        %1892 = vmatpush2.bf16.msra.mxu0 0
        %1893 = vmatprep.subr.bf16.mxu0 0
        %1894 = vmatpush2.bf16.msra.mxu0 0
        %1895 = vmatprep.subr.bf16.mxu0 0
        %1896 = vmatpush2.bf16.msra.mxu0 0
        %1897 = vmatprep.mubr.bf16.mxu0 0
        %1898 = vmatmul.mubr.bf16.gmra.mxu0 %v1792
        %v1899 = vpop.f32.mrf.mxu0
        %v1900 = vadd.f32 %v1203, %v1899
        %v1901 = vpop.f32.mrf.mxu0
        %v1902 = vpop.f32.mrf.mxu0
        %v1903 = vadd.f32 %v1207, %v1902
        %v1904 = vpop.f32.mrf.mxu0
        %1905 = vmatprep.mubr.bf16.mxu0 0
        %1906 = vmatmul.mubr.bf16.gmra.mxu0 %v1793
        %v1907 = vpop.f32.mrf.mxu0
        %v1908 = vadd.f32 %v1213, %v1907
        %v1909 = vpop.f32.mrf.mxu0
        %v1910 = vpop.f32.mrf.mxu0
        %v1911 = vadd.f32 %v1217, %v1910
        %v1912 = vpop.f32.mrf.mxu0
        %1913 = vmatprep.mubr.bf16.mxu0 0
        %1914 = vmatmul.mubr.bf16.gmra.mxu0 %v1794
        %v1915 = vpop.f32.mrf.mxu0
        %v1916 = vadd.f32 %v1223, %v1915
        %v1917 = vpop.f32.mrf.mxu0
        %v1918 = vpop.f32.mrf.mxu0
        %v1919 = vadd.f32 %v1227, %v1918
        %v1920 = vpop.f32.mrf.mxu0
        %1921 = vmatprep.mubr.bf16.mxu0 0
        %1922 = vmatmul.mubr.bf16.gmra.mxu0 %v1795
        %v1923 = vpop.f32.mrf.mxu0
        %v1924 = vadd.f32 %v1233, %v1923
        %v1925 = vpop.f32.mrf.mxu0
        %v1926 = vpop.f32.mrf.mxu0
        %v1927 = vadd.f32 %v1237, %v1926
        %v1928 = vpop.f32.mrf.mxu0
        %1929 = vmatprep.mubr.bf16.mxu0 0
        %1930 = vmatmul.mubr.bf16.gmra.mxu0 %v1796
        %v1931 = vpop.f32.mrf.mxu0
        %v1932 = vadd.f32 %v1243, %v1931
        %v1933 = vpop.f32.mrf.mxu0
        %v1934 = vpop.f32.mrf.mxu0
        %v1935 = vadd.f32 %v1247, %v1934
        %v1936 = vpop.f32.mrf.mxu0
        %1937 = vmatprep.mubr.bf16.mxu0 0
        %1938 = vmatmul.mubr.bf16.gmra.mxu0 %v1797
        %v1939 = vpop.f32.mrf.mxu0
        %v1940 = vadd.f32 %v1253, %v1939
        %v1941 = vpop.f32.mrf.mxu0
        %v1942 = vpop.f32.mrf.mxu0
        %v1943 = vadd.f32 %v1257, %v1942
        %v1944 = vpop.f32.mrf.mxu0
        %1945 = vmatprep.mubr.bf16.mxu0 0
        %1946 = vmatmul.mubr.bf16.gmra.mxu0 %v1798
        %v1947 = vpop.f32.mrf.mxu0
        %v1948 = vadd.f32 %v1263, %v1947
        %v1949 = vpop.f32.mrf.mxu0
        %v1950 = vpop.f32.mrf.mxu0
        %v1951 = vadd.f32 %v1267, %v1950
        %v1952 = vpop.f32.mrf.mxu0
        %1953 = vmatprep.mubr.bf16.mxu0 0
        %1954 = vmatmul.mubr.bf16.gmra.mxu0 %v1799
        %v1955 = vpop.f32.mrf.mxu0
        %v1956 = vadd.f32 %v1273, %v1955
        %v1957 = vpop.f32.mrf.mxu0
        %v1958 = vpop.f32.mrf.mxu0
        %v1959 = vadd.f32 %v1277, %v1958
        %v1960 = vpop.f32.mrf.mxu0
        %1961 = vdwg.mxu0
        %s1962 = scalar_lea.vmem %s7, 1
        %v1963 = vld [vmem:[%s1962] sm:$0x1]
        %v1965 = vlaneseq
        %v1966 = vshrl.u32 %v1965, 7
        %v1967 = vsub.s32 0, %v1966
        %v1968 = vrot.slane %v1963, %v1967
        %v1970 = vadd.f32 %v1900, %v1968
        %v1971 = vadd.f32 %v1903, %v1968
        %v1972 = vadd.f32 %v1908, %v1968
        %v1973 = vadd.f32 %v1911, %v1968
        %v1974 = vadd.f32 %v1916, %v1968
        %v1975 = vadd.f32 %v1919, %v1968
        %v1976 = vadd.f32 %v1924, %v1968
        %v1977 = vadd.f32 %v1927, %v1968
        %v1978 = vadd.f32 %v1932, %v1968
        %v1979 = vadd.f32 %v1935, %v1968
        %v1980 = vadd.f32 %v1940, %v1968
        %v1981 = vadd.f32 %v1943, %v1968
        %v1982 = vadd.f32 %v1948, %v1968
        %v1983 = vadd.f32 %v1951, %v1968
        %v1984 = vadd.f32 %v1956, %v1968
        %v1985 = vadd.f32 %v1959, %v1968
        %v1986 = vtanh.pop %v1970
        %v1987 = vtanh.pop %v1971
        %v1988 = vtanh.pop %v1972
        %v1989 = vtanh.pop %v1973
        %v1990 = vtanh.pop %v1974
        %v1991 = vtanh.pop %v1975
        %v1992 = vtanh.pop %v1976
        %v1993 = vtanh.pop %v1977
        %v1994 = vtanh.pop %v1978
        %v1995 = vtanh.pop %v1979
        %v1996 = vtanh.pop %v1980
        %v1997 = vtanh.pop %v1981
        %v1998 = vtanh.pop %v1982
        %v1999 = vtanh.pop %v1983
        %v2000 = vtanh.pop %v1984
        %v2001 = vtanh.pop %v1985
        %v2002 = vpack.c.bf16 %v1987, %v1986
        %v2003 = vpack.c.bf16 %v1989, %v1988
        %v2004 = vpack.c.bf16 %v1991, %v1990
        %v2005 = vpack.c.bf16 %v1993, %v1992
        %v2006 = vpack.c.bf16 %v1995, %v1994
        %v2007 = vpack.c.bf16 %v1997, %v1996
        %v2008 = vpack.c.bf16 %v1999, %v1998
        %v2009 = vpack.c.bf16 %v2001, %v2000
        %s2010 = scalar_lea.vmem [#allocation8], 64
        %v2011 = vld [vmem:[%s2010] sm:$0xf]
        %v2012 = vld [vmem:[%s2010 + $0x4] sm:$0xf]
        %v2013 = vld [vmem:[%s2010 + $0x8] sm:$0xf]
        %v2014 = vld [vmem:[%s2010 + $0xc] sm:$0xf]
        %v2015 = vld [vmem:[%s2010 + $0x10] sm:$0xf]
        %v2016 = vld [vmem:[%s2010 + $0x14] sm:$0xf]
        %v2017 = vld [vmem:[%s2010 + $0x18] sm:$0xf]
        %v2018 = vld [vmem:[%s2010 + $0x1c] sm:$0xf]
        %v2019 = vld [vmem:[%s2010 + $0x20] sm:$0xf]
        %v2020 = vld [vmem:[%s2010 + $0x24] sm:$0xf]
        %v2021 = vld [vmem:[%s2010 + $0x28] sm:$0xf]
        %v2022 = vld [vmem:[%s2010 + $0x2c] sm:$0xf]
        %v2023 = vld [vmem:[%s2010 + $0x30] sm:$0xf]
        %v2024 = vld [vmem:[%s2010 + $0x34] sm:$0xf]
        %v2025 = vld [vmem:[%s2010 + $0x38] sm:$0xf]
        %v2026 = vld [vmem:[%s2010 + $0x3c] sm:$0xf]
        %s2027 = scalar_lea.vmem %s9, 1
        %v2028 = vld [vmem:[%s2027] sm:$0x1]
        %v2030 = vlaneseq
        %v2031 = vshrl.u32 %v2030, 7
        %v2032 = vsub.s32 0, %v2031
        %v2033 = vrot.slane %v2028, %v2032
        %v2051 = vunpack.c.l.b16 %v2011
        %v2052 = vunpack.c.l.b16 %v2012
        %v2053 = vunpack.c.l.b16 %v2013
        %v2054 = vunpack.c.l.b16 %v2014
        %v2055 = vunpack.c.l.b16 %v2015
        %v2056 = vunpack.c.l.b16 %v2016
        %v2057 = vunpack.c.l.b16 %v2017
        %v2058 = vunpack.c.l.b16 %v2018
        %v2059 = vunpack.c.l.b16 %v2019
        %v2060 = vunpack.c.l.b16 %v2020
        %v2061 = vunpack.c.l.b16 %v2021
        %v2062 = vunpack.c.l.b16 %v2022
        %v2063 = vunpack.c.l.b16 %v2023
        %v2064 = vunpack.c.l.b16 %v2024
        %v2065 = vunpack.c.l.b16 %v2025
        %v2066 = vunpack.c.l.b16 %v2026
        %v2067 = vpack.c.b16 %v2052, %v2051
        %v2068 = vpack.c.b16 %v2054, %v2053
        %v2069 = vpack.c.b16 %v2056, %v2055
        %v2070 = vpack.c.b16 %v2058, %v2057
        %v2071 = vpack.c.b16 %v2060, %v2059
        %v2072 = vpack.c.b16 %v2062, %v2061
        %v2073 = vpack.c.b16 %v2064, %v2063
        %v2074 = vpack.c.b16 %v2066, %v2065
        %2083 = vmatprep.subr.bf16.mxu0 0
        %2084 = vmatpush1.bf16.msra.mxu0 %v2074
        %2085 = vmatprep.subr.bf16.mxu0 0
        %2086 = vmatpush1.bf16.msra.mxu0 %v2073
        %2087 = vmatprep.subr.bf16.mxu0 0
        %2088 = vmatpush1.bf16.msra.mxu0 %v2072
        %2089 = vmatprep.subr.bf16.mxu0 0
        %2090 = vmatpush1.bf16.msra.mxu0 %v2071
        %2091 = vmatprep.subr.bf16.mxu0 0
        %2092 = vmatpush1.bf16.msra.mxu0 %v2070
        %2093 = vmatprep.subr.bf16.mxu0 0
        %2094 = vmatpush1.bf16.msra.mxu0 %v2069
        %2095 = vmatprep.subr.bf16.mxu0 0
        %2096 = vmatpush1.bf16.msra.mxu0 %v2068
        %2097 = vmatprep.subr.bf16.mxu0 0
        %2098 = vmatpush1.bf16.msra.mxu0 %v2067
        %2099 = vmatprep.subr.bf16.mxu0 0
        %2100 = vmatpush2.bf16.msra.mxu0 0
        %2101 = vmatprep.subr.bf16.mxu0 0
        %2102 = vmatpush2.bf16.msra.mxu0 0
        %2103 = vmatprep.subr.bf16.mxu0 0
        %2104 = vmatpush2.bf16.msra.mxu0 0
        %2105 = vmatprep.subr.bf16.mxu0 0
        %2106 = vmatpush2.bf16.msra.mxu0 0
        %2107 = vmatprep.subr.bf16.mxu0 0
        %2108 = vmatpush2.bf16.msra.mxu0 0
        %2109 = vmatprep.subr.bf16.mxu0 0
        %2110 = vmatpush2.bf16.msra.mxu0 0
        %2111 = vmatprep.subr.bf16.mxu0 0
        %2112 = vmatpush2.bf16.msra.mxu0 0
        %2113 = vmatprep.subr.bf16.mxu0 0
        %2114 = vmatpush2.bf16.msra.mxu0 0
        %2115 = vmatprep.mubr.bf16.mxu0 0
        %2116 = vmatmul.mubr.bf16.gmra.mxu0 %v2002
        %v2117 = vpop.f32.mrf.mxu0
        %v2118 = vadd.f32 %v2033, %v2117
        %v2119 = vpop.f32.mrf.mxu0
        %v2120 = vpop.f32.mrf.mxu0
        %v2121 = vadd.f32 %v2033, %v2120
        %v2122 = vpop.f32.mrf.mxu0
        %2123 = vmatprep.mubr.bf16.mxu0 0
        %2124 = vmatmul.mubr.bf16.gmra.mxu0 %v2003
        %v2125 = vpop.f32.mrf.mxu0
        %v2126 = vadd.f32 %v2033, %v2125
        %v2127 = vpop.f32.mrf.mxu0
        %v2128 = vpop.f32.mrf.mxu0
        %v2129 = vadd.f32 %v2033, %v2128
        %v2130 = vpop.f32.mrf.mxu0
        %2131 = vmatprep.mubr.bf16.mxu0 0
        %2132 = vmatmul.mubr.bf16.gmra.mxu0 %v2004
        %v2133 = vpop.f32.mrf.mxu0
        %v2134 = vadd.f32 %v2033, %v2133
        %v2135 = vpop.f32.mrf.mxu0
        %v2136 = vpop.f32.mrf.mxu0
        %v2137 = vadd.f32 %v2033, %v2136
        %v2138 = vpop.f32.mrf.mxu0
        %2139 = vmatprep.mubr.bf16.mxu0 0
        %2140 = vmatmul.mubr.bf16.gmra.mxu0 %v2005
        %v2141 = vpop.f32.mrf.mxu0
        %v2142 = vadd.f32 %v2033, %v2141
        %v2143 = vpop.f32.mrf.mxu0
        %v2144 = vpop.f32.mrf.mxu0
        %v2145 = vadd.f32 %v2033, %v2144
        %v2146 = vpop.f32.mrf.mxu0
        %2147 = vmatprep.mubr.bf16.mxu0 0
        %2148 = vmatmul.mubr.bf16.gmra.mxu0 %v2006
        %v2149 = vpop.f32.mrf.mxu0
        %v2150 = vadd.f32 %v2033, %v2149
        %v2151 = vpop.f32.mrf.mxu0
        %v2152 = vpop.f32.mrf.mxu0
        %v2153 = vadd.f32 %v2033, %v2152
        %v2154 = vpop.f32.mrf.mxu0
        %2155 = vmatprep.mubr.bf16.mxu0 0
        %2156 = vmatmul.mubr.bf16.gmra.mxu0 %v2007
        %v2157 = vpop.f32.mrf.mxu0
        %v2158 = vadd.f32 %v2033, %v2157
        %v2159 = vpop.f32.mrf.mxu0
        %v2160 = vpop.f32.mrf.mxu0
        %v2161 = vadd.f32 %v2033, %v2160
        %v2162 = vpop.f32.mrf.mxu0
        %2163 = vmatprep.mubr.bf16.mxu0 0
        %2164 = vmatmul.mubr.bf16.gmra.mxu0 %v2008
        %v2165 = vpop.f32.mrf.mxu0
        %v2166 = vadd.f32 %v2033, %v2165
        %v2167 = vpop.f32.mrf.mxu0
        %v2168 = vpop.f32.mrf.mxu0
        %v2169 = vadd.f32 %v2033, %v2168
        %v2170 = vpop.f32.mrf.mxu0
        %2171 = vmatprep.mubr.bf16.mxu0 0
        %2172 = vmatmul.mubr.bf16.gmra.mxu0 %v2009
        %v2173 = vpop.f32.mrf.mxu0
        %v2174 = vadd.f32 %v2033, %v2173
        %v2175 = vpop.f32.mrf.mxu0
        %v2176 = vpop.f32.mrf.mxu0
        %v2177 = vadd.f32 %v2033, %v2176
        %v2178 = vpop.f32.mrf.mxu0
        %2179 = vdwg.mxu0
        %v2180 = vadd.f32 %v1776, %v2118
        %v2181 = vadd.f32 %v1777, %v2121
        %v2182 = vadd.f32 %v1778, %v2126
        %v2183 = vadd.f32 %v1779, %v2129
        %v2184 = vadd.f32 %v1780, %v2134
        %v2185 = vadd.f32 %v1781, %v2137
        %v2186 = vadd.f32 %v1782, %v2142
        %v2187 = vadd.f32 %v1783, %v2145
        %v2188 = vadd.f32 %v1784, %v2150
        %v2189 = vadd.f32 %v1785, %v2153
        %v2190 = vadd.f32 %v1786, %v2158
        %v2191 = vadd.f32 %v1787, %v2161
        %v2192 = vadd.f32 %v1788, %v2166
        %v2193 = vadd.f32 %v1789, %v2169
        %v2194 = vadd.f32 %v1790, %v2174
        %v2195 = vadd.f32 %v1791, %v2177
        %v2196 = vpack.c.bf16 %v2181, %v2180
        %v2197 = vpack.c.bf16 %v2183, %v2182
        %v2198 = vpack.c.bf16 %v2185, %v2184
        %v2199 = vpack.c.bf16 %v2187, %v2186
        %v2200 = vpack.c.bf16 %v2189, %v2188
        %v2201 = vpack.c.bf16 %v2191, %v2190
        %v2202 = vpack.c.bf16 %v2193, %v2192
        %v2203 = vpack.c.bf16 %v2195, %v2194
        %s2204 = scalar_lea.vmem %s6, 128
        %v2205 = vld [vmem:[%s2204] sm:$0xf]
        %v2206 = vld [vmem:[%s2204 + $0x4] sm:$0xf]
        %v2207 = vld [vmem:[%s2204 + $0x8] sm:$0xf]
        %v2208 = vld [vmem:[%s2204 + $0xc] sm:$0xf]
        %v2209 = vld [vmem:[%s2204 + $0x10] sm:$0xf]
        %v2210 = vld [vmem:[%s2204 + $0x14] sm:$0xf]
        %v2211 = vld [vmem:[%s2204 + $0x18] sm:$0xf]
        %v2212 = vld [vmem:[%s2204 + $0x1c] sm:$0xf]
        %v2213 = vld [vmem:[%s2204 + $0x20] sm:$0xf]
        %v2214 = vld [vmem:[%s2204 + $0x24] sm:$0xf]
        %v2215 = vld [vmem:[%s2204 + $0x28] sm:$0xf]
        %v2216 = vld [vmem:[%s2204 + $0x2c] sm:$0xf]
        %v2217 = vld [vmem:[%s2204 + $0x30] sm:$0xf]
        %v2218 = vld [vmem:[%s2204 + $0x34] sm:$0xf]
        %v2219 = vld [vmem:[%s2204 + $0x38] sm:$0xf]
        %v2220 = vld [vmem:[%s2204 + $0x3c] sm:$0xf]
        %v2237 = vunpack.c.l.b16 %v2205
        %v2238 = vunpack.c.l.b16 %v2206
        %v2239 = vunpack.c.l.b16 %v2207
        %v2240 = vunpack.c.l.b16 %v2208
        %v2241 = vunpack.c.l.b16 %v2209
        %v2242 = vunpack.c.l.b16 %v2210
        %v2243 = vunpack.c.l.b16 %v2211
        %v2244 = vunpack.c.l.b16 %v2212
        %v2245 = vunpack.c.l.b16 %v2213
        %v2246 = vunpack.c.l.b16 %v2214
        %v2247 = vunpack.c.l.b16 %v2215
        %v2248 = vunpack.c.l.b16 %v2216
        %v2249 = vunpack.c.l.b16 %v2217
        %v2250 = vunpack.c.l.b16 %v2218
        %v2251 = vunpack.c.l.b16 %v2219
        %v2252 = vunpack.c.l.b16 %v2220
        %v2253 = vpack.c.b16 %v2238, %v2237
        %v2254 = vpack.c.b16 %v2240, %v2239
        %v2255 = vpack.c.b16 %v2242, %v2241
        %v2256 = vpack.c.b16 %v2244, %v2243
        %v2257 = vpack.c.b16 %v2246, %v2245
        %v2258 = vpack.c.b16 %v2248, %v2247
        %v2259 = vpack.c.b16 %v2250, %v2249
        %v2260 = vpack.c.b16 %v2252, %v2251
        %2269 = vmatprep.subr.bf16.mxu0 0
        %2270 = vmatpush1.bf16.msra.mxu0 %v2260
        %2271 = vmatprep.subr.bf16.mxu0 0
        %2272 = vmatpush1.bf16.msra.mxu0 %v2259
        %2273 = vmatprep.subr.bf16.mxu0 0
        %2274 = vmatpush1.bf16.msra.mxu0 %v2258
        %2275 = vmatprep.subr.bf16.mxu0 0
        %2276 = vmatpush1.bf16.msra.mxu0 %v2257
        %2277 = vmatprep.subr.bf16.mxu0 0
        %2278 = vmatpush1.bf16.msra.mxu0 %v2256
        %2279 = vmatprep.subr.bf16.mxu0 0
        %2280 = vmatpush1.bf16.msra.mxu0 %v2255
        %2281 = vmatprep.subr.bf16.mxu0 0
        %2282 = vmatpush1.bf16.msra.mxu0 %v2254
        %2283 = vmatprep.subr.bf16.mxu0 0
        %2284 = vmatpush1.bf16.msra.mxu0 %v2253
        %2285 = vmatprep.subr.bf16.mxu0 0
        %2286 = vmatpush2.bf16.msra.mxu0 0
        %2287 = vmatprep.subr.bf16.mxu0 0
        %2288 = vmatpush2.bf16.msra.mxu0 0
        %2289 = vmatprep.subr.bf16.mxu0 0
        %2290 = vmatpush2.bf16.msra.mxu0 0
        %2291 = vmatprep.subr.bf16.mxu0 0
        %2292 = vmatpush2.bf16.msra.mxu0 0
        %2293 = vmatprep.subr.bf16.mxu0 0
        %2294 = vmatpush2.bf16.msra.mxu0 0
        %2295 = vmatprep.subr.bf16.mxu0 0
        %2296 = vmatpush2.bf16.msra.mxu0 0
        %2297 = vmatprep.subr.bf16.mxu0 0
        %2298 = vmatpush2.bf16.msra.mxu0 0
        %2299 = vmatprep.subr.bf16.mxu0 0
        %2300 = vmatpush2.bf16.msra.mxu0 0
        %2301 = vmatprep.mubr.bf16.mxu0 0
        %2302 = vmatmul.mubr.bf16.gmra.mxu0 %v2196
        %v2303 = vpop.f32.mrf.mxu0
        %v2304 = vadd.f32 %v1314, %v2303
        %v2305 = vpop.f32.mrf.mxu0
        %v2306 = vpop.f32.mrf.mxu0
        %v2307 = vadd.f32 %v1318, %v2306
        %v2308 = vpop.f32.mrf.mxu0
        %2309 = vmatprep.mubr.bf16.mxu0 0
        %2310 = vmatmul.mubr.bf16.gmra.mxu0 %v2197
        %v2311 = vpop.f32.mrf.mxu0
        %v2312 = vadd.f32 %v1324, %v2311
        %v2313 = vpop.f32.mrf.mxu0
        %v2314 = vpop.f32.mrf.mxu0
        %v2315 = vadd.f32 %v1328, %v2314
        %v2316 = vpop.f32.mrf.mxu0
        %2317 = vmatprep.mubr.bf16.mxu0 0
        %2318 = vmatmul.mubr.bf16.gmra.mxu0 %v2198
        %v2319 = vpop.f32.mrf.mxu0
        %v2320 = vadd.f32 %v1334, %v2319
        %v2321 = vpop.f32.mrf.mxu0
        %v2322 = vpop.f32.mrf.mxu0
        %v2323 = vadd.f32 %v1338, %v2322
        %v2324 = vpop.f32.mrf.mxu0
        %2325 = vmatprep.mubr.bf16.mxu0 0
        %2326 = vmatmul.mubr.bf16.gmra.mxu0 %v2199
        %v2327 = vpop.f32.mrf.mxu0
        %v2328 = vadd.f32 %v1344, %v2327
        %v2329 = vpop.f32.mrf.mxu0
        %v2330 = vpop.f32.mrf.mxu0
        %v2331 = vadd.f32 %v1348, %v2330
        %v2332 = vpop.f32.mrf.mxu0
        %2333 = vmatprep.mubr.bf16.mxu0 0
        %2334 = vmatmul.mubr.bf16.gmra.mxu0 %v2200
        %v2335 = vpop.f32.mrf.mxu0
        %v2336 = vadd.f32 %v1354, %v2335
        %v2337 = vpop.f32.mrf.mxu0
        %v2338 = vpop.f32.mrf.mxu0
        %v2339 = vadd.f32 %v1358, %v2338
        %v2340 = vpop.f32.mrf.mxu0
        %2341 = vmatprep.mubr.bf16.mxu0 0
        %2342 = vmatmul.mubr.bf16.gmra.mxu0 %v2201
        %v2343 = vpop.f32.mrf.mxu0
        %v2344 = vadd.f32 %v1364, %v2343
        %v2345 = vpop.f32.mrf.mxu0
        %v2346 = vpop.f32.mrf.mxu0
        %v2347 = vadd.f32 %v1368, %v2346
        %v2348 = vpop.f32.mrf.mxu0
        %2349 = vmatprep.mubr.bf16.mxu0 0
        %2350 = vmatmul.mubr.bf16.gmra.mxu0 %v2202
        %v2351 = vpop.f32.mrf.mxu0
        %v2352 = vadd.f32 %v1374, %v2351
        %v2353 = vpop.f32.mrf.mxu0
        %v2354 = vpop.f32.mrf.mxu0
        %v2355 = vadd.f32 %v1378, %v2354
        %v2356 = vpop.f32.mrf.mxu0
        %2357 = vmatprep.mubr.bf16.mxu0 0
        %2358 = vmatmul.mubr.bf16.gmra.mxu0 %v2203
        %v2359 = vpop.f32.mrf.mxu0
        %v2360 = vadd.f32 %v1384, %v2359
        %v2361 = vpop.f32.mrf.mxu0
        %v2362 = vpop.f32.mrf.mxu0
        %v2363 = vadd.f32 %v1388, %v2362
        %v2364 = vpop.f32.mrf.mxu0
        %2365 = vdwg.mxu0
        %s2366 = scalar_lea.vmem %s7, 2
        %v2367 = vld [vmem:[%s2366] sm:$0x1]
        %v2369 = vlaneseq
        %v2370 = vshrl.u32 %v2369, 7
        %v2371 = vsub.s32 0, %v2370
        %v2372 = vrot.slane %v2367, %v2371
        %v2374 = vadd.f32 %v2304, %v2372
        %v2375 = vadd.f32 %v2307, %v2372
        %v2376 = vadd.f32 %v2312, %v2372
        %v2377 = vadd.f32 %v2315, %v2372
        %v2378 = vadd.f32 %v2320, %v2372
        %v2379 = vadd.f32 %v2323, %v2372
        %v2380 = vadd.f32 %v2328, %v2372
        %v2381 = vadd.f32 %v2331, %v2372
        %v2382 = vadd.f32 %v2336, %v2372
        %v2383 = vadd.f32 %v2339, %v2372
        %v2384 = vadd.f32 %v2344, %v2372
        %v2385 = vadd.f32 %v2347, %v2372
        %v2386 = vadd.f32 %v2352, %v2372
        %v2387 = vadd.f32 %v2355, %v2372
        %v2388 = vadd.f32 %v2360, %v2372
        %v2389 = vadd.f32 %v2363, %v2372
        %v2390 = vtanh.pop %v2374
        %v2391 = vtanh.pop %v2375
        %v2392 = vtanh.pop %v2376
        %v2393 = vtanh.pop %v2377
        %v2394 = vtanh.pop %v2378
        %v2395 = vtanh.pop %v2379
        %v2396 = vtanh.pop %v2380
        %v2397 = vtanh.pop %v2381
        %v2398 = vtanh.pop %v2382
        %v2399 = vtanh.pop %v2383
        %v2400 = vtanh.pop %v2384
        %v2401 = vtanh.pop %v2385
        %v2402 = vtanh.pop %v2386
        %v2403 = vtanh.pop %v2387
        %v2404 = vtanh.pop %v2388
        %v2405 = vtanh.pop %v2389
        %v2406 = vpack.c.bf16 %v2391, %v2390
        %v2407 = vpack.c.bf16 %v2393, %v2392
        %v2408 = vpack.c.bf16 %v2395, %v2394
        %v2409 = vpack.c.bf16 %v2397, %v2396
        %v2410 = vpack.c.bf16 %v2399, %v2398
        %v2411 = vpack.c.bf16 %v2401, %v2400
        %v2412 = vpack.c.bf16 %v2403, %v2402
        %v2413 = vpack.c.bf16 %v2405, %v2404
        %s2414 = scalar_lea.vmem [#allocation8], 128
        %v2415 = vld [vmem:[%s2414] sm:$0xf]
        %v2416 = vld [vmem:[%s2414 + $0x4] sm:$0xf]
        %v2417 = vld [vmem:[%s2414 + $0x8] sm:$0xf]
        %v2418 = vld [vmem:[%s2414 + $0xc] sm:$0xf]
        %v2419 = vld [vmem:[%s2414 + $0x10] sm:$0xf]
        %v2420 = vld [vmem:[%s2414 + $0x14] sm:$0xf]
        %v2421 = vld [vmem:[%s2414 + $0x18] sm:$0xf]
        %v2422 = vld [vmem:[%s2414 + $0x1c] sm:$0xf]
        %v2423 = vld [vmem:[%s2414 + $0x20] sm:$0xf]
        %v2424 = vld [vmem:[%s2414 + $0x24] sm:$0xf]
        %v2425 = vld [vmem:[%s2414 + $0x28] sm:$0xf]
        %v2426 = vld [vmem:[%s2414 + $0x2c] sm:$0xf]
        %v2427 = vld [vmem:[%s2414 + $0x30] sm:$0xf]
        %v2428 = vld [vmem:[%s2414 + $0x34] sm:$0xf]
        %v2429 = vld [vmem:[%s2414 + $0x38] sm:$0xf]
        %v2430 = vld [vmem:[%s2414 + $0x3c] sm:$0xf]
        %s2431 = scalar_lea.vmem %s9, 2
        %v2432 = vld [vmem:[%s2431] sm:$0x1]
        %v2434 = vlaneseq
        %v2435 = vshrl.u32 %v2434, 7
        %v2436 = vsub.s32 0, %v2435
        %v2437 = vrot.slane %v2432, %v2436
        %v2455 = vunpack.c.l.b16 %v2415
        %v2456 = vunpack.c.l.b16 %v2416
        %v2457 = vunpack.c.l.b16 %v2417
        %v2458 = vunpack.c.l.b16 %v2418
        %v2459 = vunpack.c.l.b16 %v2419
        %v2460 = vunpack.c.l.b16 %v2420
        %v2461 = vunpack.c.l.b16 %v2421
        %v2462 = vunpack.c.l.b16 %v2422
        %v2463 = vunpack.c.l.b16 %v2423
        %v2464 = vunpack.c.l.b16 %v2424
        %v2465 = vunpack.c.l.b16 %v2425
        %v2466 = vunpack.c.l.b16 %v2426
        %v2467 = vunpack.c.l.b16 %v2427
        %v2468 = vunpack.c.l.b16 %v2428
        %v2469 = vunpack.c.l.b16 %v2429
        %v2470 = vunpack.c.l.b16 %v2430
        %v2471 = vpack.c.b16 %v2456, %v2455
        %v2472 = vpack.c.b16 %v2458, %v2457
        %v2473 = vpack.c.b16 %v2460, %v2459
        %v2474 = vpack.c.b16 %v2462, %v2461
        %v2475 = vpack.c.b16 %v2464, %v2463
        %v2476 = vpack.c.b16 %v2466, %v2465
        %v2477 = vpack.c.b16 %v2468, %v2467
        %v2478 = vpack.c.b16 %v2470, %v2469
        %2487 = vmatprep.subr.bf16.mxu0 0
        %2488 = vmatpush1.bf16.msra.mxu0 %v2478
        %2489 = vmatprep.subr.bf16.mxu0 0
        %2490 = vmatpush1.bf16.msra.mxu0 %v2477
        %2491 = vmatprep.subr.bf16.mxu0 0
        %2492 = vmatpush1.bf16.msra.mxu0 %v2476
        %2493 = vmatprep.subr.bf16.mxu0 0
        %2494 = vmatpush1.bf16.msra.mxu0 %v2475
        %2495 = vmatprep.subr.bf16.mxu0 0
        %2496 = vmatpush1.bf16.msra.mxu0 %v2474
        %2497 = vmatprep.subr.bf16.mxu0 0
        %2498 = vmatpush1.bf16.msra.mxu0 %v2473
        %2499 = vmatprep.subr.bf16.mxu0 0
        %2500 = vmatpush1.bf16.msra.mxu0 %v2472
        %2501 = vmatprep.subr.bf16.mxu0 0
        %2502 = vmatpush1.bf16.msra.mxu0 %v2471
        %2503 = vmatprep.subr.bf16.mxu0 0
        %2504 = vmatpush2.bf16.msra.mxu0 0
        %2505 = vmatprep.subr.bf16.mxu0 0
        %2506 = vmatpush2.bf16.msra.mxu0 0
        %2507 = vmatprep.subr.bf16.mxu0 0
        %2508 = vmatpush2.bf16.msra.mxu0 0
        %2509 = vmatprep.subr.bf16.mxu0 0
        %2510 = vmatpush2.bf16.msra.mxu0 0
        %2511 = vmatprep.subr.bf16.mxu0 0
        %2512 = vmatpush2.bf16.msra.mxu0 0
        %2513 = vmatprep.subr.bf16.mxu0 0
        %2514 = vmatpush2.bf16.msra.mxu0 0
        %2515 = vmatprep.subr.bf16.mxu0 0
        %2516 = vmatpush2.bf16.msra.mxu0 0
        %2517 = vmatprep.subr.bf16.mxu0 0
        %2518 = vmatpush2.bf16.msra.mxu0 0
        %2519 = vmatprep.mubr.bf16.mxu0 0
        %2520 = vmatmul.mubr.bf16.gmra.mxu0 %v2406
        %v2521 = vpop.f32.mrf.mxu0
        %v2522 = vadd.f32 %v2437, %v2521
        %v2523 = vpop.f32.mrf.mxu0
        %v2524 = vpop.f32.mrf.mxu0
        %v2525 = vadd.f32 %v2437, %v2524
        %v2526 = vpop.f32.mrf.mxu0
        %2527 = vmatprep.mubr.bf16.mxu0 0
        %2528 = vmatmul.mubr.bf16.gmra.mxu0 %v2407
        %v2529 = vpop.f32.mrf.mxu0
        %v2530 = vadd.f32 %v2437, %v2529
        %v2531 = vpop.f32.mrf.mxu0
        %v2532 = vpop.f32.mrf.mxu0
        %v2533 = vadd.f32 %v2437, %v2532
        %v2534 = vpop.f32.mrf.mxu0
        %2535 = vmatprep.mubr.bf16.mxu0 0
        %2536 = vmatmul.mubr.bf16.gmra.mxu0 %v2408
        %v2537 = vpop.f32.mrf.mxu0
        %v2538 = vadd.f32 %v2437, %v2537
        %v2539 = vpop.f32.mrf.mxu0
        %v2540 = vpop.f32.mrf.mxu0
        %v2541 = vadd.f32 %v2437, %v2540
        %v2542 = vpop.f32.mrf.mxu0
        %2543 = vmatprep.mubr.bf16.mxu0 0
        %2544 = vmatmul.mubr.bf16.gmra.mxu0 %v2409
        %v2545 = vpop.f32.mrf.mxu0
        %v2546 = vadd.f32 %v2437, %v2545
        %v2547 = vpop.f32.mrf.mxu0
        %v2548 = vpop.f32.mrf.mxu0
        %v2549 = vadd.f32 %v2437, %v2548
        %v2550 = vpop.f32.mrf.mxu0
        %2551 = vmatprep.mubr.bf16.mxu0 0
        %2552 = vmatmul.mubr.bf16.gmra.mxu0 %v2410
        %v2553 = vpop.f32.mrf.mxu0
        %v2554 = vadd.f32 %v2437, %v2553
        %v2555 = vpop.f32.mrf.mxu0
        %v2556 = vpop.f32.mrf.mxu0
        %v2557 = vadd.f32 %v2437, %v2556
        %v2558 = vpop.f32.mrf.mxu0
        %2559 = vmatprep.mubr.bf16.mxu0 0
        %2560 = vmatmul.mubr.bf16.gmra.mxu0 %v2411
        %v2561 = vpop.f32.mrf.mxu0
        %v2562 = vadd.f32 %v2437, %v2561
        %v2563 = vpop.f32.mrf.mxu0
        %v2564 = vpop.f32.mrf.mxu0
        %v2565 = vadd.f32 %v2437, %v2564
        %v2566 = vpop.f32.mrf.mxu0
        %2567 = vmatprep.mubr.bf16.mxu0 0
        %2568 = vmatmul.mubr.bf16.gmra.mxu0 %v2412
        %v2569 = vpop.f32.mrf.mxu0
        %v2570 = vadd.f32 %v2437, %v2569
        %v2571 = vpop.f32.mrf.mxu0
        %v2572 = vpop.f32.mrf.mxu0
        %v2573 = vadd.f32 %v2437, %v2572
        %v2574 = vpop.f32.mrf.mxu0
        %2575 = vmatprep.mubr.bf16.mxu0 0
        %2576 = vmatmul.mubr.bf16.gmra.mxu0 %v2413
        %v2577 = vpop.f32.mrf.mxu0
        %v2578 = vadd.f32 %v2437, %v2577
        %v2579 = vpop.f32.mrf.mxu0
        %v2580 = vpop.f32.mrf.mxu0
        %v2581 = vadd.f32 %v2437, %v2580
        %v2582 = vpop.f32.mrf.mxu0
        %2583 = vdwg.mxu0
        %v2584 = vadd.f32 %v2180, %v2522
        %v2585 = vadd.f32 %v2181, %v2525
        %v2586 = vadd.f32 %v2182, %v2530
        %v2587 = vadd.f32 %v2183, %v2533
        %v2588 = vadd.f32 %v2184, %v2538
        %v2589 = vadd.f32 %v2185, %v2541
        %v2590 = vadd.f32 %v2186, %v2546
        %v2591 = vadd.f32 %v2187, %v2549
        %v2592 = vadd.f32 %v2188, %v2554
        %v2593 = vadd.f32 %v2189, %v2557
        %v2594 = vadd.f32 %v2190, %v2562
        %v2595 = vadd.f32 %v2191, %v2565
        %v2596 = vadd.f32 %v2192, %v2570
        %v2597 = vadd.f32 %v2193, %v2573
        %v2598 = vadd.f32 %v2194, %v2578
        %v2599 = vadd.f32 %v2195, %v2581
        %v2600 = vpack.c.bf16 %v2585, %v2584
        %v2601 = vpack.c.bf16 %v2587, %v2586
        %v2602 = vpack.c.bf16 %v2589, %v2588
        %v2603 = vpack.c.bf16 %v2591, %v2590
        %v2604 = vpack.c.bf16 %v2593, %v2592
        %v2605 = vpack.c.bf16 %v2595, %v2594
        %v2606 = vpack.c.bf16 %v2597, %v2596
        %v2607 = vpack.c.bf16 %v2599, %v2598
        %s2608 = scalar_lea.vmem %s6, 192
        %v2609 = vld [vmem:[%s2608] sm:$0xf]
        %v2610 = vld [vmem:[%s2608 + $0x4] sm:$0xf]
        %v2611 = vld [vmem:[%s2608 + $0x8] sm:$0xf]
        %v2612 = vld [vmem:[%s2608 + $0xc] sm:$0xf]
        %v2613 = vld [vmem:[%s2608 + $0x10] sm:$0xf]
        %v2614 = vld [vmem:[%s2608 + $0x14] sm:$0xf]
        %v2615 = vld [vmem:[%s2608 + $0x18] sm:$0xf]
        %v2616 = vld [vmem:[%s2608 + $0x1c] sm:$0xf]
        %v2617 = vld [vmem:[%s2608 + $0x20] sm:$0xf]
        %v2618 = vld [vmem:[%s2608 + $0x24] sm:$0xf]
        %v2619 = vld [vmem:[%s2608 + $0x28] sm:$0xf]
        %v2620 = vld [vmem:[%s2608 + $0x2c] sm:$0xf]
        %v2621 = vld [vmem:[%s2608 + $0x30] sm:$0xf]
        %v2622 = vld [vmem:[%s2608 + $0x34] sm:$0xf]
        %v2623 = vld [vmem:[%s2608 + $0x38] sm:$0xf]
        %v2624 = vld [vmem:[%s2608 + $0x3c] sm:$0xf]
        %v2641 = vunpack.c.l.b16 %v2609
        %v2642 = vunpack.c.l.b16 %v2610
        %v2643 = vunpack.c.l.b16 %v2611
        %v2644 = vunpack.c.l.b16 %v2612
        %v2645 = vunpack.c.l.b16 %v2613
        %v2646 = vunpack.c.l.b16 %v2614
        %v2647 = vunpack.c.l.b16 %v2615
        %v2648 = vunpack.c.l.b16 %v2616
        %v2649 = vunpack.c.l.b16 %v2617
        %v2650 = vunpack.c.l.b16 %v2618
        %v2651 = vunpack.c.l.b16 %v2619
        %v2652 = vunpack.c.l.b16 %v2620
        %v2653 = vunpack.c.l.b16 %v2621
        %v2654 = vunpack.c.l.b16 %v2622
        %v2655 = vunpack.c.l.b16 %v2623
        %v2656 = vunpack.c.l.b16 %v2624
        %v2657 = vpack.c.b16 %v2642, %v2641
        %v2658 = vpack.c.b16 %v2644, %v2643
        %v2659 = vpack.c.b16 %v2646, %v2645
        %v2660 = vpack.c.b16 %v2648, %v2647
        %v2661 = vpack.c.b16 %v2650, %v2649
        %v2662 = vpack.c.b16 %v2652, %v2651
        %v2663 = vpack.c.b16 %v2654, %v2653
        %v2664 = vpack.c.b16 %v2656, %v2655
        %2673 = vmatprep.subr.bf16.mxu0 0
        %2674 = vmatpush1.bf16.msra.mxu0 %v2664
        %2675 = vmatprep.subr.bf16.mxu0 0
        %2676 = vmatpush1.bf16.msra.mxu0 %v2663
        %2677 = vmatprep.subr.bf16.mxu0 0
        %2678 = vmatpush1.bf16.msra.mxu0 %v2662
        %2679 = vmatprep.subr.bf16.mxu0 0
        %2680 = vmatpush1.bf16.msra.mxu0 %v2661
        %2681 = vmatprep.subr.bf16.mxu0 0
        %2682 = vmatpush1.bf16.msra.mxu0 %v2660
        %2683 = vmatprep.subr.bf16.mxu0 0
        %2684 = vmatpush1.bf16.msra.mxu0 %v2659
        %2685 = vmatprep.subr.bf16.mxu0 0
        %2686 = vmatpush1.bf16.msra.mxu0 %v2658
        %2687 = vmatprep.subr.bf16.mxu0 0
        %2688 = vmatpush1.bf16.msra.mxu0 %v2657
        %2689 = vmatprep.subr.bf16.mxu0 0
        %2690 = vmatpush2.bf16.msra.mxu0 0
        %2691 = vmatprep.subr.bf16.mxu0 0
        %2692 = vmatpush2.bf16.msra.mxu0 0
        %2693 = vmatprep.subr.bf16.mxu0 0
        %2694 = vmatpush2.bf16.msra.mxu0 0
        %2695 = vmatprep.subr.bf16.mxu0 0
        %2696 = vmatpush2.bf16.msra.mxu0 0
        %2697 = vmatprep.subr.bf16.mxu0 0
        %2698 = vmatpush2.bf16.msra.mxu0 0
        %2699 = vmatprep.subr.bf16.mxu0 0
        %2700 = vmatpush2.bf16.msra.mxu0 0
        %2701 = vmatprep.subr.bf16.mxu0 0
        %2702 = vmatpush2.bf16.msra.mxu0 0
        %2703 = vmatprep.subr.bf16.mxu0 0
        %2704 = vmatpush2.bf16.msra.mxu0 0
        %2705 = vmatprep.mubr.bf16.mxu0 0
        %2706 = vmatmul.mubr.bf16.gmra.mxu0 %v2600
        %v2707 = vpop.f32.mrf.mxu0
        %v2708 = vadd.f32 %v1316, %v2707
        %v2709 = vpop.f32.mrf.mxu0
        %v2710 = vpop.f32.mrf.mxu0
        %v2711 = vadd.f32 %v1320, %v2710
        %v2712 = vpop.f32.mrf.mxu0
        %2713 = vmatprep.mubr.bf16.mxu0 0
        %2714 = vmatmul.mubr.bf16.gmra.mxu0 %v2601
        %v2715 = vpop.f32.mrf.mxu0
        %v2716 = vadd.f32 %v1326, %v2715
        %v2717 = vpop.f32.mrf.mxu0
        %v2718 = vpop.f32.mrf.mxu0
        %v2719 = vadd.f32 %v1330, %v2718
        %v2720 = vpop.f32.mrf.mxu0
        %2721 = vmatprep.mubr.bf16.mxu0 0
        %2722 = vmatmul.mubr.bf16.gmra.mxu0 %v2602
        %v2723 = vpop.f32.mrf.mxu0
        %v2724 = vadd.f32 %v1336, %v2723
        %v2725 = vpop.f32.mrf.mxu0
        %v2726 = vpop.f32.mrf.mxu0
        %v2727 = vadd.f32 %v1340, %v2726
        %v2728 = vpop.f32.mrf.mxu0
        %2729 = vmatprep.mubr.bf16.mxu0 0
        %2730 = vmatmul.mubr.bf16.gmra.mxu0 %v2603
        %v2731 = vpop.f32.mrf.mxu0
        %v2732 = vadd.f32 %v1346, %v2731
        %v2733 = vpop.f32.mrf.mxu0
        %v2734 = vpop.f32.mrf.mxu0
        %v2735 = vadd.f32 %v1350, %v2734
        %v2736 = vpop.f32.mrf.mxu0
        %2737 = vmatprep.mubr.bf16.mxu0 0
        %2738 = vmatmul.mubr.bf16.gmra.mxu0 %v2604
        %v2739 = vpop.f32.mrf.mxu0
        %v2740 = vadd.f32 %v1356, %v2739
        %v2741 = vpop.f32.mrf.mxu0
        %v2742 = vpop.f32.mrf.mxu0
        %v2743 = vadd.f32 %v1360, %v2742
        %v2744 = vpop.f32.mrf.mxu0
        %2745 = vmatprep.mubr.bf16.mxu0 0
        %2746 = vmatmul.mubr.bf16.gmra.mxu0 %v2605
        %v2747 = vpop.f32.mrf.mxu0
        %v2748 = vadd.f32 %v1366, %v2747
        %v2749 = vpop.f32.mrf.mxu0
        %v2750 = vpop.f32.mrf.mxu0
        %v2751 = vadd.f32 %v1370, %v2750
        %v2752 = vpop.f32.mrf.mxu0
        %2753 = vmatprep.mubr.bf16.mxu0 0
        %2754 = vmatmul.mubr.bf16.gmra.mxu0 %v2606
        %v2755 = vpop.f32.mrf.mxu0
        %v2756 = vadd.f32 %v1376, %v2755
        %v2757 = vpop.f32.mrf.mxu0
        %v2758 = vpop.f32.mrf.mxu0
        %v2759 = vadd.f32 %v1380, %v2758
        %v2760 = vpop.f32.mrf.mxu0
        %2761 = vmatprep.mubr.bf16.mxu0 0
        %2762 = vmatmul.mubr.bf16.gmra.mxu0 %v2607
        %v2763 = vpop.f32.mrf.mxu0
        %v2764 = vadd.f32 %v1386, %v2763
        %v2765 = vpop.f32.mrf.mxu0
        %v2766 = vpop.f32.mrf.mxu0
        %v2767 = vadd.f32 %v1390, %v2766
        %v2768 = vpop.f32.mrf.mxu0
        %2769 = vdwg.mxu0
        %s2770 = scalar_lea.vmem %s7, 3
        %v2771 = vld [vmem:[%s2770] sm:$0x1]
        %v2773 = vlaneseq
        %v2774 = vshrl.u32 %v2773, 7
        %v2775 = vsub.s32 0, %v2774
        %v2776 = vrot.slane %v2771, %v2775
        %v2778 = vadd.f32 %v2708, %v2776
        %v2779 = vadd.f32 %v2711, %v2776
        %v2780 = vadd.f32 %v2716, %v2776
        %v2781 = vadd.f32 %v2719, %v2776
        %v2782 = vadd.f32 %v2724, %v2776
        %v2783 = vadd.f32 %v2727, %v2776
        %v2784 = vadd.f32 %v2732, %v2776
        %v2785 = vadd.f32 %v2735, %v2776
        %v2786 = vadd.f32 %v2740, %v2776
        %v2787 = vadd.f32 %v2743, %v2776
        %v2788 = vadd.f32 %v2748, %v2776
        %v2789 = vadd.f32 %v2751, %v2776
        %v2790 = vadd.f32 %v2756, %v2776
        %v2791 = vadd.f32 %v2759, %v2776
        %v2792 = vadd.f32 %v2764, %v2776
        %v2793 = vadd.f32 %v2767, %v2776
        %v2794 = vtanh.pop %v2778
        %v2795 = vtanh.pop %v2779
        %v2796 = vtanh.pop %v2780
        %v2797 = vtanh.pop %v2781
        %v2798 = vtanh.pop %v2782
        %v2799 = vtanh.pop %v2783
        %v2800 = vtanh.pop %v2784
        %v2801 = vtanh.pop %v2785
        %v2802 = vtanh.pop %v2786
        %v2803 = vtanh.pop %v2787
        %v2804 = vtanh.pop %v2788
        %v2805 = vtanh.pop %v2789
        %v2806 = vtanh.pop %v2790
        %v2807 = vtanh.pop %v2791
        %v2808 = vtanh.pop %v2792
        %v2809 = vtanh.pop %v2793
        %v2810 = vpack.c.bf16 %v2795, %v2794
        %v2811 = vpack.c.bf16 %v2797, %v2796
        %v2812 = vpack.c.bf16 %v2799, %v2798
        %v2813 = vpack.c.bf16 %v2801, %v2800
        %v2814 = vpack.c.bf16 %v2803, %v2802
        %v2815 = vpack.c.bf16 %v2805, %v2804
        %v2816 = vpack.c.bf16 %v2807, %v2806
        %v2817 = vpack.c.bf16 %v2809, %v2808
        %s2818 = scalar_lea.vmem [#allocation8], 192
        %v2819 = vld [vmem:[%s2818] sm:$0xf]
        %v2820 = vld [vmem:[%s2818 + $0x4] sm:$0xf]
        %v2821 = vld [vmem:[%s2818 + $0x8] sm:$0xf]
        %v2822 = vld [vmem:[%s2818 + $0xc] sm:$0xf]
        %v2823 = vld [vmem:[%s2818 + $0x10] sm:$0xf]
        %v2824 = vld [vmem:[%s2818 + $0x14] sm:$0xf]
        %v2825 = vld [vmem:[%s2818 + $0x18] sm:$0xf]
        %v2826 = vld [vmem:[%s2818 + $0x1c] sm:$0xf]
        %v2827 = vld [vmem:[%s2818 + $0x20] sm:$0xf]
        %v2828 = vld [vmem:[%s2818 + $0x24] sm:$0xf]
        %v2829 = vld [vmem:[%s2818 + $0x28] sm:$0xf]
        %v2830 = vld [vmem:[%s2818 + $0x2c] sm:$0xf]
        %v2831 = vld [vmem:[%s2818 + $0x30] sm:$0xf]
        %v2832 = vld [vmem:[%s2818 + $0x34] sm:$0xf]
        %v2833 = vld [vmem:[%s2818 + $0x38] sm:$0xf]
        %v2834 = vld [vmem:[%s2818 + $0x3c] sm:$0xf]
        %s2835 = scalar_lea.vmem %s9, 3
        %v2836 = vld [vmem:[%s2835] sm:$0x1]
        %v2838 = vlaneseq
        %v2839 = vshrl.u32 %v2838, 7
        %v2840 = vsub.s32 0, %v2839
        %v2841 = vrot.slane %v2836, %v2840
        %v2859 = vunpack.c.l.b16 %v2819
        %v2860 = vunpack.c.l.b16 %v2820
        %v2861 = vunpack.c.l.b16 %v2821
        %v2862 = vunpack.c.l.b16 %v2822
        %v2863 = vunpack.c.l.b16 %v2823
        %v2864 = vunpack.c.l.b16 %v2824
        %v2865 = vunpack.c.l.b16 %v2825
        %v2866 = vunpack.c.l.b16 %v2826
        %v2867 = vunpack.c.l.b16 %v2827
        %v2868 = vunpack.c.l.b16 %v2828
        %v2869 = vunpack.c.l.b16 %v2829
        %v2870 = vunpack.c.l.b16 %v2830
        %v2871 = vunpack.c.l.b16 %v2831
        %v2872 = vunpack.c.l.b16 %v2832
        %v2873 = vunpack.c.l.b16 %v2833
        %v2874 = vunpack.c.l.b16 %v2834
        %v2875 = vpack.c.b16 %v2860, %v2859
        %v2876 = vpack.c.b16 %v2862, %v2861
        %v2877 = vpack.c.b16 %v2864, %v2863
        %v2878 = vpack.c.b16 %v2866, %v2865
        %v2879 = vpack.c.b16 %v2868, %v2867
        %v2880 = vpack.c.b16 %v2870, %v2869
        %v2881 = vpack.c.b16 %v2872, %v2871
        %v2882 = vpack.c.b16 %v2874, %v2873
        %2891 = vmatprep.subr.bf16.mxu0 0
        %2892 = vmatpush1.bf16.msra.mxu0 %v2882
        %2893 = vmatprep.subr.bf16.mxu0 0
        %2894 = vmatpush1.bf16.msra.mxu0 %v2881
        %2895 = vmatprep.subr.bf16.mxu0 0
        %2896 = vmatpush1.bf16.msra.mxu0 %v2880
        %2897 = vmatprep.subr.bf16.mxu0 0
        %2898 = vmatpush1.bf16.msra.mxu0 %v2879
        %2899 = vmatprep.subr.bf16.mxu0 0
        %2900 = vmatpush1.bf16.msra.mxu0 %v2878
        %2901 = vmatprep.subr.bf16.mxu0 0
        %2902 = vmatpush1.bf16.msra.mxu0 %v2877
        %2903 = vmatprep.subr.bf16.mxu0 0
        %2904 = vmatpush1.bf16.msra.mxu0 %v2876
        %2905 = vmatprep.subr.bf16.mxu0 0
        %2906 = vmatpush1.bf16.msra.mxu0 %v2875
        %2907 = vmatprep.subr.bf16.mxu0 0
        %2908 = vmatpush2.bf16.msra.mxu0 0
        %2909 = vmatprep.subr.bf16.mxu0 0
        %2910 = vmatpush2.bf16.msra.mxu0 0
        %2911 = vmatprep.subr.bf16.mxu0 0
        %2912 = vmatpush2.bf16.msra.mxu0 0
        %2913 = vmatprep.subr.bf16.mxu0 0
        %2914 = vmatpush2.bf16.msra.mxu0 0
        %2915 = vmatprep.subr.bf16.mxu0 0
        %2916 = vmatpush2.bf16.msra.mxu0 0
        %2917 = vmatprep.subr.bf16.mxu0 0
        %2918 = vmatpush2.bf16.msra.mxu0 0
        %2919 = vmatprep.subr.bf16.mxu0 0
        %2920 = vmatpush2.bf16.msra.mxu0 0
        %2921 = vmatprep.subr.bf16.mxu0 0
        %2922 = vmatpush2.bf16.msra.mxu0 0
        %2923 = vmatprep.mubr.bf16.mxu0 0
        %2924 = vmatmul.mubr.bf16.gmra.mxu0 %v2810
        %v2925 = vpop.f32.mrf.mxu0
        %v2926 = vadd.f32 %v2841, %v2925
        %v2927 = vpop.f32.mrf.mxu0
        %v2928 = vpop.f32.mrf.mxu0
        %v2929 = vadd.f32 %v2841, %v2928
        %v2930 = vpop.f32.mrf.mxu0
        %2931 = vmatprep.mubr.bf16.mxu0 0
        %2932 = vmatmul.mubr.bf16.gmra.mxu0 %v2811
        %v2933 = vpop.f32.mrf.mxu0
        %v2934 = vadd.f32 %v2841, %v2933
        %v2935 = vpop.f32.mrf.mxu0
        %v2936 = vpop.f32.mrf.mxu0
        %v2937 = vadd.f32 %v2841, %v2936
        %v2938 = vpop.f32.mrf.mxu0
        %2939 = vmatprep.mubr.bf16.mxu0 0
        %2940 = vmatmul.mubr.bf16.gmra.mxu0 %v2812
        %v2941 = vpop.f32.mrf.mxu0
        %v2942 = vadd.f32 %v2841, %v2941
        %v2943 = vpop.f32.mrf.mxu0
        %v2944 = vpop.f32.mrf.mxu0
        %v2945 = vadd.f32 %v2841, %v2944
        %v2946 = vpop.f32.mrf.mxu0
        %2947 = vmatprep.mubr.bf16.mxu0 0
        %2948 = vmatmul.mubr.bf16.gmra.mxu0 %v2813
        %v2949 = vpop.f32.mrf.mxu0
        %v2950 = vadd.f32 %v2841, %v2949
        %v2951 = vpop.f32.mrf.mxu0
        %v2952 = vpop.f32.mrf.mxu0
        %v2953 = vadd.f32 %v2841, %v2952
        %v2954 = vpop.f32.mrf.mxu0
        %2955 = vmatprep.mubr.bf16.mxu0 0
        %2956 = vmatmul.mubr.bf16.gmra.mxu0 %v2814
        %v2957 = vpop.f32.mrf.mxu0
        %v2958 = vadd.f32 %v2841, %v2957
        %v2959 = vpop.f32.mrf.mxu0
        %v2960 = vpop.f32.mrf.mxu0
        %v2961 = vadd.f32 %v2841, %v2960
        %v2962 = vpop.f32.mrf.mxu0
        %2963 = vmatprep.mubr.bf16.mxu0 0
        %2964 = vmatmul.mubr.bf16.gmra.mxu0 %v2815
        %v2965 = vpop.f32.mrf.mxu0
        %v2966 = vadd.f32 %v2841, %v2965
        %v2967 = vpop.f32.mrf.mxu0
        %v2968 = vpop.f32.mrf.mxu0
        %v2969 = vadd.f32 %v2841, %v2968
        %v2970 = vpop.f32.mrf.mxu0
        %2971 = vmatprep.mubr.bf16.mxu0 0
        %2972 = vmatmul.mubr.bf16.gmra.mxu0 %v2816
        %v2973 = vpop.f32.mrf.mxu0
        %v2974 = vadd.f32 %v2841, %v2973
        %v2975 = vpop.f32.mrf.mxu0
        %v2976 = vpop.f32.mrf.mxu0
        %v2977 = vadd.f32 %v2841, %v2976
        %v2978 = vpop.f32.mrf.mxu0
        %2979 = vmatprep.mubr.bf16.mxu0 0
        %2980 = vmatmul.mubr.bf16.gmra.mxu0 %v2817
        %v2981 = vpop.f32.mrf.mxu0
        %v2982 = vadd.f32 %v2841, %v2981
        %v2983 = vpop.f32.mrf.mxu0
        %v2984 = vpop.f32.mrf.mxu0
        %v2985 = vadd.f32 %v2841, %v2984
        %v2986 = vpop.f32.mrf.mxu0
        %2987 = vdwg.mxu0
        %v2988 = vadd.f32 %v2584, %v2926
        %v2989 = vadd.f32 %v2585, %v2929
        %v2990 = vadd.f32 %v2586, %v2934
        %v2991 = vadd.f32 %v2587, %v2937
        %v2992 = vadd.f32 %v2588, %v2942
        %v2993 = vadd.f32 %v2589, %v2945
        %v2994 = vadd.f32 %v2590, %v2950
        %v2995 = vadd.f32 %v2591, %v2953
        %v2996 = vadd.f32 %v2592, %v2958
        %v2997 = vadd.f32 %v2593, %v2961
        %v2998 = vadd.f32 %v2594, %v2966
        %v2999 = vadd.f32 %v2595, %v2969
        %v3000 = vadd.f32 %v2596, %v2974
        %v3001 = vadd.f32 %v2597, %v2977
        %v3002 = vadd.f32 %v2598, %v2982
        %v3003 = vadd.f32 %v2599, %v2985
        %v3004 = vpack.c.bf16 %v2989, %v2988
        %v3005 = vpack.c.bf16 %v2991, %v2990
        %v3006 = vpack.c.bf16 %v2993, %v2992
        %v3007 = vpack.c.bf16 %v2995, %v2994
        %v3008 = vpack.c.bf16 %v2997, %v2996
        %v3009 = vpack.c.bf16 %v2999, %v2998
        %v3010 = vpack.c.bf16 %v3001, %v3000
        %v3011 = vpack.c.bf16 %v3003, %v3002
        %v3012 = vld [vmem:[#allocation9] sm:$0xf]
        %v3013 = vld [vmem:[#allocation9 + $0x4] sm:$0xf]
        %v3014 = vld [vmem:[#allocation9 + $0x8] sm:$0xf]
        %v3015 = vld [vmem:[#allocation9 + $0xc] sm:$0xf]
        %v3016 = vld [vmem:[#allocation9 + $0x10] sm:$0xf]
        %v3017 = vld [vmem:[#allocation9 + $0x14] sm:$0xf]
        %v3018 = vld [vmem:[#allocation9 + $0x18] sm:$0xf]
        %v3019 = vld [vmem:[#allocation9 + $0x1c] sm:$0xf]
        %v3020 = vld [vmem:[#allocation9 + $0x20] sm:$0xf]
        %v3021 = vld [vmem:[#allocation9 + $0x24] sm:$0xf]
        %v3022 = vld [vmem:[#allocation9 + $0x28] sm:$0xf]
        %v3023 = vld [vmem:[#allocation9 + $0x2c] sm:$0xf]
        %v3024 = vld [vmem:[#allocation9 + $0x30] sm:$0xf]
        %v3025 = vld [vmem:[#allocation9 + $0x34] sm:$0xf]
        %v3026 = vld [vmem:[#allocation9 + $0x38] sm:$0xf]
        %v3027 = vld [vmem:[#allocation9 + $0x3c] sm:$0xf]
        %v3028 = vld [vmem:[%s11] sm:$0x1]
        %v3030 = vlaneseq
        %v3031 = vshrl.u32 %v3030, 7
        %v3032 = vsub.s32 0, %v3031
        %v3033 = vrot.slane %v3028, %v3032
        %v3051 = vunpack.c.l.b16 %v3012
        %v3052 = vunpack.c.l.b16 %v3013
        %v3053 = vunpack.c.l.b16 %v3014
        %v3054 = vunpack.c.l.b16 %v3015
        %v3055 = vunpack.c.l.b16 %v3016
        %v3056 = vunpack.c.l.b16 %v3017
        %v3057 = vunpack.c.l.b16 %v3018
        %v3058 = vunpack.c.l.b16 %v3019
        %v3059 = vunpack.c.l.b16 %v3020
        %v3060 = vunpack.c.l.b16 %v3021
        %v3061 = vunpack.c.l.b16 %v3022
        %v3062 = vunpack.c.l.b16 %v3023
        %v3063 = vunpack.c.l.b16 %v3024
        %v3064 = vunpack.c.l.b16 %v3025
        %v3065 = vunpack.c.l.b16 %v3026
        %v3066 = vunpack.c.l.b16 %v3027
        %v3067 = vpack.c.b16 %v3052, %v3051
        %v3068 = vpack.c.b16 %v3054, %v3053
        %v3069 = vpack.c.b16 %v3056, %v3055
        %v3070 = vpack.c.b16 %v3058, %v3057
        %v3071 = vpack.c.b16 %v3060, %v3059
        %v3072 = vpack.c.b16 %v3062, %v3061
        %v3073 = vpack.c.b16 %v3064, %v3063
        %v3074 = vpack.c.b16 %v3066, %v3065
        %3083 = vmatprep.subr.bf16.mxu0 0
        %3084 = vmatpush1.bf16.msra.mxu0 %v3074
        %3085 = vmatprep.subr.bf16.mxu0 0
        %3086 = vmatpush1.bf16.msra.mxu0 %v3073
        %3087 = vmatprep.subr.bf16.mxu0 0
        %3088 = vmatpush1.bf16.msra.mxu0 %v3072
        %3089 = vmatprep.subr.bf16.mxu0 0
        %3090 = vmatpush1.bf16.msra.mxu0 %v3071
        %3091 = vmatprep.subr.bf16.mxu0 0
        %3092 = vmatpush1.bf16.msra.mxu0 %v3070
        %3093 = vmatprep.subr.bf16.mxu0 0
        %3094 = vmatpush1.bf16.msra.mxu0 %v3069
        %3095 = vmatprep.subr.bf16.mxu0 0
        %3096 = vmatpush1.bf16.msra.mxu0 %v3068
        %3097 = vmatprep.subr.bf16.mxu0 0
        %3098 = vmatpush1.bf16.msra.mxu0 %v3067
        %3099 = vmatprep.subr.bf16.mxu0 0
        %3100 = vmatpush2.bf16.msra.mxu0 0
        %3101 = vmatprep.subr.bf16.mxu0 0
        %3102 = vmatpush2.bf16.msra.mxu0 0
        %3103 = vmatprep.subr.bf16.mxu0 0
        %3104 = vmatpush2.bf16.msra.mxu0 0
        %3105 = vmatprep.subr.bf16.mxu0 0
        %3106 = vmatpush2.bf16.msra.mxu0 0
        %3107 = vmatprep.subr.bf16.mxu0 0
        %3108 = vmatpush2.bf16.msra.mxu0 0
        %3109 = vmatprep.subr.bf16.mxu0 0
        %3110 = vmatpush2.bf16.msra.mxu0 0
        %3111 = vmatprep.subr.bf16.mxu0 0
        %3112 = vmatpush2.bf16.msra.mxu0 0
        %3113 = vmatprep.subr.bf16.mxu0 0
        %3114 = vmatpush2.bf16.msra.mxu0 0
        %3115 = vmatprep.mubr.bf16.mxu0 0
        %3116 = vmatmul.mubr.bf16.gmra.mxu0 %v3004
        %v3117 = vpop.f32.mrf.mxu0
        %v3118 = vadd.f32 %v3033, %v3117
        %v3119 = vpop.f32.mrf.mxu0
        %v3120 = vpop.f32.mrf.mxu0
        %v3121 = vadd.f32 %v3033, %v3120
        %v3122 = vpop.f32.mrf.mxu0
        %3123 = vmatprep.mubr.bf16.mxu0 0
        %3124 = vmatmul.mubr.bf16.gmra.mxu0 %v3005
        %v3125 = vpop.f32.mrf.mxu0
        %v3126 = vadd.f32 %v3033, %v3125
        %v3127 = vpop.f32.mrf.mxu0
        %v3128 = vpop.f32.mrf.mxu0
        %v3129 = vadd.f32 %v3033, %v3128
        %v3130 = vpop.f32.mrf.mxu0
        %3131 = vmatprep.mubr.bf16.mxu0 0
        %3132 = vmatmul.mubr.bf16.gmra.mxu0 %v3006
        %v3133 = vpop.f32.mrf.mxu0
        %v3134 = vadd.f32 %v3033, %v3133
        %v3135 = vpop.f32.mrf.mxu0
        %v3136 = vpop.f32.mrf.mxu0
        %v3137 = vadd.f32 %v3033, %v3136
        %v3138 = vpop.f32.mrf.mxu0
        %3139 = vmatprep.mubr.bf16.mxu0 0
        %3140 = vmatmul.mubr.bf16.gmra.mxu0 %v3007
        %v3141 = vpop.f32.mrf.mxu0
        %v3142 = vadd.f32 %v3033, %v3141
        %v3143 = vpop.f32.mrf.mxu0
        %v3144 = vpop.f32.mrf.mxu0
        %v3145 = vadd.f32 %v3033, %v3144
        %v3146 = vpop.f32.mrf.mxu0
        %3147 = vmatprep.mubr.bf16.mxu0 0
        %3148 = vmatmul.mubr.bf16.gmra.mxu0 %v3008
        %v3149 = vpop.f32.mrf.mxu0
        %v3150 = vadd.f32 %v3033, %v3149
        %v3151 = vpop.f32.mrf.mxu0
        %v3152 = vpop.f32.mrf.mxu0
        %v3153 = vadd.f32 %v3033, %v3152
        %v3154 = vpop.f32.mrf.mxu0
        %3155 = vmatprep.mubr.bf16.mxu0 0
        %3156 = vmatmul.mubr.bf16.gmra.mxu0 %v3009
        %v3157 = vpop.f32.mrf.mxu0
        %v3158 = vadd.f32 %v3033, %v3157
        %v3159 = vpop.f32.mrf.mxu0
        %v3160 = vpop.f32.mrf.mxu0
        %v3161 = vadd.f32 %v3033, %v3160
        %v3162 = vpop.f32.mrf.mxu0
        %3163 = vmatprep.mubr.bf16.mxu0 0
        %3164 = vmatmul.mubr.bf16.gmra.mxu0 %v3010
        %v3165 = vpop.f32.mrf.mxu0
        %v3166 = vadd.f32 %v3033, %v3165
        %v3167 = vpop.f32.mrf.mxu0
        %v3168 = vpop.f32.mrf.mxu0
        %v3169 = vadd.f32 %v3033, %v3168
        %v3170 = vpop.f32.mrf.mxu0
        %3171 = vmatprep.mubr.bf16.mxu0 0
        %3172 = vmatmul.mubr.bf16.gmra.mxu0 %v3011
        %v3173 = vpop.f32.mrf.mxu0
        %v3174 = vadd.f32 %v3033, %v3173
        %v3175 = vpop.f32.mrf.mxu0
        %v3176 = vpop.f32.mrf.mxu0
        %v3177 = vadd.f32 %v3033, %v3176
        %v3178 = vpop.f32.mrf.mxu0
        %3179 = vdwg.mxu0
        %vm3180 = vcmp.gt.f32.partialorder %v3118, 0.0
        %vm3181 = vcmp.gt.f32.partialorder %v3121, 0.0
        %vm3182 = vcmp.gt.f32.partialorder %v3126, 0.0
        %vm3183 = vcmp.gt.f32.partialorder %v3129, 0.0
        %vm3184 = vcmp.gt.f32.partialorder %v3134, 0.0
        %vm3185 = vcmp.gt.f32.partialorder %v3137, 0.0
        %vm3186 = vcmp.gt.f32.partialorder %v3142, 0.0
        %vm3187 = vcmp.gt.f32.partialorder %v3145, 0.0
        %vm3188 = vcmp.gt.f32.partialorder %v3150, 0.0
        %vm3189 = vcmp.gt.f32.partialorder %v3153, 0.0
        %vm3190 = vcmp.gt.f32.partialorder %v3158, 0.0
        %vm3191 = vcmp.gt.f32.partialorder %v3161, 0.0
        %vm3192 = vcmp.gt.f32.partialorder %v3166, 0.0
        %vm3193 = vcmp.gt.f32.partialorder %v3169, 0.0
        %vm3194 = vcmp.gt.f32.partialorder %v3174, 0.0
        %vm3195 = vcmp.gt.f32.partialorder %v3177, 0.0
        %v3196 = vmin.f32 %v3118, 0.0
        %v3197 = vmin.f32 %v3121, 0.0
        %v3198 = vmin.f32 %v3126, 0.0
        %v3199 = vmin.f32 %v3129, 0.0
        %v3200 = vmin.f32 %v3134, 0.0
        %v3201 = vmin.f32 %v3137, 0.0
        %v3202 = vmin.f32 %v3142, 0.0
        %v3203 = vmin.f32 %v3145, 0.0
        %v3204 = vmin.f32 %v3150, 0.0
        %v3205 = vmin.f32 %v3153, 0.0
        %v3206 = vmin.f32 %v3158, 0.0
        %v3207 = vmin.f32 %v3161, 0.0
        %v3208 = vmin.f32 %v3166, 0.0
        %v3209 = vmin.f32 %v3169, 0.0
        %v3210 = vmin.f32 %v3174, 0.0
        %v3211 = vmin.f32 %v3177, 0.0
        %v3212 = vmul.f32 %v3196, 1.442695
        %v3213 = vpow.pop %v3212
        %v3214 = vmul.f32 %v3197, 1.442695
        %v3215 = vpow.pop %v3214
        %v3216 = vmul.f32 %v3198, 1.442695
        %v3217 = vpow.pop %v3216
        %v3218 = vmul.f32 %v3199, 1.442695
        %v3219 = vpow.pop %v3218
        %v3220 = vmul.f32 %v3200, 1.442695
        %v3221 = vpow.pop %v3220
        %v3222 = vmul.f32 %v3201, 1.442695
        %v3223 = vpow.pop %v3222
        %v3224 = vmul.f32 %v3202, 1.442695
        %v3225 = vpow.pop %v3224
        %v3226 = vmul.f32 %v3203, 1.442695
        %v3227 = vpow.pop %v3226
        %v3228 = vmul.f32 %v3204, 1.442695
        %v3229 = vpow.pop %v3228
        %v3230 = vmul.f32 %v3205, 1.442695
        %v3231 = vpow.pop %v3230
        %v3232 = vmul.f32 %v3206, 1.442695
        %v3233 = vpow.pop %v3232
        %v3234 = vmul.f32 %v3207, 1.442695
        %v3235 = vpow.pop %v3234
        %v3236 = vmul.f32 %v3208, 1.442695
        %v3237 = vpow.pop %v3236
        %v3238 = vmul.f32 %v3209, 1.442695
        %v3239 = vpow.pop %v3238
        %v3240 = vmul.f32 %v3210, 1.442695
        %v3241 = vpow.pop %v3240
        %v3242 = vmul.f32 %v3211, 1.442695
        %v3243 = vpow.pop %v3242
        %v3244 = vsub.f32 %v3213, 1.0
        %v3245 = vsub.f32 %v3215, 1.0
        %v3246 = vsub.f32 %v3217, 1.0
        %v3247 = vsub.f32 %v3219, 1.0
        %v3248 = vsub.f32 %v3221, 1.0
        %v3249 = vsub.f32 %v3223, 1.0
        %v3250 = vsub.f32 %v3225, 1.0
        %v3251 = vsub.f32 %v3227, 1.0
        %v3252 = vsub.f32 %v3229, 1.0
        %v3253 = vsub.f32 %v3231, 1.0
        %v3254 = vsub.f32 %v3233, 1.0
        %v3255 = vsub.f32 %v3235, 1.0
        %v3256 = vsub.f32 %v3237, 1.0
        %v3257 = vsub.f32 %v3239, 1.0
        %v3258 = vsub.f32 %v3241, 1.0
        %v3259 = vsub.f32 %v3243, 1.0
        %v3260 = vsel %vm3180, %v3118, %v3244
        %v3261 = vsel %vm3181, %v3121, %v3245
        %v3262 = vsel %vm3182, %v3126, %v3246
        %v3263 = vsel %vm3183, %v3129, %v3247
        %v3264 = vsel %vm3184, %v3134, %v3248
        %v3265 = vsel %vm3185, %v3137, %v3249
        %v3266 = vsel %vm3186, %v3142, %v3250
        %v3267 = vsel %vm3187, %v3145, %v3251
        %v3268 = vsel %vm3188, %v3150, %v3252
        %v3269 = vsel %vm3189, %v3153, %v3253
        %v3270 = vsel %vm3190, %v3158, %v3254
        %v3271 = vsel %vm3191, %v3161, %v3255
        %v3272 = vsel %vm3192, %v3166, %v3256
        %v3273 = vsel %vm3193, %v3169, %v3257
        %v3274 = vsel %vm3194, %v3174, %v3258
        %v3275 = vsel %vm3195, %v3177, %v3259
        %v3276 = vpack.c.bf16 %v3261, %v3260
        %v3277 = vpack.c.bf16 %v3263, %v3262
        %v3278 = vpack.c.bf16 %v3265, %v3264
        %v3279 = vpack.c.bf16 %v3267, %v3266
        %v3280 = vpack.c.bf16 %v3269, %v3268
        %v3281 = vpack.c.bf16 %v3271, %v3270
        %v3282 = vpack.c.bf16 %v3273, %v3272
        %v3283 = vpack.c.bf16 %v3275, %v3274
        %v3284 = vld [vmem:[#allocation11] sm:$0xf]
        %v3285 = vld [vmem:[#allocation11 + $0x4] sm:$0xf]
        %v3286 = vld [vmem:[#allocation11 + $0x8] sm:$0xf]
        %v3287 = vld [vmem:[#allocation11 + $0xc] sm:$0xf]
        %v3288 = vld [vmem:[#allocation11 + $0x10] sm:$0xf]
        %v3289 = vld [vmem:[#allocation11 + $0x14] sm:$0xf]
        %v3290 = vld [vmem:[#allocation11 + $0x18] sm:$0xf]
        %v3291 = vld [vmem:[#allocation11 + $0x1c] sm:$0xf]
        %v3292 = vld [vmem:[#allocation11 + $0x20] sm:$0xf]
        %v3293 = vld [vmem:[#allocation11 + $0x24] sm:$0xf]
        %v3294 = vld [vmem:[#allocation11 + $0x28] sm:$0xf]
        %v3295 = vld [vmem:[#allocation11 + $0x2c] sm:$0xf]
        %v3296 = vld [vmem:[#allocation11 + $0x30] sm:$0xf]
        %v3297 = vld [vmem:[#allocation11 + $0x34] sm:$0xf]
        %v3298 = vld [vmem:[#allocation11 + $0x38] sm:$0xf]
        %v3299 = vld [vmem:[#allocation11 + $0x3c] sm:$0xf]
        %v3300 = vld [vmem:[%s13] sm:$0x1]
        %v3302 = vlaneseq
        %v3303 = vshrl.u32 %v3302, 7
        %v3304 = vsub.s32 0, %v3303
        %v3305 = vrot.slane %v3300, %v3304
        %v3323 = vunpack.c.l.b16 %v3284
        %v3324 = vunpack.c.l.b16 %v3285
        %v3325 = vunpack.c.l.b16 %v3286
        %v3326 = vunpack.c.l.b16 %v3287
        %v3327 = vunpack.c.l.b16 %v3288
        %v3328 = vunpack.c.l.b16 %v3289
        %v3329 = vunpack.c.l.b16 %v3290
        %v3330 = vunpack.c.l.b16 %v3291
        %v3331 = vunpack.c.l.b16 %v3292
        %v3332 = vunpack.c.l.b16 %v3293
        %v3333 = vunpack.c.l.b16 %v3294
        %v3334 = vunpack.c.l.b16 %v3295
        %v3335 = vunpack.c.l.b16 %v3296
        %v3336 = vunpack.c.l.b16 %v3297
        %v3337 = vunpack.c.l.b16 %v3298
        %v3338 = vunpack.c.l.b16 %v3299
        %v3339 = vpack.c.b16 %v3324, %v3323
        %v3340 = vpack.c.b16 %v3326, %v3325
        %v3341 = vpack.c.b16 %v3328, %v3327
        %v3342 = vpack.c.b16 %v3330, %v3329
        %v3343 = vpack.c.b16 %v3332, %v3331
        %v3344 = vpack.c.b16 %v3334, %v3333
        %v3345 = vpack.c.b16 %v3336, %v3335
        %v3346 = vpack.c.b16 %v3338, %v3337
        %3355 = vmatprep.subr.bf16.mxu0 0
        %3356 = vmatpush1.bf16.msra.mxu0 %v3346
        %3357 = vmatprep.subr.bf16.mxu0 0
        %3358 = vmatpush1.bf16.msra.mxu0 %v3345
        %3359 = vmatprep.subr.bf16.mxu0 0
        %3360 = vmatpush1.bf16.msra.mxu0 %v3344
        %3361 = vmatprep.subr.bf16.mxu0 0
        %3362 = vmatpush1.bf16.msra.mxu0 %v3343
        %3363 = vmatprep.subr.bf16.mxu0 0
        %3364 = vmatpush1.bf16.msra.mxu0 %v3342
        %3365 = vmatprep.subr.bf16.mxu0 0
        %3366 = vmatpush1.bf16.msra.mxu0 %v3341
        %3367 = vmatprep.subr.bf16.mxu0 0
        %3368 = vmatpush1.bf16.msra.mxu0 %v3340
        %3369 = vmatprep.subr.bf16.mxu0 0
        %3370 = vmatpush1.bf16.msra.mxu0 %v3339
        %3371 = vmatprep.subr.bf16.mxu0 0
        %3372 = vmatpush2.bf16.msra.mxu0 0
        %3373 = vmatprep.subr.bf16.mxu0 0
        %3374 = vmatpush2.bf16.msra.mxu0 0
        %3375 = vmatprep.subr.bf16.mxu0 0
        %3376 = vmatpush2.bf16.msra.mxu0 0
        %3377 = vmatprep.subr.bf16.mxu0 0
        %3378 = vmatpush2.bf16.msra.mxu0 0
        %3379 = vmatprep.subr.bf16.mxu0 0
        %3380 = vmatpush2.bf16.msra.mxu0 0
        %3381 = vmatprep.subr.bf16.mxu0 0
        %3382 = vmatpush2.bf16.msra.mxu0 0
        %3383 = vmatprep.subr.bf16.mxu0 0
        %3384 = vmatpush2.bf16.msra.mxu0 0
        %3385 = vmatprep.subr.bf16.mxu0 0
        %3386 = vmatpush2.bf16.msra.mxu0 0
        %3387 = vmatprep.mubr.bf16.mxu0 0
        %3388 = vmatmul.mubr.bf16.gmra.mxu0 %v3276
        %v3389 = vpop.f32.mrf.mxu0
        %v3390 = vadd.f32 %v3305, %v3389
        %v3391 = vpop.f32.mrf.mxu0
        %v3392 = vpop.f32.mrf.mxu0
        %v3393 = vadd.f32 %v3305, %v3392
        %v3394 = vpop.f32.mrf.mxu0
        %3395 = vmatprep.mubr.bf16.mxu0 0
        %3396 = vmatmul.mubr.bf16.gmra.mxu0 %v3277
        %v3397 = vpop.f32.mrf.mxu0
        %v3398 = vadd.f32 %v3305, %v3397
        %v3399 = vpop.f32.mrf.mxu0
        %v3400 = vpop.f32.mrf.mxu0
        %v3401 = vadd.f32 %v3305, %v3400
        %v3402 = vpop.f32.mrf.mxu0
        %3403 = vmatprep.mubr.bf16.mxu0 0
        %3404 = vmatmul.mubr.bf16.gmra.mxu0 %v3278
        %v3405 = vpop.f32.mrf.mxu0
        %v3406 = vadd.f32 %v3305, %v3405
        %v3407 = vpop.f32.mrf.mxu0
        %v3408 = vpop.f32.mrf.mxu0
        %v3409 = vadd.f32 %v3305, %v3408
        %v3410 = vpop.f32.mrf.mxu0
        %3411 = vmatprep.mubr.bf16.mxu0 0
        %3412 = vmatmul.mubr.bf16.gmra.mxu0 %v3279
        %v3413 = vpop.f32.mrf.mxu0
        %v3414 = vadd.f32 %v3305, %v3413
        %v3415 = vpop.f32.mrf.mxu0
        %v3416 = vpop.f32.mrf.mxu0
        %v3417 = vadd.f32 %v3305, %v3416
        %v3418 = vpop.f32.mrf.mxu0
        %3419 = vmatprep.mubr.bf16.mxu0 0
        %3420 = vmatmul.mubr.bf16.gmra.mxu0 %v3280
        %v3421 = vpop.f32.mrf.mxu0
        %v3422 = vadd.f32 %v3305, %v3421
        %v3423 = vpop.f32.mrf.mxu0
        %v3424 = vpop.f32.mrf.mxu0
        %v3425 = vadd.f32 %v3305, %v3424
        %v3426 = vpop.f32.mrf.mxu0
        %3427 = vmatprep.mubr.bf16.mxu0 0
        %3428 = vmatmul.mubr.bf16.gmra.mxu0 %v3281
        %v3429 = vpop.f32.mrf.mxu0
        %v3430 = vadd.f32 %v3305, %v3429
        %v3431 = vpop.f32.mrf.mxu0
        %v3432 = vpop.f32.mrf.mxu0
        %v3433 = vadd.f32 %v3305, %v3432
        %v3434 = vpop.f32.mrf.mxu0
        %3435 = vmatprep.mubr.bf16.mxu0 0
        %3436 = vmatmul.mubr.bf16.gmra.mxu0 %v3282
        %v3437 = vpop.f32.mrf.mxu0
        %v3438 = vadd.f32 %v3305, %v3437
        %v3439 = vpop.f32.mrf.mxu0
        %v3440 = vpop.f32.mrf.mxu0
        %v3441 = vadd.f32 %v3305, %v3440
        %v3442 = vpop.f32.mrf.mxu0
        %3443 = vmatprep.mubr.bf16.mxu0 0
        %3444 = vmatmul.mubr.bf16.gmra.mxu0 %v3283
        %v3445 = vpop.f32.mrf.mxu0
        %v3446 = vadd.f32 %v3305, %v3445
        %v3447 = vpop.f32.mrf.mxu0
        %v3448 = vpop.f32.mrf.mxu0
        %v3449 = vadd.f32 %v3305, %v3448
        %v3450 = vpop.f32.mrf.mxu0
        %3451 = vdwg.mxu0
        %s3452 = sld [smem:[#allocation2]]
        %s3453 = smax.f32 %s3452, 0.0
        %s3454 = sand.u32 2147483647, %s3452
        %s3455 = ssub.f32 0.0, %s3454
        %v3456 = vstv %s3455
        %v3457 = vmul.f32 %v3456, 1.442695
        %v3458 = vpow.pop %v3457
        %s3459 = vtos %v3458
        %v3460 = vstv %s3459
        %v3461 = vadd.f32 %v3460, 1.0
        %v3462 = vlog2.pop %v3461
        %v3463 = vmul.f32 %v3462, 0.6931472
        %v3464 = vmul.f32 -0.5, %v3460
        %v3465 = vadd.f32 %v3464, 1.0
        %v3466 = vmul.f32 %v3465, %v3460
        %v3467 = vand.u32 2147483647, %v3460
        %vm3468 = vcmp.lt.f32.partialorder %v3467, 0.0004427343
        %v3469 = vsel %vm3468, %v3466, %v3463
        %s3470 = vtos %v3469
        %s3471 = sadd.f32 %s3453, %s3470
        %s3472 = smul.f32 %s3471, 2.0
        %v3473 = vstv %s3472
        %v3474 = vmul.f32 %v3473, %v613
        %v3475 = vmul.f32 %v3473, %v614
        %v3476 = vmul.f32 %v3473, %v615
        %v3477 = vmul.f32 %v3473, %v616
        %v3478 = vmul.f32 %v3473, %v617
        %v3479 = vmul.f32 %v3473, %v618
        %v3480 = vmul.f32 %v3473, %v619
        %v3481 = vmul.f32 %v3473, %v620
        %v3482 = vmul.f32 %v3473, %v621
        %v3483 = vmul.f32 %v3473, %v622
        %v3484 = vmul.f32 %v3473, %v623
        %v3485 = vmul.f32 %v3473, %v624
        %v3486 = vmul.f32 %v3473, %v625
        %v3487 = vmul.f32 %v3473, %v626
        %v3488 = vmul.f32 %v3473, %v627
        %v3489 = vmul.f32 %v3473, %v628
        %v3490 = vld [vmem:[#allocation12] sm:$0xff]
        %v3491 = vld [vmem:[#allocation12 + $0x8] sm:$0xff]
        %v3492 = vld [vmem:[#allocation12 + $0x10] sm:$0xff]
        %v3493 = vld [vmem:[#allocation12 + $0x18] sm:$0xff]
        %v3494 = vld [vmem:[#allocation12 + $0x20] sm:$0xff]
        %v3495 = vld [vmem:[#allocation12 + $0x28] sm:$0xff]
        %v3496 = vld [vmem:[#allocation12 + $0x30] sm:$0xff]
        %v3497 = vld [vmem:[#allocation12 + $0x38] sm:$0xff]
        %v3499 = vsel %vm676, %v3474, 0
        %v3502 = vsel %vm676, %v3475, 0
        %v3505 = vsel %vm676, %v3476, 0
        %v3508 = vsel %vm676, %v3477, 0
        %v3511 = vsel %vm676, %v3478, 0
        %v3514 = vsel %vm676, %v3479, 0
        %v3517 = vsel %vm676, %v3480, 0
        %v3520 = vsel %vm676, %v3481, 0
        %v3523 = vsel %vm676, %v3482, 0
        %v3526 = vsel %vm676, %v3483, 0
        %v3529 = vsel %vm676, %v3484, 0
        %v3532 = vsel %vm676, %v3485, 0
        %v3535 = vsel %vm676, %v3486, 0
        %v3538 = vsel %vm676, %v3487, 0
        %v3541 = vsel %vm676, %v3488, 0
        %v3544 = vsel %vm676, %v3489, 0
        %3546 = vmatprep.subr.mxu0 0.0
        %3547 = vmatpush1.msra.mxu0 0.0
        %3548 = vmatprep.subr.mxu0 0.0
        %3549 = vmatpush1.msra.mxu0 0.0
        %3550 = vmatprep.subr.mxu0 0.0
        %3551 = vmatpush1.msra.mxu0 0.0
        %3552 = vmatprep.subr.mxu0 0.0
        %3553 = vmatpush1.msra.mxu0 0.0
        %3554 = vmatprep.subr.mxu0 0.0
        %3555 = vmatpush1.msra.mxu0 0.0
        %3556 = vmatprep.subr.mxu0 0.0
        %3557 = vmatpush1.msra.mxu0 0.0
        %3558 = vmatprep.subr.mxu0 0.0
        %3559 = vmatpush1.msra.mxu0 0.0
        %3560 = vmatprep.subr.mxu0 0.0
        %3561 = vmatpush1.msra.mxu0 0.0
        %3562 = vmatprep.subr.mxu0 0.0
        %3563 = vmatpush1.msra.mxu0 %v3497
        %3564 = vmatprep.subr.mxu0 0.0
        %3565 = vmatpush1.msra.mxu0 %v3496
        %3566 = vmatprep.subr.mxu0 0.0
        %3567 = vmatpush1.msra.mxu0 %v3495
        %3568 = vmatprep.subr.mxu0 0.0
        %3569 = vmatpush1.msra.mxu0 %v3494
        %3570 = vmatprep.subr.mxu0 0.0
        %3571 = vmatpush1.msra.mxu0 %v3493
        %3572 = vmatprep.subr.mxu0 0.0
        %3573 = vmatpush1.msra.mxu0 %v3492
        %3574 = vmatprep.subr.mxu0 0.0
        %3575 = vmatpush1.msra.mxu0 %v3491
        %3576 = vmatprep.subr.mxu0 0.0
        %3577 = vmatpush1.msra.mxu0 %v3490
        %3578 = vmatprep.subr.mxu0 0.0
        %3579 = vmatpush2.msra.mxu0 0.0
        %3580 = vmatprep.subr.mxu0 0.0
        %3581 = vmatpush2.msra.mxu0 0.0
        %3582 = vmatprep.subr.mxu0 0.0
        %3583 = vmatpush2.msra.mxu0 0.0
        %3584 = vmatprep.subr.mxu0 0.0
        %3585 = vmatpush2.msra.mxu0 0.0
        %3586 = vmatprep.subr.mxu0 0.0
        %3587 = vmatpush2.msra.mxu0 0.0
        %3588 = vmatprep.subr.mxu0 0.0
        %3589 = vmatpush2.msra.mxu0 0.0
        %3590 = vmatprep.subr.mxu0 0.0
        %3591 = vmatpush2.msra.mxu0 0.0
        %3592 = vmatprep.subr.mxu0 0.0
        %3593 = vmatpush2.msra.mxu0 0.0
        %3594 = vmatprep.subr.mxu0 0.0
        %3595 = vmatpush2.msra.mxu0 0.0
        %3596 = vmatprep.subr.mxu0 0.0
        %3597 = vmatpush2.msra.mxu0 0.0
        %3598 = vmatprep.subr.mxu0 0.0
        %3599 = vmatpush2.msra.mxu0 0.0
        %3600 = vmatprep.subr.mxu0 0.0
        %3601 = vmatpush2.msra.mxu0 0.0
        %3602 = vmatprep.subr.mxu0 0.0
        %3603 = vmatpush2.msra.mxu0 0.0
        %3604 = vmatprep.subr.mxu0 0.0
        %3605 = vmatpush2.msra.mxu0 0.0
        %3606 = vmatprep.subr.mxu0 0.0
        %3607 = vmatpush2.msra.mxu0 0.0
        %3608 = vmatprep.subr.mxu0 0.0
        %3609 = vmatpush2.msra.mxu0 0.0
        %3610 = vmatprep.mubr.f32.mxu0 0.0
        %3611 = vmatmul.mubr.f32.gmra.mxu0 %v3499
        %v3612 = vpop.f32.mrf.mxu0
        %v3613 = vadd.f32 0.0, %v3612
        %v3614 = vpop.f32.mrf.mxu0
        %3615 = vmatprep.mubr.f32.mxu0 0.0
        %3616 = vmatmul.mubr.f32.gmra.mxu0 %v3502
        %v3617 = vpop.f32.mrf.mxu0
        %v3618 = vadd.f32 0.0, %v3617
        %v3619 = vpop.f32.mrf.mxu0
        %3620 = vmatprep.mubr.f32.mxu0 0.0
        %3621 = vmatmul.mubr.f32.gmra.mxu0 %v3505
        %v3622 = vpop.f32.mrf.mxu0
        %v3623 = vadd.f32 0.0, %v3622
        %v3624 = vpop.f32.mrf.mxu0
        %3625 = vmatprep.mubr.f32.mxu0 0.0
        %3626 = vmatmul.mubr.f32.gmra.mxu0 %v3508
        %v3627 = vpop.f32.mrf.mxu0
        %v3628 = vadd.f32 0.0, %v3627
        %v3629 = vpop.f32.mrf.mxu0
        %3630 = vmatprep.mubr.f32.mxu0 0.0
        %3631 = vmatmul.mubr.f32.gmra.mxu0 %v3511
        %v3632 = vpop.f32.mrf.mxu0
        %v3633 = vadd.f32 0.0, %v3632
        %v3634 = vpop.f32.mrf.mxu0
        %3635 = vmatprep.mubr.f32.mxu0 0.0
        %3636 = vmatmul.mubr.f32.gmra.mxu0 %v3514
        %v3637 = vpop.f32.mrf.mxu0
        %v3638 = vadd.f32 0.0, %v3637
        %v3639 = vpop.f32.mrf.mxu0
        %3640 = vmatprep.mubr.f32.mxu0 0.0
        %3641 = vmatmul.mubr.f32.gmra.mxu0 %v3517
        %v3642 = vpop.f32.mrf.mxu0
        %v3643 = vadd.f32 0.0, %v3642
        %v3644 = vpop.f32.mrf.mxu0
        %3645 = vmatprep.mubr.f32.mxu0 0.0
        %3646 = vmatmul.mubr.f32.gmra.mxu0 %v3520
        %v3647 = vpop.f32.mrf.mxu0
        %v3648 = vadd.f32 0.0, %v3647
        %v3649 = vpop.f32.mrf.mxu0
        %3650 = vmatprep.mubr.f32.mxu0 0.0
        %3651 = vmatmul.mubr.f32.gmra.mxu0 %v3523
        %v3652 = vpop.f32.mrf.mxu0
        %v3653 = vadd.f32 0.0, %v3652
        %v3654 = vpop.f32.mrf.mxu0
        %3655 = vmatprep.mubr.f32.mxu0 0.0
        %3656 = vmatmul.mubr.f32.gmra.mxu0 %v3526
        %v3657 = vpop.f32.mrf.mxu0
        %v3658 = vadd.f32 0.0, %v3657
        %v3659 = vpop.f32.mrf.mxu0
        %3660 = vmatprep.mubr.f32.mxu0 0.0
        %3661 = vmatmul.mubr.f32.gmra.mxu0 %v3529
        %v3662 = vpop.f32.mrf.mxu0
        %v3663 = vadd.f32 0.0, %v3662
        %v3664 = vpop.f32.mrf.mxu0
        %3665 = vmatprep.mubr.f32.mxu0 0.0
        %3666 = vmatmul.mubr.f32.gmra.mxu0 %v3532
        %v3667 = vpop.f32.mrf.mxu0
        %v3668 = vadd.f32 0.0, %v3667
        %v3669 = vpop.f32.mrf.mxu0
        %3670 = vmatprep.mubr.f32.mxu0 0.0
        %3671 = vmatmul.mubr.f32.gmra.mxu0 %v3535
        %v3672 = vpop.f32.mrf.mxu0
        %v3673 = vadd.f32 0.0, %v3672
        %v3674 = vpop.f32.mrf.mxu0
        %3675 = vmatprep.mubr.f32.mxu0 0.0
        %3676 = vmatmul.mubr.f32.gmra.mxu0 %v3538
        %v3677 = vpop.f32.mrf.mxu0
        %v3678 = vadd.f32 0.0, %v3677
        %v3679 = vpop.f32.mrf.mxu0
        %3680 = vmatprep.mubr.f32.mxu0 0.0
        %3681 = vmatmul.mubr.f32.gmra.mxu0 %v3541
        %v3682 = vpop.f32.mrf.mxu0
        %v3683 = vadd.f32 0.0, %v3682
        %v3684 = vpop.f32.mrf.mxu0
        %3685 = vmatprep.mubr.f32.mxu0 0.0
        %3686 = vmatmul.mubr.f32.gmra.mxu0 %v3544
        %v3687 = vpop.f32.mrf.mxu0
        %v3688 = vadd.f32 0.0, %v3687
        %v3689 = vpop.f32.mrf.mxu0
        %3690 = vdwg.mxu0
        %v3691 = vsub.f32 %v3390, %v3613
        %v3692 = vsub.f32 %v3393, %v3618
        %v3693 = vsub.f32 %v3398, %v3623
        %v3694 = vsub.f32 %v3401, %v3628
        %v3695 = vsub.f32 %v3406, %v3633
        %v3696 = vsub.f32 %v3409, %v3638
        %v3697 = vsub.f32 %v3414, %v3643
        %v3698 = vsub.f32 %v3417, %v3648
        %v3699 = vsub.f32 %v3422, %v3653
        %v3700 = vsub.f32 %v3425, %v3658
        %v3701 = vsub.f32 %v3430, %v3663
        %v3702 = vsub.f32 %v3433, %v3668
        %v3703 = vsub.f32 %v3438, %v3673
        %v3704 = vsub.f32 %v3441, %v3678
        %v3705 = vsub.f32 %v3446, %v3683
        %v3706 = vsub.f32 %v3449, %v3688
        %3707 = vst [vmem:[%s604] sm:$0xff] %v3691
        %3708 = vst [vmem:[%s604 + $0x8] sm:$0xff] %v3692
        %3709 = vst [vmem:[%s604 + $0x10] sm:$0xff] %v3693
        %3710 = vst [vmem:[%s604 + $0x18] sm:$0xff] %v3694
        %3711 = vst [vmem:[%s604 + $0x20] sm:$0xff] %v3695
        %3712 = vst [vmem:[%s604 + $0x28] sm:$0xff] %v3696
        %3713 = vst [vmem:[%s604 + $0x30] sm:$0xff] %v3697
        %3714 = vst [vmem:[%s604 + $0x38] sm:$0xff] %v3698
        %3715 = vst [vmem:[%s604 + $0x40] sm:$0xff] %v3699
        %3716 = vst [vmem:[%s604 + $0x48] sm:$0xff] %v3700
        %3717 = vst [vmem:[%s604 + $0x50] sm:$0xff] %v3701
        %3718 = vst [vmem:[%s604 + $0x58] sm:$0xff] %v3702
        %3719 = vst [vmem:[%s604 + $0x60] sm:$0xff] %v3703
        %3720 = vst [vmem:[%s604 + $0x68] sm:$0xff] %v3704
        %3721 = vst [vmem:[%s604 + $0x70] sm:$0xff] %v3705
        %3722 = vst [vmem:[%s604 + $0x78] sm:$0xff] %v3706
        %s3723 = sand.u32 %s384, 1
        %s3724 = scalar_lea.sflag [#allocation5], %s3723
        %s3725 = sand.u32 %s384, 1
        %s3726 = smul.addr %s3725, 128
        %s3727 = scalar_lea.vmem [#allocation14], %s3726
        // Predicated region
        $region109: #{tpu_custom_call.1} parent=83 // pred_check
          %p3728 = pneg %p394
        $region110: #{tpu_custom_call.1} parent=83 // pred_check_branch
          %3730 = sbr.rel (%p3728) target = $region112
        $region111: #{tpu_custom_call.1} parent=83 // pred_region
          %s3731 = smul.u32 16, %s35
          %s3733 = ssub.s32 2048, 2048
          %3734 = vsyncadd %s3724, %s3733
          %s3735 = smul.addr %s3731, 128
          %s3736 = scalar_lea.hbm %s16, %s3735
          %s3737 = sshll.u32 %s3727, 4
          %s3738 = int_to_ptr.vmem [resolvable:$true] %s3737
          %3743 = dma.vmem_to_hbm [thread:$0]  %s3738, 2048, %s3736, %s3724, 128, 128, 8
        $region112: #{tpu_custom_call.1} parent=83 // pred_fallthru
          _
      $region84: #{tpu_custom_call.1} parent=5 // pred_fallthru
        _
      %p3744 = scmp.le.s32.totalorder 2, %s30
      // Predicated region
      $region113: #{tpu_custom_call.1} parent=5 // pred_check
        %p3745 = pneg %p3744
      $region114: #{tpu_custom_call.1} parent=5 // pred_check_branch
        %3747 = sbr.rel (%p3745) target = $region116
      $region115: #{tpu_custom_call.1} parent=5 // pred_region
        %s3748 = ssub.s32 %s30, 2
        // Predicated region
        $region117: #{tpu_custom_call.1} parent=115 // pred_check
          %p3749 = pneg %p400
        $region118: #{tpu_custom_call.1} parent=115 // pred_check_branch
          %3751 = sbr.rel (%p3749) target = $region120
        $region119: #{tpu_custom_call.1} parent=115 // pred_region
          %s3752 = sand.u32 %s385, 1
          %s3753 = scalar_lea.sflag [#allocation5], %s3752
          %s3754 = sand.u32 %s385, 1
          %s3755 = smul.addr %s3754, 128
          %s3756 = scalar_lea.vmem [#allocation14], %s3755
          %3757 = dma.done %s3753, 2048
        $region120: #{tpu_custom_call.1} parent=115 // pred_fallthru
          _
      $region116: #{tpu_custom_call.1} parent=5 // pred_fallthru
        _
    $region6: #{tpu_custom_call.1} parent=1 // loop_footer
      %s34 = sadd.s32 1, %s30
    $region7: #{tpu_custom_call.1} parent=1 // loop_footer_branch
      %29 = sbr.rel target = $region3
    $region8: #{tpu_custom_call.1} parent=1 // loop_exit
      _
    %3758 = vsyncpa [#allocation4], 1
    %s3759 = scalar_lea.sflag [#allocation4], 1
    %3760 = vsyncpa %s3759, 1
    %3761 = vsyncpa [#allocation7], 1
    %3762 = vsyncpa [#allocation10], 1
    %3763 = vsyncpa [#allocation13], 1
    %3764 = vsyncpa [#allocation5], 1
    %s3765 = scalar_lea.sflag [#allocation5], 1
    %3766 = vsyncpa %s3765, 1

</llo_original>
